<compile_context>
chip_gen: v6e
topology: v6e:2x2x1
jax: 0.10.0
libtpu: 0.0.40
codegen_flags: <defaults>
</compile_context>

<pallas_src>
import functools

import jax
import jax.numpy as jnp
from jax.experimental import pallas as pl
from jax.experimental.pallas import tpu as pltpu


_VMEM_LIMIT = 40 * 1024 * 1024  # explicit: v5e scoped default is only 16 MiB


def _round_up(x, m):
    return ((x + m - 1) // m) * m


def _pad2d(a, rows, cols, dtype):
    """Zero-pad to (rows, cols) only if needed, then cast (no-op if already right)."""
    r, c = a.shape
    if (r, c) != (rows, cols):
        a = jnp.pad(a, ((0, rows - r), (0, cols - c)))
    return a.astype(dtype)


# ---------------------------------------------------------------------------
# Kernel 1: single-K-block matmul + bias (+ ReLU)  (conv1 / conv2 im2col GEMMs)
# ---------------------------------------------------------------------------
def _linear_kernel(x_ref, w_ref, b_ref, o_ref, *, relu):
    y = jnp.dot(x_ref[...], w_ref[...], preferred_element_type=jnp.float32)
    y = y + b_ref[...]
    if relu:
        y = jnp.maximum(y, 0.0)
    o_ref[...] = y.astype(o_ref.dtype)


def pallas_linear(x, w, b, *, relu, tm=1024, out_dtype=jnp.float32):
    """y = x @ w + b (optional ReLU).  x:(M,K) bf16, w:(K,N) bf16, b:(N,).

    K is taken as ONE full block (fine for the conv layers, K <= 576), M is not
    padded (last block uses masked stores), output is exactly (M, N).
    """
    M, K = x.shape
    K2, N = w.shape
    assert K == K2, (K, K2)

    tm = min(tm, M)
    x = x.astype(jnp.bfloat16)
    w = w.astype(jnp.bfloat16)
    b2 = b.reshape(1, N).astype(jnp.float32)

    grid = (pl.cdiv(M, tm),)
    return pl.pallas_call(
        functools.partial(_linear_kernel, relu=relu),
        out_shape=jax.ShapeDtypeStruct((M, N), out_dtype),
        grid=grid,
        in_specs=[
            pl.BlockSpec((tm, K), lambda i: (i, 0)),
            pl.BlockSpec((K, N), lambda i: (0, 0)),
            pl.BlockSpec((1, N), lambda i: (0, 0)),
        ],
        out_specs=pl.BlockSpec((tm, N), lambda i: (i, 0)),
        compiler_params=pltpu.CompilerParams(
            dimension_semantics=("parallel",),
            vmem_limit_bytes=_VMEM_LIMIT,
        ),
    )(x, w, b2)


# ---------------------------------------------------------------------------
# Kernel 2: fused 3x3 / stride-1 / pad-1 conv + ReLU (no im2col in HBM)
# ---------------------------------------------------------------------------
def _conv3x3_kernel(x_ref, w_ref, b_ref, o_ref, *, oh, ow, cin, cout):
    # x_ref: (1, oh+2, ow+2, cin) bf16 (already spatially padded)
    # w_ref: (9, cin, cout) bf16, tap t = dy*3+dx ; b_ref: (1, cout) f32
    bias = b_ref[...]

    def row_body(i, carry):
        acc = jnp.zeros((ow, cout), jnp.float32)
        for dy in range(3):
            row = x_ref[0, i + dy]                       # (ow+2, cin)
            for dx in range(3):
                win = jax.lax.slice(row, (dx, 0), (dx + ow, cin))   # (ow, cin)
                acc = acc + jnp.dot(win, w_ref[dy * 3 + dx],
                                    preferred_element_type=jnp.float32)
        y = jnp.maximum(acc + bias, 0.0)
        o_ref[0, i] = y.astype(o_ref.dtype)
        return carry

    jax.lax.fori_loop(0, oh, row_body, 0)


def conv3x3_fused(x, w_taps, b, *, out_dtype=jnp.bfloat16):
    """x: (N, H, W, Cin) bf16 -> (N, H, W, Cout) bf16 (3x3, stride 1, pad 1, ReLU)."""
    n, h, w, cin = x.shape
    cout = w_taps.shape[2]
    xp = jnp.pad(x, ((0, 0), (1, 1), (1, 1), (0, 0)))
    kern = functools.partial(_conv3x3_kernel, oh=h, ow=w, cin=cin, cout=cout)
    return pl.pallas_call(
        kern,
        out_shape=jax.ShapeDtypeStruct((n, h, w, cout), out_dtype),
        grid=(n,),
        in_specs=[
            pl.BlockSpec((1, h + 2, w + 2, cin), lambda i: (i, 0, 0, 0)),
            pl.BlockSpec((9, cin, cout), lambda i: (0, 0, 0)),
            pl.BlockSpec((1, cout), lambda i: (0, 0)),
        ],
        out_specs=pl.BlockSpec((1, h, w, cout), lambda i: (i, 0, 0, 0)),
        compiler_params=pltpu.CompilerParams(
            dimension_semantics=("parallel",),
            vmem_limit_bytes=_VMEM_LIMIT,
        ),
    )(xp, w_taps.astype(jnp.bfloat16), b.reshape(1, cout).astype(jnp.float32))


# ---------------------------------------------------------------------------
# Kernel 3: fused fc + concat(goal) + value head (256 -> 128 -> 1)
# ---------------------------------------------------------------------------
def _head_kernel(x_ref, fcw_ref, fcb_ref, g_ref, v1f_ref, v1g_ref, v1b_ref,
                 v2w_ref, v2b_ref, v3w_ref, v3b_ref, o_ref, acc_ref):
    k = pl.program_id(1)

    @pl.when(k == 0)
    def _():
        acc_ref[...] = jnp.zeros_like(acc_ref)

    # fc layer (large K reduction, accumulated across the k grid axis)
    acc_ref[...] += jnp.dot(x_ref[...], fcw_ref[...],
                            preferred_element_type=jnp.float32)

    @pl.when(k == pl.num_programs(1) - 1)
    def _():
        feats = jnp.maximum(acc_ref[...] + fcb_ref[...], 0.0)           # (tm, F)
        # concat([feats, goal]) @ v1_w  ==  feats @ v1_wf + goal @ v1_wg
        h = jnp.dot(feats.astype(jnp.bfloat16), v1f_ref[...],
                    preferred_element_type=jnp.float32)
        h = h + jnp.dot(g_ref[...], v1g_ref[...],
                        preferred_element_type=jnp.float32)
        h = jnp.maximum(h + v1b_ref[...], 0.0)                          # (tm, 256)
        h2 = jnp.dot(h.astype(jnp.bfloat16), v2w_ref[...],
                     preferred_element_type=jnp.float32)
        h2 = jnp.maximum(h2 + v2b_ref[...], 0.0)                        # (tm, 128)
        # final 128 -> 1 projection: VPU multiply + lane reduction (no MXU)
        v = jnp.sum(h2 * v3w_ref[...], axis=-1, keepdims=True) + v3b_ref[...]
        o_ref[...] = jnp.broadcast_to(v, o_ref.shape).astype(o_ref.dtype)


def pallas_value_head(x, goal, kp, *, tm=512, tk_max=4096):
    """x:(M, conv_out_size) bf16 NHWC-flattened conv features, goal:(M, G) -> (M,)."""
    M, K = x.shape
    F = kp["fc_w"].shape[1]
    G = goal.shape[1]

    tm = min(tm, M)
    nk = max(1, -(-K // tk_max))
    if nk == 1:
        tk, Kp = K, K                       # full-K block: no padding at all
    else:
        tk = _round_up(-(-K // nk), 128)
        Kp = nk * tk
    Gp = _round_up(G, 128)

    x_p = _pad2d(x, M, Kp, jnp.bfloat16)
    fcw_p = _pad2d(kp["fc_w"], Kp, F, jnp.bfloat16)
    fcb_p = kp["fc_b"].reshape(1, F).astype(jnp.float32)
    g_p = _pad2d(goal, M, Gp, jnp.bfloat16)
    v1f_p = kp["v1_wf"].astype(jnp.bfloat16)                  # (F, 256)
    v1g_p = _pad2d(kp["v1_wg"], Gp, 256, jnp.bfloat16)
    v1b_p = kp["v1_b"].reshape(1, 256).astype(jnp.float32)
    v2w_p = kp["v2_w"].astype(jnp.bfloat16)                   # (256, 128)
    v2b_p = kp["v2_b"].reshape(1, 128).astype(jnp.float32)
    v3w_p = kp["v3_w"].reshape(1, 128).astype(jnp.float32)    # (128,1) -> row
    v3b_p = kp["v3_b"].reshape(1, 1).astype(jnp.float32)

    grid = (pl.cdiv(M, tm), nk)
    out = pl.pallas_call(
        _head_kernel,
        out_shape=jax.ShapeDtypeStruct((M, 128), jnp.float32),
        grid=grid,
        in_specs=[
            pl.BlockSpec((tm, tk), lambda i, k: (i, k)),      # conv features
            pl.BlockSpec((tk, F), lambda i, k: (k, 0)),       # fc weight
            pl.BlockSpec((1, F), lambda i, k: (0, 0)),        # fc bias
            pl.BlockSpec((tm, Gp), lambda i, k: (i, 0)),      # goal vec
            pl.BlockSpec((F, 256), lambda i, k: (0, 0)),      # v1 (features part)
            pl.BlockSpec((Gp, 256), lambda i, k: (0, 0)),     # v1 (goal part)
            pl.BlockSpec((1, 256), lambda i, k: (0, 0)),      # v1 bias
            pl.BlockSpec((256, 128), lambda i, k: (0, 0)),    # v2 weight
            pl.BlockSpec((1, 128), lambda i, k: (0, 0)),      # v2 bias
            pl.BlockSpec((1, 128), lambda i, k: (0, 0)),      # v3 weight (row)
            pl.BlockSpec((1, 1), lambda i, k: (0, 0)),        # v3 bias
        ],
        out_specs=pl.BlockSpec((tm, 128), lambda i, k: (i, 0)),
        scratch_shapes=[pltpu.VMEM((tm, F), jnp.float32)],
        compiler_params=pltpu.CompilerParams(
            dimension_semantics=("parallel", "arbitrary"),
            vmem_limit_bytes=_VMEM_LIMIT,
        ),
    )(x_p, fcw_p, fcb_p, g_p, v1f_p, v1g_p, v1b_p, v2w_p, v2b_p, v3w_p, v3b_p)
    return out[:, 0]


# ---------------------------------------------------------------------------
# Plain-JAX glue: NHWC im2col (conv1 / conv2 only)
# ---------------------------------------------------------------------------
def im2col_nhwc(x, kh, kw, stride, pad):
    """x: (N, H, W, C) -> ((N*OH*OW, kh*kw*C), OH, OW). Feature order (kh,kw,C)."""
    x = jnp.pad(x, ((0, 0), (pad, pad), (pad, pad), (0, 0)))
    n, hp, wp, c = x.shape
    oh = (hp - kh) // stride + 1
    ow = (wp - kw) // stride + 1
    cols = []
    for i in range(kh):
        for j in range(kw):
            cols.append(x[:, i:i + oh * stride:stride, j:j + ow * stride:stride, :])
    patches = jnp.stack(cols, axis=3)                 # (N, OH, OW, kh*kw, C)
    return patches.reshape(n * oh * ow, kh * kw * c), oh, ow


def conv2d_nhwc_pallas(x, w_mat, b, kh, kw, stride, pad):
    """x: (N,H,W,Cin) bf16, w_mat: (kh*kw*Cin, Cout) -> (N,OH,OW,Cout) bf16."""
    n = x.shape[0]
    cout = w_mat.shape[1]
    patches, oh, ow = im2col_nhwc(x, kh, kw, stride, pad)
    y = pallas_linear(patches, w_mat, b, relu=True, out_dtype=jnp.bfloat16)
    return y.reshape(n, oh, ow, cout)


# ---------------------------------------------------------------------------
# One-time host-side re-layout of the PyTorch-style parameters
# ---------------------------------------------------------------------------
def prepare_params(params, h3, w3):
    feature_dim = params["fc_w"].shape[1]
    c3_out = params["c3_w"].shape[0]

    def conv_w_mat(w):   # (Cout, Cin, KH, KW) -> (KH*KW*Cin, Cout)  (NHWC patch order)
        cout, cin, kh, kw = w.shape
        return w.transpose(2, 3, 1, 0).reshape(kh * kw * cin, cout).astype(jnp.bfloat16)

    def conv_w_taps(w):  # (Cout, Cin, 3, 3) -> (9, Cin, Cout), tap = dy*3+dx
        cout, cin, kh, kw = w.shape
        return w.transpose(2, 3, 1, 0).reshape(kh * kw, cin, cout).astype(jnp.bfloat16)

    # torch flattens NCHW (C, OH, OW); we flatten NHWC (OH, OW, C) -> permute fc rows
    fc_w = params["fc_w"].reshape(c3_out, h3, w3, feature_dim)
    fc_w = fc_w.transpose(1, 2, 0, 3).reshape(h3 * w3 * c3_out, feature_dim)

    v1_w = params["v1_w"]
    return {
        "c1_w": conv_w_mat(params["c1_w"]), "c1_b": params["c1_b"].astype(jnp.float32),
        "c2_w": conv_w_mat(params["c2_w"]), "c2_b": params["c2_b"].astype(jnp.float32),
        "c3_w_taps": conv_w_taps(params["c3_w"]), "c3_b": params["c3_b"].astype(jnp.float32),
        "fc_w": fc_w.astype(jnp.bfloat16), "fc_b": params["fc_b"].astype(jnp.float32),
        "v1_wf": v1_w[:feature_dim].astype(jnp.bfloat16),
        "v1_wg": v1_w[feature_dim:].astype(jnp.bfloat16),
        "v1_b": params["v1_b"].astype(jnp.float32),
        "v2_w": params["v2_w"].astype(jnp.bfloat16), "v2_b": params["v2_b"].astype(jnp.float32),
        "v3_w": params["v3_w"].astype(jnp.float32), "v3_b": params["v3_b"].astype(jnp.float32),
    }


# ---------------------------------------------------------------------------
# PPOValue forward
# ---------------------------------------------------------------------------
def ppo_value_forward(kp, images, goal_vec):
    # bf16 once, before the transpose and im2col (halves entry/patch HBM traffic)
    x = images.astype(jnp.bfloat16).transpose(0, 2, 3, 1)     # NCHW -> NHWC once
    x = conv2d_nhwc_pallas(x, kp["c1_w"], kp["c1_b"], 8, 8, 4, 2)
    x = conv2d_nhwc_pallas(x, kp["c2_w"], kp["c2_b"], 4, 4, 2, 1)
    x = conv3x3_fused(x, kp["c3_w_taps"], kp["c3_b"])         # fused 3x3 conv
    n = x.shape[0]
    x_flat = x.reshape(n, -1)                                 # NHWC flatten (contiguous)
    return pallas_value_head(x_flat, goal_vec, kp)            # (N,)


# ---------------------------------------------------------------------------
# Deterministic parameter init + run
# ---------------------------------------------------------------------------
def _conv_out(s, k, st, p):
    return (s + 2 * p - k) // st + 1


def init_params(key, in_channels, feature_dim, goal_vec_dim, H, W):
    ks = jax.random.split(key, 14)

    def w_init(k, shape, fan_in):
        return jax.random.normal(k, shape, jnp.float32) / jnp.sqrt(float(fan_in))

    def b_init(k, shape, fan_in):
        return (jax.random.normal(k, shape, jnp.float32) / jnp.sqrt(float(fan_in))) * 0.1

    h1, w1 = _conv_out(H, 8, 4, 2), _conv_out(W, 8, 4, 2)
    h2, w2 = _conv_out(h1, 4, 2, 1), _conv_out(w1, 4, 2, 1)
    h3, w3 = _conv_out(h2, 3, 1, 1), _conv_out(w2, 3, 1, 1)
    conv_out_size = 64 * h3 * w3
    combined_dim = feature_dim + goal_vec_dim

    params = {
        "c1_w": w_init(ks[0], (32, in_channels, 8, 8), in_channels * 64),
        "c1_b": b_init(ks[1], (32,), in_channels * 64),
        "c2_w": w_init(ks[2], (64, 32, 4, 4), 32 * 16),
        "c2_b": b_init(ks[3], (64,), 32 * 16),
        "c3_w": w_init(ks[4], (64, 64, 3, 3), 64 * 9),
        "c3_b": b_init(ks[5], (64,), 64 * 9),
        "fc_w": w_init(ks[6], (conv_out_size, feature_dim), conv_out_size),
        "fc_b": b_init(ks[7], (feature_dim,), conv_out_size),
        "v1_w": w_init(ks[8], (combined_dim, 256), combined_dim),
        "v1_b": b_init(ks[9], (256,), combined_dim),
        "v2_w": w_init(ks[10], (256, 128), 256),
        "v2_b": b_init(ks[11], (128,), 256),
        "v3_w": w_init(ks[12], (128, 1), 128),
        "v3_b": b_init(ks[13], (1,), 128),
    }
    return params, (h3, w3)


if __name__ == "__main__":
    # Small stand-in for SENSOR_SIZE=(256, 160): (W, H) = (32, 32)
    SENSOR_SIZE = (32, 32)
    B, CIN = 2, 6
    FEATURE_DIM, GOAL_DIM = 64, 2
    H, W = SENSOR_SIZE[1], SENSOR_SIZE[0]

    key = jax.random.PRNGKey(0)
    k_param, k_img, k_goal = jax.random.split(key, 3)

    params, (h3, w3) = init_params(k_param, CIN, FEATURE_DIM, GOAL_DIM, H, W)
    kparams = prepare_params(params, h3, w3)

    images = jax.random.normal(k_img, (B, CIN, H, W), jnp.float32)
    goal_vec = jax.random.normal(k_goal, (B, GOAL_DIM), jnp.float32)

    fwd = jax.jit(ppo_value_forward)
    value = jax.block_until_ready(fwd(kparams, images, goal_vec))

    assert value.shape == (B,), value.shape
    assert bool(jnp.all(jnp.isfinite(value)))
    print("KERNEL_OK")
</pallas_src>

<mosaic_0001>
module attributes {stable_mosaic.version = 11 : i64} {
  func.func @_linear_kernel(%arg0: i32, %arg1: memref<128x384xbf16, #tpu.memory_space<vmem>>, %arg2: memref<384x32xbf16, #tpu.memory_space<vmem>>, %arg3: memref<1x32xf32, #tpu.memory_space<vmem>>, %arg4: memref<128x32xbf16, #tpu.memory_space<vmem>>) attributes {dimension_semantics = [#tpu.dimension_semantics<parallel>], iteration_bounds = array<i64: 1>, scalar_prefetch = 0 : i64, scratch_operands = 0 : i64, tpu.core_type = #tpu.core_type<tc>, window_params = [{transform_indices = @transform_0, window_bounds = array<i64: 128, 384>}, {pipeline_mode = #tpu.pipeline_mode<synchronous>, transform_indices = @transform_1, window_bounds = array<i64: 384, 32>}, {pipeline_mode = #tpu.pipeline_mode<synchronous>, transform_indices = @transform_2, window_bounds = array<i64: 1, 32>}, {transform_indices = @transform_3, window_bounds = array<i64: 128, 32>}]} {
    %c0 = arith.constant 0 : index
    %c0_0 = arith.constant 0 : index
    %0 = vector.load %arg1[%c0, %c0_0] : memref<128x384xbf16, #tpu.memory_space<vmem>>, vector<128x384xbf16>
    %c0_1 = arith.constant 0 : index
    %c0_2 = arith.constant 0 : index
    %1 = vector.load %arg2[%c0_1, %c0_2] : memref<384x32xbf16, #tpu.memory_space<vmem>>, vector<384x32xbf16>
    %cst = arith.constant dense<0.000000e+00> : vector<128x32xf32>
    %2 = tpu.matmul %0, %1, %cst {dimension_numbers = #tpu.dot_dimension_numbers<[1], [0], [0], [1], [0, 0, 1, 1], [], []>} : vector<128x384xbf16>, vector<384x32xbf16>, vector<128x32xf32> -> vector<128x32xf32>
    %c0_3 = arith.constant 0 : index
    %c0_4 = arith.constant 0 : index
    %3 = vector.load %arg3[%c0_3, %c0_4] : memref<1x32xf32, #tpu.memory_space<vmem>>, vector<1x32xf32>
    %4 = vector.broadcast %3 : vector<1x32xf32> to vector<128x32xf32>
    %5 = arith.addf %2, %4 : vector<128x32xf32>
    %cst_5 = arith.constant 0.000000e+00 : f32
    %6 = vector.broadcast %cst_5 : f32 to vector<128x32xf32>
    %7 = arith.maximumf %5, %6 : vector<128x32xf32>
    %8 = arith.truncf %7 : vector<128x32xf32> to vector<128x32xbf16>
    %c0_6 = arith.constant 0 : index
    %c0_7 = arith.constant 0 : index
    %9 = vector.load %arg4[%c0_6, %c0_7] : memref<128x32xbf16, #tpu.memory_space<vmem>>, vector<128x32xbf16>
    tpu.vector_store %arg4[%c0_6, %c0_7], %8 {strides = array<i32>} : memref<128x32xbf16, #tpu.memory_space<vmem>>, vector<128x32xbf16>,
    return
  }
  func.func @transform_0(%arg0: i32) -> (i32, i32) {
    %c0_i32 = arith.constant 0 : i32
    %c0_i32_0 = arith.constant 0 : i32
    return %arg0, %c0_i32 : i32, i32
  }
  func.func @transform_1(%arg0: i32) -> (i32, i32) {
    %c0_i32 = arith.constant 0 : i32
    %c0_i32_0 = arith.constant 0 : i32
    %c0_i32_1 = arith.constant 0 : i32
    return %c0_i32, %c0_i32_0 : i32, i32
  }
  func.func @transform_2(%arg0: i32) -> (i32, i32) {
    %c0_i32 = arith.constant 0 : i32
    %c0_i32_0 = arith.constant 0 : i32
    %c0_i32_1 = arith.constant 0 : i32
    return %c0_i32, %c0_i32_0 : i32, i32
  }
  func.func @transform_3(%arg0: i32) -> (i32, i32) {
    %c0_i32 = arith.constant 0 : i32
    %c0_i32_0 = arith.constant 0 : i32
    return %arg0, %c0_i32 : i32, i32
  }
}

module attributes {stable_mosaic.version = 11 : i64} {
  func.func @_linear_kernel(%arg0: i32, %arg1: memref<32x512xbf16, #tpu.memory_space<vmem>>, %arg2: memref<512x64xbf16, #tpu.memory_space<vmem>>, %arg3: memref<1x64xf32, #tpu.memory_space<vmem>>, %arg4: memref<32x64xbf16, #tpu.memory_space<vmem>>) attributes {dimension_semantics = [#tpu.dimension_semantics<parallel>], iteration_bounds = array<i64: 1>, scalar_prefetch = 0 : i64, scratch_operands = 0 : i64, tpu.core_type = #tpu.core_type<tc>, window_params = [{transform_indices = @transform_0, window_bounds = array<i64: 32, 512>}, {pipeline_mode = #tpu.pipeline_mode<synchronous>, transform_indices = @transform_1, window_bounds = array<i64: 512, 64>}, {pipeline_mode = #tpu.pipeline_mode<synchronous>, transform_indices = @transform_2, window_bounds = array<i64: 1, 64>}, {transform_indices = @transform_3, window_bounds = array<i64: 32, 64>}]} {
    %c0 = arith.constant 0 : index
    %c0_0 = arith.constant 0 : index
    %0 = vector.load %arg1[%c0, %c0_0] : memref<32x512xbf16, #tpu.memory_space<vmem>>, vector<32x512xbf16>
    %c0_1 = arith.constant 0 : index
    %c0_2 = arith.constant 0 : index
    %1 = vector.load %arg2[%c0_1, %c0_2] : memref<512x64xbf16, #tpu.memory_space<vmem>>, vector<512x64xbf16>
    %cst = arith.constant dense<0.000000e+00> : vector<32x64xf32>
    %2 = tpu.matmul %0, %1, %cst {dimension_numbers = #tpu.dot_dimension_numbers<[1], [0], [0], [1], [0, 0, 1, 1], [], []>} : vector<32x512xbf16>, vector<512x64xbf16>, vector<32x64xf32> -> vector<32x64xf32>
    %c0_3 = arith.constant 0 : index
    %c0_4 = arith.constant 0 : index
    %3 = vector.load %arg3[%c0_3, %c0_4] : memref<1x64xf32, #tpu.memory_space<vmem>>, vector<1x64xf32>
    %4 = vector.broadcast %3 : vector<1x64xf32> to vector<32x64xf32>
    %5 = arith.addf %2, %4 : vector<32x64xf32>
    %cst_5 = arith.constant 0.000000e+00 : f32
    %6 = vector.broadcast %cst_5 : f32 to vector<32x64xf32>
    %7 = arith.maximumf %5, %6 : vector<32x64xf32>
    %8 = arith.truncf %7 : vector<32x64xf32> to vector<32x64xbf16>
    %c0_6 = arith.constant 0 : index
    %c0_7 = arith.constant 0 : index
    %9 = vector.load %arg4[%c0_6, %c0_7] : memref<32x64xbf16, #tpu.memory_space<vmem>>, vector<32x64xbf16>
    tpu.vector_store %arg4[%c0_6, %c0_7], %8 {strides = array<i32>} : memref<32x64xbf16, #tpu.memory_space<vmem>>, vector<32x64xbf16>,
    return
  }
  func.func @transform_0(%arg0: i32) -> (i32, i32) {
    %c0_i32 = arith.constant 0 : i32
    %c0_i32_0 = arith.constant 0 : i32
    return %arg0, %c0_i32 : i32, i32
  }
  func.func @transform_1(%arg0: i32) -> (i32, i32) {
    %c0_i32 = arith.constant 0 : i32
    %c0_i32_0 = arith.constant 0 : i32
    %c0_i32_1 = arith.constant 0 : i32
    return %c0_i32, %c0_i32_0 : i32, i32
  }
  func.func @transform_2(%arg0: i32) -> (i32, i32) {
    %c0_i32 = arith.constant 0 : i32
    %c0_i32_0 = arith.constant 0 : i32
    %c0_i32_1 = arith.constant 0 : i32
    return %c0_i32, %c0_i32_0 : i32, i32
  }
  func.func @transform_3(%arg0: i32) -> (i32, i32) {
    %c0_i32 = arith.constant 0 : i32
    %c0_i32_0 = arith.constant 0 : i32
    return %arg0, %c0_i32 : i32, i32
  }
}

module attributes {stable_mosaic.version = 11 : i64} {
  func.func @_conv3x3_kernel(%arg0: i32, %arg1: memref<1x6x6x64xbf16, #tpu.memory_space<vmem>>, %arg2: memref<9x64x64xbf16, #tpu.memory_space<vmem>>, %arg3: memref<1x64xf32, #tpu.memory_space<vmem>>, %arg4: memref<1x4x4x64xbf16, #tpu.memory_space<vmem>>) attributes {dimension_semantics = [#tpu.dimension_semantics<parallel>], iteration_bounds = array<i64: 2>, scalar_prefetch = 0 : i64, scratch_operands = 0 : i64, tpu.core_type = #tpu.core_type<tc>, window_params = [{transform_indices = @transform_0, window_bounds = array<i64: 1, 6, 6, 64>}, {pipeline_mode = #tpu.pipeline_mode<synchronous>, transform_indices = @transform_1, window_bounds = array<i64: 9, 64, 64>}, {pipeline_mode = #tpu.pipeline_mode<synchronous>, transform_indices = @transform_2, window_bounds = array<i64: 1, 64>}, {transform_indices = @transform_3, window_bounds = array<i64: 1, 4, 4, 64>}]} {
    %c0 = arith.constant 0 : index
    %c0_0 = arith.constant 0 : index
    %0 = vector.load %arg3[%c0, %c0_0] : memref<1x64xf32, #tpu.memory_space<vmem>>, vector<1x64xf32>
    %c0_i32 = arith.constant 0 : i32
    %c4_i32 = arith.constant 4 : i32
    %1 = arith.addi %c0_i32, %c4_i32 : i32
    %c1_i32 = arith.constant 1 : i32
    scf.for %arg5 = %c0_i32 to %1 step %c1_i32  : i32 {
      %cst = arith.constant 0.000000e+00 : f32
      %2 = vector.broadcast %cst : f32 to vector<4x64xf32>
      %c0_i32_2 = arith.constant 0 : i32
      %3 = arith.addi %arg5, %c0_i32_2 : i32
      %c0_3 = arith.constant 0 : index
      %4 = arith.index_cast %3 : i32 to index
      %c0_4 = arith.constant 0 : index
      %c0_5 = arith.constant 0 : index
      %5 = vector.load %arg1[%c0_3, %4, %c0_4, %c0_5] : memref<1x6x6x64xbf16, #tpu.memory_space<vmem>>, vector<1x1x6x64xbf16>
      %6 = vector.shape_cast %5 : vector<1x1x6x64xbf16> to vector<6x64xbf16>
      %7 = vector.extract_strided_slice %6 {offsets = [0, 0], sizes = [4, 64], strides = [1, 1]} : vector<6x64xbf16> to vector<4x64xbf16>
      %c0_6 = arith.constant 0 : index
      %c0_7 = arith.constant 0 : index
      %c0_8 = arith.constant 0 : index
      %8 = vector.load %arg2[%c0_6, %c0_7, %c0_8] : memref<9x64x64xbf16, #tpu.memory_space<vmem>>, vector<1x64x64xbf16>
      %9 = vector.shape_cast %8 : vector<1x64x64xbf16> to vector<64x64xbf16>
      %cst_9 = arith.constant dense<0.000000e+00> : vector<4x64xf32>
      %10 = tpu.matmul %7, %9, %cst_9 {dimension_numbers = #tpu.dot_dimension_numbers<[1], [0], [0], [1], [0, 0, 1, 1], [], []>} : vector<4x64xbf16>, vector<64x64xbf16>, vector<4x64xf32> -> vector<4x64xf32>
      %11 = arith.addf %2, %10 : vector<4x64xf32>
      %12 = vector.extract_strided_slice %6 {offsets = [1, 0], sizes = [4, 64], strides = [1, 1]} : vector<6x64xbf16> to vector<4x64xbf16>
      %c1 = arith.constant 1 : index
      %c0_10 = arith.constant 0 : index
      %c0_11 = arith.constant 0 : index
      %13 = vector.load %arg2[%c1, %c0_10, %c0_11] : memref<9x64x64xbf16, #tpu.memory_space<vmem>>, vector<1x64x64xbf16>
      %14 = vector.shape_cast %13 : vector<1x64x64xbf16> to vector<64x64xbf16>
      %cst_12 = arith.constant dense<0.000000e+00> : vector<4x64xf32>
      %15 = tpu.matmul %12, %14, %cst_12 {dimension_numbers = #tpu.dot_dimension_numbers<[1], [0], [0], [1], [0, 0, 1, 1], [], []>} : vector<4x64xbf16>, vector<64x64xbf16>, vector<4x64xf32> -> vector<4x64xf32>
      %16 = arith.addf %11, %15 : vector<4x64xf32>
      %17 = vector.extract_strided_slice %6 {offsets = [2, 0], sizes = [4, 64], strides = [1, 1]} : vector<6x64xbf16> to vector<4x64xbf16>
      %c2 = arith.constant 2 : index
      %c0_13 = arith.constant 0 : index
      %c0_14 = arith.constant 0 : index
      %18 = vector.load %arg2[%c2, %c0_13, %c0_14] : memref<9x64x64xbf16, #tpu.memory_space<vmem>>, vector<1x64x64xbf16>
      %19 = vector.shape_cast %18 : vector<1x64x64xbf16> to vector<64x64xbf16>
      %cst_15 = arith.constant dense<0.000000e+00> : vector<4x64xf32>
      %20 = tpu.matmul %17, %19, %cst_15 {dimension_numbers = #tpu.dot_dimension_numbers<[1], [0], [0], [1], [0, 0, 1, 1], [], []>} : vector<4x64xbf16>, vector<64x64xbf16>, vector<4x64xf32> -> vector<4x64xf32>
      %21 = arith.addf %16, %20 : vector<4x64xf32>
      %c1_i32_16 = arith.constant 1 : i32
      %22 = arith.addi %arg5, %c1_i32_16 : i32
      %c0_17 = arith.constant 0 : index
      %23 = arith.index_cast %22 : i32 to index
      %c0_18 = arith.constant 0 : index
      %c0_19 = arith.constant 0 : index
      %24 = vector.load %arg1[%c0_17, %23, %c0_18, %c0_19] : memref<1x6x6x64xbf16, #tpu.memory_space<vmem>>, vector<1x1x6x64xbf16>
      %25 = vector.shape_cast %24 : vector<1x1x6x64xbf16> to vector<6x64xbf16>
      %26 = vector.extract_strided_slice %25 {offsets = [0, 0], sizes = [4, 64], strides = [1, 1]} : vector<6x64xbf16> to vector<4x64xbf16>
      %c3 = arith.constant 3 : index
      %c0_20 = arith.constant 0 : index
      %c0_21 = arith.constant 0 : index
      %27 = vector.load %arg2[%c3, %c0_20, %c0_21] : memref<9x64x64xbf16, #tpu.memory_space<vmem>>, vector<1x64x64xbf16>
      %28 = vector.shape_cast %27 : vector<1x64x64xbf16> to vector<64x64xbf16>
      %cst_22 = arith.constant dense<0.000000e+00> : vector<4x64xf32>
      %29 = tpu.matmul %26, %28, %cst_22 {dimension_numbers = #tpu.dot_dimension_numbers<[1], [0], [0], [1], [0, 0, 1, 1], [], []>} : vector<4x64xbf16>, vector<64x64xbf16>, vector<4x64xf32> -> vector<4x64xf32>
      %30 = arith.addf %21, %29 : vector<4x64xf32>
      %31 = vector.extract_strided_slice %25 {offsets = [1, 0], sizes = [4, 64], strides = [1, 1]} : vector<6x64xbf16> to vector<4x64xbf16>
      %c4 = arith.constant 4 : index
      %c0_23 = arith.constant 0 : index
      %c0_24 = arith.constant 0 : index
      %32 = vector.load %arg2[%c4, %c0_23, %c0_24] : memref<9x64x64xbf16, #tpu.memory_space<vmem>>, vector<1x64x64xbf16>
      %33 = vector.shape_cast %32 : vector<1x64x64xbf16> to vector<64x64xbf16>
      %cst_25 = arith.constant dense<0.000000e+00> : vector<4x64xf32>
      %34 = tpu.matmul %31, %33, %cst_25 {dimension_numbers = #tpu.dot_dimension_numbers<[1], [0], [0], [1], [0, 0, 1, 1], [], []>} : vector<4x64xbf16>, vector<64x64xbf16>, vector<4x64xf32> -> vector<4x64xf32>
      %35 = arith.addf %30, %34 : vector<4x64xf32>
      %36 = vector.extract_strided_slice %25 {offsets = [2, 0], sizes = [4, 64], strides = [1, 1]} : vector<6x64xbf16> to vector<4x64xbf16>
      %c5 = arith.constant 5 : index
      %c0_26 = arith.constant 0 : index
      %c0_27 = arith.constant 0 : index
      %37 = vector.load %arg2[%c5, %c0_26, %c0_27] : memref<9x64x64xbf16, #tpu.memory_space<vmem>>, vector<1x64x64xbf16>
      %38 = vector.shape_cast %37 : vector<1x64x64xbf16> to vector<64x64xbf16>
      %cst_28 = arith.constant dense<0.000000e+00> : vector<4x64xf32>
      %39 = tpu.matmul %36, %38, %cst_28 {dimension_numbers = #tpu.dot_dimension_numbers<[1], [0], [0], [1], [0, 0, 1, 1], [], []>} : vector<4x64xbf16>, vector<64x64xbf16>, vector<4x64xf32> -> vector<4x64xf32>
      %40 = arith.addf %35, %39 : vector<4x64xf32>
      %c2_i32 = arith.constant 2 : i32
      %41 = arith.addi %arg5, %c2_i32 : i32
      %c0_29 = arith.constant 0 : index
      %42 = arith.index_cast %41 : i32 to index
      %c0_30 = arith.constant 0 : index
      %c0_31 = arith.constant 0 : index
      %43 = vector.load %arg1[%c0_29, %42, %c0_30, %c0_31] : memref<1x6x6x64xbf16, #tpu.memory_space<vmem>>, vector<1x1x6x64xbf16>
      %44 = vector.shape_cast %43 : vector<1x1x6x64xbf16> to vector<6x64xbf16>
      %45 = vector.extract_strided_slice %44 {offsets = [0, 0], sizes = [4, 64], strides = [1, 1]} : vector<6x64xbf16> to vector<4x64xbf16>
      %c6 = arith.constant 6 : index
      %c0_32 = arith.constant 0 : index
      %c0_33 = arith.constant 0 : index
      %46 = vector.load %arg2[%c6, %c0_32, %c0_33] : memref<9x64x64xbf16, #tpu.memory_space<vmem>>, vector<1x64x64xbf16>
      %47 = vector.shape_cast %46 : vector<1x64x64xbf16> to vector<64x64xbf16>
      %cst_34 = arith.constant dense<0.000000e+00> : vector<4x64xf32>
      %48 = tpu.matmul %45, %47, %cst_34 {dimension_numbers = #tpu.dot_dimension_numbers<[1], [0], [0], [1], [0, 0, 1, 1], [], []>} : vector<4x64xbf16>, vector<64x64xbf16>, vector<4x64xf32> -> vector<4x64xf32>
      %49 = arith.addf %40, %48 : vector<4x64xf32>
      %50 = vector.extract_strided_slice %44 {offsets = [1, 0], sizes = [4, 64], strides = [1, 1]} : vector<6x64xbf16> to vector<4x64xbf16>
      %c7 = arith.constant 7 : index
      %c0_35 = arith.constant 0 : index
      %c0_36 = arith.constant 0 : index
      %51 = vector.load %arg2[%c7, %c0_35, %c0_36] : memref<9x64x64xbf16, #tpu.memory_space<vmem>>, vector<1x64x64xbf16>
      %52 = vector.shape_cast %51 : vector<1x64x64xbf16> to vector<64x64xbf16>
      %cst_37 = arith.constant dense<0.000000e+00> : vector<4x64xf32>
      %53 = tpu.matmul %50, %52, %cst_37 {dimension_numbers = #tpu.dot_dimension_numbers<[1], [0], [0], [1], [0, 0, 1, 1], [], []>} : vector<4x64xbf16>, vector<64x64xbf16>, vector<4x64xf32> -> vector<4x64xf32>
      %54 = arith.addf %49, %53 : vector<4x64xf32>
      %55 = vector.extract_strided_slice %44 {offsets = [2, 0], sizes = [4, 64], strides = [1, 1]} : vector<6x64xbf16> to vector<4x64xbf16>
      %c8 = arith.constant 8 : index
      %c0_38 = arith.constant 0 : index
      %c0_39 = arith.constant 0 : index
      %56 = vector.load %arg2[%c8, %c0_38, %c0_39] : memref<9x64x64xbf16, #tpu.memory_space<vmem>>, vector<1x64x64xbf16>
      %57 = vector.shape_cast %56 : vector<1x64x64xbf16> to vector<64x64xbf16>
      %cst_40 = arith.constant dense<0.000000e+00> : vector<4x64xf32>
      %58 = tpu.matmul %55, %57, %cst_40 {dimension_numbers = #tpu.dot_dimension_numbers<[1], [0], [0], [1], [0, 0, 1, 1], [], []>} : vector<4x64xbf16>, vector<64x64xbf16>, vector<4x64xf32> -> vector<4x64xf32>
      %59 = arith.addf %54, %58 : vector<4x64xf32>
      %60 = vector.broadcast %0 : vector<1x64xf32> to vector<4x64xf32>
      %61 = arith.addf %59, %60 : vector<4x64xf32>
      %cst_41 = arith.constant 0.000000e+00 : f32
      %62 = vector.broadcast %cst_41 : f32 to vector<4x64xf32>
      %63 = arith.maximumf %61, %62 : vector<4x64xf32>
      %64 = arith.truncf %63 : vector<4x64xf32> to vector<4x64xbf16>
      %c0_42 = arith.constant 0 : index
      %65 = arith.index_cast %arg5 : i32 to index
      %c0_43 = arith.constant 0 : index
      %c0_44 = arith.constant 0 : index
      %66 = vector.load %arg4[%c0_42, %65, %c0_43, %c0_44] : memref<1x4x4x64xbf16, #tpu.memory_space<vmem>>, vector<1x1x4x64xbf16>
      %67 = vector.shape_cast %66 : vector<1x1x4x64xbf16> to vector<4x64xbf16>
      %68 = vector.shape_cast %64 : vector<4x64xbf16> to vector<1x1x4x64xbf16>
      tpu.vector_store %arg4[%c0_42, %65, %c0_43, %c0_44], %68 {strides = array<i32>} : memref<1x4x4x64xbf16, #tpu.memory_space<vmem>>, vector<1x1x4x64xbf16>,
    }
    %c4_i32_1 = arith.constant 4 : i32
    return
  }
  func.func @transform_0(%arg0: i32) -> (i32, i32, i32, i32) {
    %c0_i32 = arith.constant 0 : i32
    %c0_i32_0 = arith.constant 0 : i32
    %c0_i32_1 = arith.constant 0 : i32
    %c0_i32_2 = arith.constant 0 : i32
    return %arg0, %c0_i32, %c0_i32_0, %c0_i32_1 : i32, i32, i32, i32
  }
  func.func @transform_1(%arg0: i32) -> (i32, i32, i32) {
    %c0_i32 = arith.constant 0 : i32
    %c0_i32_0 = arith.constant 0 : i32
    %c0_i32_1 = arith.constant 0 : i32
    %c0_i32_2 = arith.constant 0 : i32
    return %c0_i32, %c0_i32_0, %c0_i32_1 : i32, i32, i32
  }
  func.func @transform_2(%arg0: i32) -> (i32, i32) {
    %c0_i32 = arith.constant 0 : i32
    %c0_i32_0 = arith.constant 0 : i32
    %c0_i32_1 = arith.constant 0 : i32
    return %c0_i32, %c0_i32_0 : i32, i32
  }
  func.func @transform_3(%arg0: i32) -> (i32, i32, i32, i32) {
    %c0_i32 = arith.constant 0 : i32
    %c0_i32_0 = arith.constant 0 : i32
    %c0_i32_1 = arith.constant 0 : i32
    %c0_i32_2 = arith.constant 0 : i32
    return %arg0, %c0_i32, %c0_i32_0, %c0_i32_1 : i32, i32, i32, i32
  }
}

module attributes {stable_mosaic.version = 11 : i64} {
  func.func @_head_kernel(%arg0: i32, %arg1: i32, %arg2: memref<2x1024xbf16, #tpu.memory_space<vmem>>, %arg3: memref<1024x64xbf16, #tpu.memory_space<vmem>>, %arg4: memref<1x64xf32, #tpu.memory_space<vmem>>, %arg5: memref<2x128xbf16, #tpu.memory_space<vmem>>, %arg6: memref<64x256xbf16, #tpu.memory_space<vmem>>, %arg7: memref<128x256xbf16, #tpu.memory_space<vmem>>, %arg8: memref<1x256xf32, #tpu.memory_space<vmem>>, %arg9: memref<256x128xbf16, #tpu.memory_space<vmem>>, %arg10: memref<1x128xf32, #tpu.memory_space<vmem>>, %arg11: memref<1x128xf32, #tpu.memory_space<vmem>>, %arg12: memref<1x1xf32, #tpu.memory_space<vmem>>, %arg13: memref<2x128xf32, #tpu.memory_space<vmem>>, %arg14: memref<2x64xf32, #tpu.memory_space<vmem>>) attributes {dimension_semantics = [#tpu.dimension_semantics<parallel>, #tpu.dimension_semantics<arbitrary>], iteration_bounds = array<i64: 1, 1>, scalar_prefetch = 0 : i64, scratch_operands = 1 : i64, tpu.core_type = #tpu.core_type<tc>, window_params = [{transform_indices = @transform_0, window_bounds = array<i64: 2, 1024>}, {transform_indices = @transform_1, window_bounds = array<i64: 1024, 64>}, {pipeline_mode = #tpu.pipeline_mode<synchronous>, transform_indices = @transform_2, window_bounds = array<i64: 1, 64>}, {transform_indices = @transform_3, window_bounds = array<i64: 2, 128>}, {pipeline_mode = #tpu.pipeline_mode<synchronous>, transform_indices = @transform_4, window_bounds = array<i64: 64, 256>}, {pipeline_mode = #tpu.pipeline_mode<synchronous>, transform_indices = @transform_5, window_bounds = array<i64: 128, 256>}, {pipeline_mode = #tpu.pipeline_mode<synchronous>, transform_indices = @transform_6, window_bounds = array<i64: 1, 256>}, {pipeline_mode = #tpu.pipeline_mode<synchronous>, transform_indices = @transform_7, window_bounds = array<i64: 256, 128>}, {pipeline_mode = #tpu.pipeline_mode<synchronous>, transform_indices = @transform_8, window_bounds = array<i64: 1, 128>}, {pipeline_mode = #tpu.pipeline_mode<synchronous>, transform_indices = @transform_9, window_bounds = array<i64: 1, 128>}, {pipeline_mode = #tpu.pipeline_mode<synchronous>, transform_indices = @transform_10, window_bounds = array<i64: 1, 1>}, {transform_indices = @transform_11, window_bounds = array<i64: 2, 128>}]} {
    %c0_i32 = arith.constant 0 : i32
    %0 = arith.cmpi eq, %arg1, %c0_i32 : i32
    %1 = arith.extui %0 : i1 to i32
    %c0_i32_0 = arith.constant 0 : i32
    %2 = arith.cmpi ne, %1, %c0_i32_0 : i32
    scf.if %2 {
      %cst_10 = arith.constant 0.000000e+00 : f32
      %12 = vector.broadcast %cst_10 : f32 to vector<2x64xf32>
      %c0_11 = arith.constant 0 : index
      %c0_12 = arith.constant 0 : index
      %13 = vector.load %arg14[%c0_11, %c0_12] : memref<2x64xf32, #tpu.memory_space<vmem>>, vector<2x64xf32>
      tpu.vector_store %arg14[%c0_11, %c0_12], %12 {strides = array<i32>} : memref<2x64xf32, #tpu.memory_space<vmem>>, vector<2x64xf32>,
    } else {
    }
    %c0 = arith.constant 0 : index
    %c0_1 = arith.constant 0 : index
    %3 = vector.load %arg14[%c0, %c0_1] : memref<2x64xf32, #tpu.memory_space<vmem>>, vector<2x64xf32>
    %c0_2 = arith.constant 0 : index
    %c0_3 = arith.constant 0 : index
    %4 = vector.load %arg2[%c0_2, %c0_3] : memref<2x1024xbf16, #tpu.memory_space<vmem>>, vector<2x1024xbf16>
    %c0_4 = arith.constant 0 : index
    %c0_5 = arith.constant 0 : index
    %5 = vector.load %arg3[%c0_4, %c0_5] : memref<1024x64xbf16, #tpu.memory_space<vmem>>, vector<1024x64xbf16>
    %cst = arith.constant dense<0.000000e+00> : vector<2x64xf32>
    %6 = tpu.matmul %4, %5, %cst {dimension_numbers = #tpu.dot_dimension_numbers<[1], [0], [0], [1], [0, 0, 1, 1], [], []>} : vector<2x1024xbf16>, vector<1024x64xbf16>, vector<2x64xf32> -> vector<2x64xf32>
    %7 = arith.addf %3, %6 : vector<2x64xf32>
    %c0_6 = arith.constant 0 : index
    %c0_7 = arith.constant 0 : index
    %8 = vector.load %arg14[%c0_6, %c0_7] : memref<2x64xf32, #tpu.memory_space<vmem>>, vector<2x64xf32>
    tpu.vector_store %arg14[%c0_6, %c0_7], %7 {strides = array<i32>} : memref<2x64xf32, #tpu.memory_space<vmem>>, vector<2x64xf32>,
    %c0_i32_8 = arith.constant 0 : i32
    %9 = arith.cmpi eq, %arg1, %c0_i32_8 : i32
    %10 = arith.extui %9 : i1 to i32
    %c0_i32_9 = arith.constant 0 : i32
    %11 = arith.cmpi ne, %10, %c0_i32_9 : i32
    scf.if %11 {
      %c0_10 = arith.constant 0 : index
      %c0_11 = arith.constant 0 : index
      %12 = vector.load %arg14[%c0_10, %c0_11] : memref<2x64xf32, #tpu.memory_space<vmem>>, vector<2x64xf32>
      %c0_12 = arith.constant 0 : index
      %c0_13 = arith.constant 0 : index
      %13 = vector.load %arg4[%c0_12, %c0_13] : memref<1x64xf32, #tpu.memory_space<vmem>>, vector<1x64xf32>
      %14 = vector.broadcast %13 : vector<1x64xf32> to vector<2x64xf32>
      %15 = arith.addf %12, %14 : vector<2x64xf32>
      %cst_14 = arith.constant 0.000000e+00 : f32
      %16 = vector.broadcast %cst_14 : f32 to vector<2x64xf32>
      %17 = arith.maximumf %15, %16 : vector<2x64xf32>
      %18 = arith.truncf %17 : vector<2x64xf32> to vector<2x64xbf16>
      %c0_15 = arith.constant 0 : index
      %c0_16 = arith.constant 0 : index
      %19 = vector.load %arg6[%c0_15, %c0_16] : memref<64x256xbf16, #tpu.memory_space<vmem>>, vector<64x256xbf16>
      %cst_17 = arith.constant dense<0.000000e+00> : vector<2x256xf32>
      %20 = tpu.matmul %18, %19, %cst_17 {dimension_numbers = #tpu.dot_dimension_numbers<[1], [0], [0], [1], [0, 0, 1, 1], [], []>} : vector<2x64xbf16>, vector<64x256xbf16>, vector<2x256xf32> -> vector<2x256xf32>
      %c0_18 = arith.constant 0 : index
      %c0_19 = arith.constant 0 : index
      %21 = vector.load %arg5[%c0_18, %c0_19] : memref<2x128xbf16, #tpu.memory_space<vmem>>, vector<2x128xbf16>
      %c0_20 = arith.constant 0 : index
      %c0_21 = arith.constant 0 : index
      %22 = vector.load %arg7[%c0_20, %c0_21] : memref<128x256xbf16, #tpu.memory_space<vmem>>, vector<128x256xbf16>
      %cst_22 = arith.constant dense<0.000000e+00> : vector<2x256xf32>
      %23 = tpu.matmul %21, %22, %cst_22 {dimension_numbers = #tpu.dot_dimension_numbers<[1], [0], [0], [1], [0, 0, 1, 1], [], []>} : vector<2x128xbf16>, vector<128x256xbf16>, vector<2x256xf32> -> vector<2x256xf32>
      %24 = arith.addf %20, %23 : vector<2x256xf32>
      %c0_23 = arith.constant 0 : index
      %c0_24 = arith.constant 0 : index
      %25 = vector.load %arg8[%c0_23, %c0_24] : memref<1x256xf32, #tpu.memory_space<vmem>>, vector<1x256xf32>
      %26 = vector.broadcast %25 : vector<1x256xf32> to vector<2x256xf32>
      %27 = arith.addf %24, %26 : vector<2x256xf32>
      %cst_25 = arith.constant 0.000000e+00 : f32
      %28 = vector.broadcast %cst_25 : f32 to vector<2x256xf32>
      %29 = arith.maximumf %27, %28 : vector<2x256xf32>
      %30 = arith.truncf %29 : vector<2x256xf32> to vector<2x256xbf16>
      %c0_26 = arith.constant 0 : index
      %c0_27 = arith.constant 0 : index
      %31 = vector.load %arg9[%c0_26, %c0_27] : memref<256x128xbf16, #tpu.memory_space<vmem>>, vector<256x128xbf16>
      %cst_28 = arith.constant dense<0.000000e+00> : vector<2x128xf32>
      %32 = tpu.matmul %30, %31, %cst_28 {dimension_numbers = #tpu.dot_dimension_numbers<[1], [0], [0], [1], [0, 0, 1, 1], [], []>} : vector<2x256xbf16>, vector<256x128xbf16>, vector<2x128xf32> -> vector<2x128xf32>
      %c0_29 = arith.constant 0 : index
      %c0_30 = arith.constant 0 : index
      %33 = vector.load %arg10[%c0_29, %c0_30] : memref<1x128xf32, #tpu.memory_space<vmem>>, vector<1x128xf32>
      %34 = vector.broadcast %33 : vector<1x128xf32> to vector<2x128xf32>
      %35 = arith.addf %32, %34 : vector<2x128xf32>
      %cst_31 = arith.constant 0.000000e+00 : f32
      %36 = vector.broadcast %cst_31 : f32 to vector<2x128xf32>
      %37 = arith.maximumf %35, %36 : vector<2x128xf32>
      %c0_32 = arith.constant 0 : index
      %c0_33 = arith.constant 0 : index
      %38 = vector.load %arg11[%c0_32, %c0_33] : memref<1x128xf32, #tpu.memory_space<vmem>>, vector<1x128xf32>
      %39 = vector.broadcast %38 : vector<1x128xf32> to vector<2x128xf32>
      %40 = arith.mulf %37, %39 : vector<2x128xf32>
      %cst_34 = arith.constant dense<0.000000e+00> : vector<2xf32>
      %41 = vector.multi_reduction <add>, %40, %cst_34 [1] : vector<2x128xf32> to vector<2xf32>
      %42 = vector.shape_cast %41 : vector<2xf32> to vector<2x1xf32>
      %c0_35 = arith.constant 0 : index
      %c0_36 = arith.constant 0 : index
      %43 = vector.load %arg12[%c0_35, %c0_36] : memref<1x1xf32, #tpu.memory_space<vmem>>, vector<1x1xf32>
      %44 = vector.broadcast %43 : vector<1x1xf32> to vector<2x1xf32>
      %45 = arith.addf %42, %44 : vector<2x1xf32>
      %46 = vector.shape_cast %45 : vector<2x1xf32> to vector<2x1xf32>
      %47 = vector.broadcast %46 : vector<2x1xf32> to vector<2x128xf32>
      %c0_37 = arith.constant 0 : index
      %c0_38 = arith.constant 0 : index
      %48 = vector.load %arg13[%c0_37, %c0_38] : memref<2x128xf32, #tpu.memory_space<vmem>>, vector<2x128xf32>
      tpu.vector_store %arg13[%c0_37, %c0_38], %47 {strides = array<i32>} : memref<2x128xf32, #tpu.memory_space<vmem>>, vector<2x128xf32>,
    } else {
    }
    return
  }
  func.func @transform_0(%arg0: i32, %arg1: i32) -> (i32, i32) {
    %c0_i32 = arith.constant 0 : i32
    return %arg0, %arg1 : i32, i32
  }
  func.func @transform_1(%arg0: i32, %arg1: i32) -> (i32, i32) {
    %c0_i32 = arith.constant 0 : i32
    %c0_i32_0 = arith.constant 0 : i32
    return %arg1, %c0_i32 : i32, i32
  }
  func.func @transform_2(%arg0: i32, %arg1: i32) -> (i32, i32) {
    %c0_i32 = arith.constant 0 : i32
    %c0_i32_0 = arith.constant 0 : i32
    %c0_i32_1 = arith.constant 0 : i32
    return %c0_i32, %c0_i32_0 : i32, i32
  }
  func.func @transform_3(%arg0: i32, %arg1: i32) -> (i32, i32) {
    %c0_i32 = arith.constant 0 : i32
    %c0_i32_0 = arith.constant 0 : i32
    return %arg0, %c0_i32 : i32, i32
  }
  func.func @transform_4(%arg0: i32, %arg1: i32) -> (i32, i32) {
    %c0_i32 = arith.constant 0 : i32
    %c0_i32_0 = arith.constant 0 : i32
    %c0_i32_1 = arith.constant 0 : i32
    return %c0_i32, %c0_i32_0 : i32, i32
  }
  func.func @transform_5(%arg0: i32, %arg1: i32) -> (i32, i32) {
    %c0_i32 = arith.constant 0 : i32
    %c0_i32_0 = arith.constant 0 : i32
    %c0_i32_1 = arith.constant 0 : i32
    return %c0_i32, %c0_i32_0 : i32, i32
  }
  func.func @transform_6(%arg0: i32, %arg1: i32) -> (i32, i32) {
    %c0_i32 = arith.constant 0 : i32
    %c0_i32_0 = arith.constant 0 : i32
    %c0_i32_1 = arith.constant 0 : i32
    return %c0_i32, %c0_i32_0 : i32, i32
  }
  func.func @transform_7(%arg0: i32, %arg1: i32) -> (i32, i32) {
    %c0_i32 = arith.constant 0 : i32
    %c0_i32_0 = arith.constant 0 : i32
    %c0_i32_1 = arith.constant 0 : i32
    return %c0_i32, %c0_i32_0 : i32, i32
  }
  func.func @transform_8(%arg0: i32, %arg1: i32) -> (i32, i32) {
    %c0_i32 = arith.constant 0 : i32
    %c0_i32_0 = arith.constant 0 : i32
    %c0_i32_1 = arith.constant 0 : i32
    return %c0_i32, %c0_i32_0 : i32, i32
  }
  func.func @transform_9(%arg0: i32, %arg1: i32) -> (i32, i32) {
    %c0_i32 = arith.constant 0 : i32
    %c0_i32_0 = arith.constant 0 : i32
    %c0_i32_1 = arith.constant 0 : i32
    return %c0_i32, %c0_i32_0 : i32, i32
  }
  func.func @transform_10(%arg0: i32, %arg1: i32) -> (i32, i32) {
    %c0_i32 = arith.constant 0 : i32
    %c0_i32_0 = arith.constant 0 : i32
    %c0_i32_1 = arith.constant 0 : i32
    return %c0_i32, %c0_i32_0 : i32, i32
  }
  func.func @transform_11(%arg0: i32, %arg1: i32) -> (i32, i32) {
    %c0_i32 = arith.constant 0 : i32
    %c0_i32_0 = arith.constant 0 : i32
    return %arg0, %c0_i32 : i32, i32
  }
}

</mosaic_0001>

<llo_original>
// kernel: ppo_value_forward.4
$region0: #{ppo_value_forward.4}
  #allocation0 [shape = 'u32[]', space=smem, size = 0x4, offset = 0x4, fixed_abs, tag = 'smem constant byte address 0x4 - core index']
  #allocation1 [shape = 'u32[144,128]{1,0:T(1,128)}', space=vmem, size = 0x12000, scoped, tag = 'internal scratch']
  %s0 = inlined_call_operand.vmem [shape: bf16[128,384], index: 0, kind: input, shape index: {}]
  %s1 = inlined_call_operand.vmem [shape: bf16[384,32], index: 1, kind: input, shape index: {}]
  %s2 = inlined_call_operand.vmem [shape: f32[1,32], index: 2, kind: input, shape index: {}]
  %s3 = inlined_call_operand.vmem [shape: bf16[128,32], index: 3, kind: output, shape index: {}]
  %s4 = sld [smem:[#allocation0]]
  $region22: #{ppo_value_forward.4} parent=0
    _
  %s6 = ssub.s32 1, %s4
  %s7 = scalar_select 0, %s6, %s4
  // Predicated region
  $region2: #{ppo_value_forward.4} parent=0 // pred_check
    _
  $region3: #{ppo_value_forward.4} parent=0 // pred_check_branch
    %9 = sbr.rel (0) target = $region5
  $region4: #{ppo_value_forward.4} parent=0 // pred_region
    _
  $region5: #{ppo_value_forward.4} parent=0 // pred_fallthru
    _
  // Predicated region
  $region6: #{ppo_value_forward.4} parent=0 // pred_check
    _
  $region7: #{ppo_value_forward.4} parent=0 // pred_check_branch
    %11 = sbr.rel (0) target = $region9
  $region8: #{ppo_value_forward.4} parent=0 // pred_region
    _
  $region9: #{ppo_value_forward.4} parent=0 // pred_fallthru
    _
  // Predicated region
  $region10: #{ppo_value_forward.4} parent=0 // pred_check
    _
  $region11: #{ppo_value_forward.4} parent=0 // pred_check_branch
    %13 = sbr.rel (0) target = $region13
  $region12: #{ppo_value_forward.4} parent=0 // pred_region
    _
  $region13: #{ppo_value_forward.4} parent=0 // pred_fallthru
    _
  %v15 = vld [vmem:[%s0] sm:$0xff]
  %v16 = vld [vmem:[%s0 + $0x8] sm:$0xf]
  %v17 = vld [vmem:[%s0 + $0xc] sm:$0xff]
  %v18 = vld [vmem:[%s0 + $0x14] sm:$0xf]
  %v19 = vld [vmem:[%s0 + $0x18] sm:$0xff]
  %v20 = vld [vmem:[%s0 + $0x20] sm:$0xf]
  %v21 = vld [vmem:[%s0 + $0x24] sm:$0xff]
  %v22 = vld [vmem:[%s0 + $0x2c] sm:$0xf]
  %v23 = vld [vmem:[%s0 + $0x30] sm:$0xff]
  %v24 = vld [vmem:[%s0 + $0x38] sm:$0xf]
  %v25 = vld [vmem:[%s0 + $0x3c] sm:$0xff]
  %v26 = vld [vmem:[%s0 + $0x44] sm:$0xf]
  %v27 = vld [vmem:[%s0 + $0x48] sm:$0xff]
  %v28 = vld [vmem:[%s0 + $0x50] sm:$0xf]
  %v29 = vld [vmem:[%s0 + $0x54] sm:$0xff]
  %v30 = vld [vmem:[%s0 + $0x5c] sm:$0xf]
  %v31 = vld [vmem:[%s0 + $0x60] sm:$0xff]
  %v32 = vld [vmem:[%s0 + $0x68] sm:$0xf]
  %v33 = vld [vmem:[%s0 + $0x6c] sm:$0xff]
  %v34 = vld [vmem:[%s0 + $0x74] sm:$0xf]
  %v35 = vld [vmem:[%s0 + $0x78] sm:$0xff]
  %v36 = vld [vmem:[%s0 + $0x80] sm:$0xf]
  %v37 = vld [vmem:[%s0 + $0x84] sm:$0xff]
  %v38 = vld [vmem:[%s0 + $0x8c] sm:$0xf]
  %v39 = vld [vmem:[%s0 + $0x90] sm:$0xff]
  %v40 = vld [vmem:[%s0 + $0x98] sm:$0xf]
  %v41 = vld [vmem:[%s0 + $0x9c] sm:$0xff]
  %v42 = vld [vmem:[%s0 + $0xa4] sm:$0xf]
  %v43 = vld [vmem:[%s0 + $0xa8] sm:$0xff]
  %v44 = vld [vmem:[%s0 + $0xb0] sm:$0xf]
  %v45 = vld [vmem:[%s0 + $0xb4] sm:$0xff]
  %v46 = vld [vmem:[%s0 + $0xbc] sm:$0xf]
  %v47 = vld [vmem:[%s1] sm:$0xf]
  %v48 = vld [vmem:[%s1 + $0x4] sm:$0xf]
  %v49 = vld [vmem:[%s1 + $0x8] sm:$0xf]
  %v50 = vld [vmem:[%s1 + $0xc] sm:$0xf]
  %v51 = vld [vmem:[%s1 + $0x10] sm:$0xf]
  %v52 = vld [vmem:[%s1 + $0x14] sm:$0xf]
  %v53 = vld [vmem:[%s1 + $0x18] sm:$0xf]
  %v54 = vld [vmem:[%s1 + $0x1c] sm:$0xf]
  %v55 = vld [vmem:[%s1 + $0x20] sm:$0xf]
  %v56 = vld [vmem:[%s1 + $0x24] sm:$0xf]
  %v57 = vld [vmem:[%s1 + $0x28] sm:$0xf]
  %v58 = vld [vmem:[%s1 + $0x2c] sm:$0xf]
  %v59 = vld [vmem:[%s1 + $0x30] sm:$0xf]
  %v60 = vld [vmem:[%s1 + $0x34] sm:$0xf]
  %v61 = vld [vmem:[%s1 + $0x38] sm:$0xf]
  %v62 = vld [vmem:[%s1 + $0x3c] sm:$0xf]
  %v63 = vld [vmem:[%s1 + $0x40] sm:$0xf]
  %v64 = vld [vmem:[%s1 + $0x44] sm:$0xf]
  %v65 = vld [vmem:[%s1 + $0x48] sm:$0xf]
  %v66 = vld [vmem:[%s1 + $0x4c] sm:$0xf]
  %v67 = vld [vmem:[%s1 + $0x50] sm:$0xf]
  %v68 = vld [vmem:[%s1 + $0x54] sm:$0xf]
  %v69 = vld [vmem:[%s1 + $0x58] sm:$0xf]
  %v70 = vld [vmem:[%s1 + $0x5c] sm:$0xf]
  %v71 = vld [vmem:[%s1 + $0x60] sm:$0xf]
  %v72 = vld [vmem:[%s1 + $0x64] sm:$0xf]
  %v73 = vld [vmem:[%s1 + $0x68] sm:$0xf]
  %v74 = vld [vmem:[%s1 + $0x6c] sm:$0xf]
  %v75 = vld [vmem:[%s1 + $0x70] sm:$0xf]
  %v76 = vld [vmem:[%s1 + $0x74] sm:$0xf]
  %v77 = vld [vmem:[%s1 + $0x78] sm:$0xf]
  %v78 = vld [vmem:[%s1 + $0x7c] sm:$0xf]
  %v79 = vld [vmem:[%s1 + $0x80] sm:$0xf]
  %v80 = vld [vmem:[%s1 + $0x84] sm:$0xf]
  %v81 = vld [vmem:[%s1 + $0x88] sm:$0xf]
  %v82 = vld [vmem:[%s1 + $0x8c] sm:$0xf]
  %v83 = vld [vmem:[%s1 + $0x90] sm:$0xf]
  %v84 = vld [vmem:[%s1 + $0x94] sm:$0xf]
  %v85 = vld [vmem:[%s1 + $0x98] sm:$0xf]
  %v86 = vld [vmem:[%s1 + $0x9c] sm:$0xf]
  %v87 = vld [vmem:[%s1 + $0xa0] sm:$0xf]
  %v88 = vld [vmem:[%s1 + $0xa4] sm:$0xf]
  %v89 = vld [vmem:[%s1 + $0xa8] sm:$0xf]
  %v90 = vld [vmem:[%s1 + $0xac] sm:$0xf]
  %v91 = vld [vmem:[%s1 + $0xb0] sm:$0xf]
  %v92 = vld [vmem:[%s1 + $0xb4] sm:$0xf]
  %v93 = vld [vmem:[%s1 + $0xb8] sm:$0xf]
  %v94 = vld [vmem:[%s1 + $0xbc] sm:$0xf]
  %v95 = vld [vmem:[%s2] sm:$0x1]
  %v97 = vlaneseq
  %v98 = vshrl.u32 %v97, 7
  %v99 = vsub.s32 0, %v98
  %v100 = vrot.slane %v95, %v99
  %v134 = vunpack.c.l.b16 %v15
  %v135 = vunpack.c.h.b16 %v15
  %v136 = vunpack.c.l.b16 %v16
  %v137 = vunpack.c.l.b16 %v17
  %v138 = vunpack.c.h.b16 %v17
  %v139 = vunpack.c.l.b16 %v18
  %v140 = vunpack.c.l.b16 %v19
  %v141 = vunpack.c.h.b16 %v19
  %v142 = vunpack.c.l.b16 %v20
  %v143 = vunpack.c.l.b16 %v21
  %v144 = vunpack.c.h.b16 %v21
  %v145 = vunpack.c.l.b16 %v22
  %v146 = vunpack.c.l.b16 %v23
  %v147 = vunpack.c.h.b16 %v23
  %v148 = vunpack.c.l.b16 %v24
  %v149 = vunpack.c.l.b16 %v25
  %v150 = vunpack.c.h.b16 %v25
  %v151 = vunpack.c.l.b16 %v26
  %v152 = vunpack.c.l.b16 %v27
  %v153 = vunpack.c.h.b16 %v27
  %v154 = vunpack.c.l.b16 %v28
  %v155 = vunpack.c.l.b16 %v29
  %v156 = vunpack.c.h.b16 %v29
  %v157 = vunpack.c.l.b16 %v30
  %v158 = vunpack.c.l.b16 %v31
  %v159 = vunpack.c.h.b16 %v31
  %v160 = vunpack.c.l.b16 %v32
  %v161 = vunpack.c.l.b16 %v33
  %v162 = vunpack.c.h.b16 %v33
  %v163 = vunpack.c.l.b16 %v34
  %v164 = vunpack.c.l.b16 %v35
  %v165 = vunpack.c.h.b16 %v35
  %v166 = vunpack.c.l.b16 %v36
  %v167 = vunpack.c.l.b16 %v37
  %v168 = vunpack.c.h.b16 %v37
  %v169 = vunpack.c.l.b16 %v38
  %v170 = vunpack.c.l.b16 %v39
  %v171 = vunpack.c.h.b16 %v39
  %v172 = vunpack.c.l.b16 %v40
  %v173 = vunpack.c.l.b16 %v41
  %v174 = vunpack.c.h.b16 %v41
  %v175 = vunpack.c.l.b16 %v42
  %v176 = vunpack.c.l.b16 %v43
  %v177 = vunpack.c.h.b16 %v43
  %v178 = vunpack.c.l.b16 %v44
  %v179 = vunpack.c.l.b16 %v45
  %v180 = vunpack.c.h.b16 %v45
  %v181 = vunpack.c.l.b16 %v46
  %v182 = vpack.c.b16 %v137, %v134
  %v183 = vpack.c.b16 %v138, %v135
  %v184 = vpack.c.b16 %v139, %v136
  %v185 = vpack.c.b16 %v143, %v140
  %v186 = vpack.c.b16 %v144, %v141
  %v187 = vpack.c.b16 %v145, %v142
  %v188 = vpack.c.b16 %v149, %v146
  %v189 = vpack.c.b16 %v150, %v147
  %v190 = vpack.c.b16 %v151, %v148
  %v191 = vpack.c.b16 %v155, %v152
  %v192 = vpack.c.b16 %v156, %v153
  %v193 = vpack.c.b16 %v157, %v154
  %v194 = vpack.c.b16 %v161, %v158
  %v195 = vpack.c.b16 %v162, %v159
  %v196 = vpack.c.b16 %v163, %v160
  %v197 = vpack.c.b16 %v167, %v164
  %v198 = vpack.c.b16 %v168, %v165
  %v199 = vpack.c.b16 %v169, %v166
  %v200 = vpack.c.b16 %v173, %v170
  %v201 = vpack.c.b16 %v174, %v171
  %v202 = vpack.c.b16 %v175, %v172
  %v203 = vpack.c.b16 %v179, %v176
  %v204 = vpack.c.b16 %v180, %v177
  %v205 = vpack.c.b16 %v181, %v178
  %v278 = vunpack.c.l.b16 %v47
  %v279 = vunpack.c.l.b16 %v48
  %v280 = vunpack.c.l.b16 %v49
  %v281 = vunpack.c.l.b16 %v50
  %v282 = vunpack.c.l.b16 %v51
  %v283 = vunpack.c.l.b16 %v52
  %v284 = vunpack.c.l.b16 %v53
  %v285 = vunpack.c.l.b16 %v54
  %v286 = vunpack.c.l.b16 %v55
  %v287 = vunpack.c.l.b16 %v56
  %v288 = vunpack.c.l.b16 %v57
  %v289 = vunpack.c.l.b16 %v58
  %v290 = vunpack.c.l.b16 %v59
  %v291 = vunpack.c.l.b16 %v60
  %v292 = vunpack.c.l.b16 %v61
  %v293 = vunpack.c.l.b16 %v62
  %v294 = vunpack.c.l.b16 %v63
  %v295 = vunpack.c.l.b16 %v64
  %v296 = vunpack.c.l.b16 %v65
  %v297 = vunpack.c.l.b16 %v66
  %v298 = vunpack.c.l.b16 %v67
  %v299 = vunpack.c.l.b16 %v68
  %v300 = vunpack.c.l.b16 %v69
  %v301 = vunpack.c.l.b16 %v70
  %v302 = vunpack.c.l.b16 %v71
  %v303 = vunpack.c.l.b16 %v72
  %v304 = vunpack.c.l.b16 %v73
  %v305 = vunpack.c.l.b16 %v74
  %v306 = vunpack.c.l.b16 %v75
  %v307 = vunpack.c.l.b16 %v76
  %v308 = vunpack.c.l.b16 %v77
  %v309 = vunpack.c.l.b16 %v78
  %v310 = vunpack.c.l.b16 %v79
  %v311 = vunpack.c.l.b16 %v80
  %v312 = vunpack.c.l.b16 %v81
  %v313 = vunpack.c.l.b16 %v82
  %v314 = vunpack.c.l.b16 %v83
  %v315 = vunpack.c.l.b16 %v84
  %v316 = vunpack.c.l.b16 %v85
  %v317 = vunpack.c.l.b16 %v86
  %v318 = vunpack.c.l.b16 %v87
  %v319 = vunpack.c.l.b16 %v88
  %v320 = vunpack.c.l.b16 %v89
  %v321 = vunpack.c.l.b16 %v90
  %v322 = vunpack.c.l.b16 %v91
  %v323 = vunpack.c.l.b16 %v92
  %v324 = vunpack.c.l.b16 %v93
  %v325 = vunpack.c.l.b16 %v94
  %v326 = vpack.c.b16 %v279, %v278
  %v327 = vpack.c.b16 %v281, %v280
  %v328 = vpack.c.b16 %v283, %v282
  %v329 = vpack.c.b16 %v285, %v284
  %v330 = vpack.c.b16 %v287, %v286
  %v331 = vpack.c.b16 %v289, %v288
  %v332 = vpack.c.b16 %v291, %v290
  %v333 = vpack.c.b16 %v293, %v292
  %v334 = vpack.c.b16 %v295, %v294
  %v335 = vpack.c.b16 %v297, %v296
  %v336 = vpack.c.b16 %v299, %v298
  %v337 = vpack.c.b16 %v301, %v300
  %v338 = vpack.c.b16 %v303, %v302
  %v339 = vpack.c.b16 %v305, %v304
  %v340 = vpack.c.b16 %v307, %v306
  %v341 = vpack.c.b16 %v309, %v308
  %v342 = vpack.c.b16 %v311, %v310
  %v343 = vpack.c.b16 %v313, %v312
  %v344 = vpack.c.b16 %v315, %v314
  %v345 = vpack.c.b16 %v317, %v316
  %v346 = vpack.c.b16 %v319, %v318
  %v347 = vpack.c.b16 %v321, %v320
  %v348 = vpack.c.b16 %v323, %v322
  %v349 = vpack.c.b16 %v325, %v324
  %374 = vmatprep.subr.bf16.mxu0 0
  %375 = vmatpush1.bf16.msra.mxu0 %v333
  %376 = vmatprep.subr.bf16.mxu0 0
  %377 = vmatpush1.bf16.msra.mxu0 %v332
  %378 = vmatprep.subr.bf16.mxu0 0
  %379 = vmatpush1.bf16.msra.mxu0 %v331
  %380 = vmatprep.subr.bf16.mxu0 0
  %381 = vmatpush1.bf16.msra.mxu0 %v330
  %382 = vmatprep.subr.bf16.mxu0 0
  %383 = vmatpush1.bf16.msra.mxu0 %v329
  %384 = vmatprep.subr.bf16.mxu0 0
  %385 = vmatpush1.bf16.msra.mxu0 %v328
  %386 = vmatprep.subr.bf16.mxu0 0
  %387 = vmatpush1.bf16.msra.mxu0 %v327
  %388 = vmatprep.subr.bf16.mxu0 0
  %389 = vmatpush1.bf16.msra.mxu0 %v326
  %390 = vmatprep.subr.bf16.mxu0 0
  %391 = vmatpush2.bf16.msra.mxu0 %v341
  %392 = vmatprep.subr.bf16.mxu0 0
  %393 = vmatpush2.bf16.msra.mxu0 %v340
  %394 = vmatprep.subr.bf16.mxu0 0
  %395 = vmatpush2.bf16.msra.mxu0 %v339
  %396 = vmatprep.subr.bf16.mxu0 0
  %397 = vmatpush2.bf16.msra.mxu0 %v338
  %398 = vmatprep.subr.bf16.mxu0 0
  %399 = vmatpush2.bf16.msra.mxu0 %v337
  %400 = vmatprep.subr.bf16.mxu0 0
  %401 = vmatpush2.bf16.msra.mxu0 %v336
  %402 = vmatprep.subr.bf16.mxu0 0
  %403 = vmatpush2.bf16.msra.mxu0 %v335
  %404 = vmatprep.subr.bf16.mxu0 0
  %405 = vmatpush2.bf16.msra.mxu0 %v334
  %406 = vmatprep.mubr.bf16.mxu0 %v183
  %407 = vmatmul.mubr.bf16.gmra.mxu0 %v182
  %v408 = vpop.f32.mrf.mxu0
  %v409 = vadd.f32 %v100, %v408
  %v410 = vpop.f32.mrf.mxu0
  %v411 = vpop.f32.mrf.mxu0
  %v412 = vadd.f32 %v100, %v411
  %v413 = vpop.f32.mrf.mxu0
  %414 = vmatprep.mubr.bf16.mxu0 %v186
  %415 = vmatmul.mubr.bf16.gmra.mxu0 %v185
  %v416 = vpop.f32.mrf.mxu0
  %v417 = vadd.f32 %v100, %v416
  %v418 = vpop.f32.mrf.mxu0
  %v419 = vpop.f32.mrf.mxu0
  %v420 = vadd.f32 %v100, %v419
  %v421 = vpop.f32.mrf.mxu0
  %422 = vmatprep.mubr.bf16.mxu0 %v189
  %423 = vmatmul.mubr.bf16.gmra.mxu0 %v188
  %v424 = vpop.f32.mrf.mxu0
  %v425 = vadd.f32 %v100, %v424
  %v426 = vpop.f32.mrf.mxu0
  %v427 = vpop.f32.mrf.mxu0
  %v428 = vadd.f32 %v100, %v427
  %v429 = vpop.f32.mrf.mxu0
  %430 = vmatprep.mubr.bf16.mxu0 %v192
  %431 = vmatmul.mubr.bf16.gmra.mxu0 %v191
  %v432 = vpop.f32.mrf.mxu0
  %v433 = vadd.f32 %v100, %v432
  %v434 = vpop.f32.mrf.mxu0
  %v435 = vpop.f32.mrf.mxu0
  %v436 = vadd.f32 %v100, %v435
  %v437 = vpop.f32.mrf.mxu0
  %438 = vmatprep.mubr.bf16.mxu0 %v195
  %439 = vmatmul.mubr.bf16.gmra.mxu0 %v194
  %v440 = vpop.f32.mrf.mxu0
  %v441 = vadd.f32 %v100, %v440
  %v442 = vpop.f32.mrf.mxu0
  %v443 = vpop.f32.mrf.mxu0
  %v444 = vadd.f32 %v100, %v443
  %v445 = vpop.f32.mrf.mxu0
  %446 = vmatprep.mubr.bf16.mxu0 %v198
  %447 = vmatmul.mubr.bf16.gmra.mxu0 %v197
  %v448 = vpop.f32.mrf.mxu0
  %v449 = vadd.f32 %v100, %v448
  %v450 = vpop.f32.mrf.mxu0
  %v451 = vpop.f32.mrf.mxu0
  %v452 = vadd.f32 %v100, %v451
  %v453 = vpop.f32.mrf.mxu0
  %454 = vmatprep.mubr.bf16.mxu0 %v201
  %455 = vmatmul.mubr.bf16.gmra.mxu0 %v200
  %v456 = vpop.f32.mrf.mxu0
  %v457 = vadd.f32 %v100, %v456
  %v458 = vpop.f32.mrf.mxu0
  %v459 = vpop.f32.mrf.mxu0
  %v460 = vadd.f32 %v100, %v459
  %v461 = vpop.f32.mrf.mxu0
  %462 = vmatprep.mubr.bf16.mxu0 %v204
  %463 = vmatmul.mubr.bf16.gmra.mxu0 %v203
  %v464 = vpop.f32.mrf.mxu0
  %v465 = vadd.f32 %v100, %v464
  %v466 = vpop.f32.mrf.mxu0
  %v467 = vpop.f32.mrf.mxu0
  %v468 = vadd.f32 %v100, %v467
  %v469 = vpop.f32.mrf.mxu0
  %470 = vdwg.mxu0
  %471 = vmatprep.subr.bf16.mxu0 0
  %472 = vmatpush1.bf16.msra.mxu0 %v349
  %473 = vmatprep.subr.bf16.mxu0 0
  %474 = vmatpush1.bf16.msra.mxu0 %v348
  %475 = vmatprep.subr.bf16.mxu0 0
  %476 = vmatpush1.bf16.msra.mxu0 %v347
  %477 = vmatprep.subr.bf16.mxu0 0
  %478 = vmatpush1.bf16.msra.mxu0 %v346
  %479 = vmatprep.subr.bf16.mxu0 0
  %480 = vmatpush1.bf16.msra.mxu0 %v345
  %481 = vmatprep.subr.bf16.mxu0 0
  %482 = vmatpush1.bf16.msra.mxu0 %v344
  %483 = vmatprep.subr.bf16.mxu0 0
  %484 = vmatpush1.bf16.msra.mxu0 %v343
  %485 = vmatprep.subr.bf16.mxu0 0
  %486 = vmatpush1.bf16.msra.mxu0 %v342
  %487 = vmatprep.subr.bf16.mxu0 0
  %488 = vmatpush2.bf16.msra.mxu0 0
  %489 = vmatprep.subr.bf16.mxu0 0
  %490 = vmatpush2.bf16.msra.mxu0 0
  %491 = vmatprep.subr.bf16.mxu0 0
  %492 = vmatpush2.bf16.msra.mxu0 0
  %493 = vmatprep.subr.bf16.mxu0 0
  %494 = vmatpush2.bf16.msra.mxu0 0
  %495 = vmatprep.subr.bf16.mxu0 0
  %496 = vmatpush2.bf16.msra.mxu0 0
  %497 = vmatprep.subr.bf16.mxu0 0
  %498 = vmatpush2.bf16.msra.mxu0 0
  %499 = vmatprep.subr.bf16.mxu0 0
  %500 = vmatpush2.bf16.msra.mxu0 0
  %501 = vmatprep.subr.bf16.mxu0 0
  %502 = vmatpush2.bf16.msra.mxu0 0
  %503 = vmatprep.mubr.bf16.mxu0 0
  %504 = vmatmul.mubr.bf16.gmra.mxu0 %v184
  %v505 = vpop.f32.mrf.mxu0
  %v506 = vadd.f32 %v409, %v505
  %v507 = vpop.f32.mrf.mxu0
  %v508 = vpop.f32.mrf.mxu0
  %v509 = vadd.f32 %v412, %v508
  %v510 = vpop.f32.mrf.mxu0
  %511 = vmatprep.mubr.bf16.mxu0 0
  %512 = vmatmul.mubr.bf16.gmra.mxu0 %v187
  %v513 = vpop.f32.mrf.mxu0
  %v514 = vadd.f32 %v417, %v513
  %v515 = vpop.f32.mrf.mxu0
  %v516 = vpop.f32.mrf.mxu0
  %v517 = vadd.f32 %v420, %v516
  %v518 = vpop.f32.mrf.mxu0
  %519 = vmatprep.mubr.bf16.mxu0 0
  %520 = vmatmul.mubr.bf16.gmra.mxu0 %v190
  %v521 = vpop.f32.mrf.mxu0
  %v522 = vadd.f32 %v425, %v521
  %v523 = vpop.f32.mrf.mxu0
  %v524 = vpop.f32.mrf.mxu0
  %v525 = vadd.f32 %v428, %v524
  %v526 = vpop.f32.mrf.mxu0
  %527 = vmatprep.mubr.bf16.mxu0 0
  %528 = vmatmul.mubr.bf16.gmra.mxu0 %v193
  %v529 = vpop.f32.mrf.mxu0
  %v530 = vadd.f32 %v433, %v529
  %v531 = vpop.f32.mrf.mxu0
  %v532 = vpop.f32.mrf.mxu0
  %v533 = vadd.f32 %v436, %v532
  %v534 = vpop.f32.mrf.mxu0
  %535 = vmatprep.mubr.bf16.mxu0 0
  %536 = vmatmul.mubr.bf16.gmra.mxu0 %v196
  %v537 = vpop.f32.mrf.mxu0
  %v538 = vadd.f32 %v441, %v537
  %v539 = vpop.f32.mrf.mxu0
  %v540 = vpop.f32.mrf.mxu0
  %v541 = vadd.f32 %v444, %v540
  %v542 = vpop.f32.mrf.mxu0
  %543 = vmatprep.mubr.bf16.mxu0 0
  %544 = vmatmul.mubr.bf16.gmra.mxu0 %v199
  %v545 = vpop.f32.mrf.mxu0
  %v546 = vadd.f32 %v449, %v545
  %v547 = vpop.f32.mrf.mxu0
  %v548 = vpop.f32.mrf.mxu0
  %v549 = vadd.f32 %v452, %v548
  %v550 = vpop.f32.mrf.mxu0
  %551 = vmatprep.mubr.bf16.mxu0 0
  %552 = vmatmul.mubr.bf16.gmra.mxu0 %v202
  %v553 = vpop.f32.mrf.mxu0
  %v554 = vadd.f32 %v457, %v553
  %v555 = vpop.f32.mrf.mxu0
  %v556 = vpop.f32.mrf.mxu0
  %v557 = vadd.f32 %v460, %v556
  %v558 = vpop.f32.mrf.mxu0
  %559 = vmatprep.mubr.bf16.mxu0 0
  %560 = vmatmul.mubr.bf16.gmra.mxu0 %v205
  %v561 = vpop.f32.mrf.mxu0
  %v562 = vadd.f32 %v465, %v561
  %v563 = vpop.f32.mrf.mxu0
  %v564 = vpop.f32.mrf.mxu0
  %v565 = vadd.f32 %v468, %v564
  %v566 = vpop.f32.mrf.mxu0
  %567 = vdwg.mxu0
  %v568 = vmax.f32 %v506, 0.0
  %v569 = vmax.f32 %v509, 0.0
  %v570 = vmax.f32 %v514, 0.0
  %v571 = vmax.f32 %v517, 0.0
  %v572 = vmax.f32 %v522, 0.0
  %v573 = vmax.f32 %v525, 0.0
  %v574 = vmax.f32 %v530, 0.0
  %v575 = vmax.f32 %v533, 0.0
  %v576 = vmax.f32 %v538, 0.0
  %v577 = vmax.f32 %v541, 0.0
  %v578 = vmax.f32 %v546, 0.0
  %v579 = vmax.f32 %v549, 0.0
  %v580 = vmax.f32 %v554, 0.0
  %v581 = vmax.f32 %v557, 0.0
  %v582 = vmax.f32 %v562, 0.0
  %v583 = vmax.f32 %v565, 0.0
  %v584 = vpack.c.bf16 %v569, %v568
  %v585 = vpack.c.bf16 %v571, %v570
  %v586 = vpack.c.bf16 %v573, %v572
  %v587 = vpack.c.bf16 %v575, %v574
  %v588 = vpack.c.bf16 %v577, %v576
  %v589 = vpack.c.bf16 %v579, %v578
  %v590 = vpack.c.bf16 %v581, %v580
  %v591 = vpack.c.bf16 %v583, %v582
  %v600 = vunpack.c.l.b16 %v584
  %v601 = vunpack.c.h.b16 %v584
  %v602 = vunpack.c.l.b16 %v585
  %v603 = vunpack.c.h.b16 %v585
  %v604 = vunpack.c.l.b16 %v586
  %v605 = vunpack.c.h.b16 %v586
  %v606 = vunpack.c.l.b16 %v587
  %v607 = vunpack.c.h.b16 %v587
  %v608 = vunpack.c.l.b16 %v588
  %v609 = vunpack.c.h.b16 %v588
  %v610 = vunpack.c.l.b16 %v589
  %v611 = vunpack.c.h.b16 %v589
  %v612 = vunpack.c.l.b16 %v590
  %v613 = vunpack.c.h.b16 %v590
  %v614 = vunpack.c.l.b16 %v591
  %v615 = vunpack.c.h.b16 %v591
  %v616 = vpack.c.b16 %v600, %v600
  %v617 = vpack.c.b16 %v601, %v601
  %v618 = vpack.c.b16 %v602, %v602
  %v619 = vpack.c.b16 %v603, %v603
  %v620 = vpack.c.b16 %v604, %v604
  %v621 = vpack.c.b16 %v605, %v605
  %v622 = vpack.c.b16 %v606, %v606
  %v623 = vpack.c.b16 %v607, %v607
  %v624 = vpack.c.b16 %v608, %v608
  %v625 = vpack.c.b16 %v609, %v609
  %v626 = vpack.c.b16 %v610, %v610
  %v627 = vpack.c.b16 %v611, %v611
  %v628 = vpack.c.b16 %v612, %v612
  %v629 = vpack.c.b16 %v613, %v613
  %v630 = vpack.c.b16 %v614, %v614
  %v631 = vpack.c.b16 %v615, %v615
  %vm648 = vcmask 257024
  %649 = vst.msk [vmem:[%s3] sm:$0xf] %vm648, %v616
  %650 = vst.msk [vmem:[%s3 + $0x4] sm:$0xf] %vm648, %v617
  %651 = vst.msk [vmem:[%s3 + $0x8] sm:$0xf] %vm648, %v618
  %652 = vst.msk [vmem:[%s3 + $0xc] sm:$0xf] %vm648, %v619
  %653 = vst.msk [vmem:[%s3 + $0x10] sm:$0xf] %vm648, %v620
  %654 = vst.msk [vmem:[%s3 + $0x14] sm:$0xf] %vm648, %v621
  %655 = vst.msk [vmem:[%s3 + $0x18] sm:$0xf] %vm648, %v622
  %656 = vst.msk [vmem:[%s3 + $0x1c] sm:$0xf] %vm648, %v623
  %657 = vst.msk [vmem:[%s3 + $0x20] sm:$0xf] %vm648, %v624
  %658 = vst.msk [vmem:[%s3 + $0x24] sm:$0xf] %vm648, %v625
  %659 = vst.msk [vmem:[%s3 + $0x28] sm:$0xf] %vm648, %v626
  %660 = vst.msk [vmem:[%s3 + $0x2c] sm:$0xf] %vm648, %v627
  %661 = vst.msk [vmem:[%s3 + $0x30] sm:$0xf] %vm648, %v628
  %662 = vst.msk [vmem:[%s3 + $0x34] sm:$0xf] %vm648, %v629
  %663 = vst.msk [vmem:[%s3 + $0x38] sm:$0xf] %vm648, %v630
  %664 = vst.msk [vmem:[%s3 + $0x3c] sm:$0xf] %vm648, %v631
  // Predicated region
  $region14: #{ppo_value_forward.4} parent=0 // pred_check
    _
  $region15: #{ppo_value_forward.4} parent=0 // pred_check_branch
    %666 = sbr.rel (0) target = $region17
  $region16: #{ppo_value_forward.4} parent=0 // pred_region
    _
  $region17: #{ppo_value_forward.4} parent=0 // pred_fallthru
    _
  // Predicated region
  $region18: #{ppo_value_forward.4} parent=0 // pred_check
    _
  $region19: #{ppo_value_forward.4} parent=0 // pred_check_branch
    %668 = sbr.rel (0) target = $region21
  $region20: #{ppo_value_forward.4} parent=0 // pred_region
    _
  $region21: #{ppo_value_forward.4} parent=0 // pred_fallthru
    _

// kernel: ppo_value_forward.5
$region0: #{ppo_value_forward.5}
  #allocation0 [shape = 'u32[]', space=smem, size = 0x4, offset = 0x4, fixed_abs, tag = 'smem constant byte address 0x4 - core index']
  #allocation1 [shape = 'u32[144,128]{1,0:T(1,128)}', space=vmem, size = 0x12000, scoped, tag = 'internal scratch']
  %s0 = inlined_call_operand.vmem [shape: bf16[32,512], index: 0, kind: input, shape index: {}]
  %s1 = inlined_call_operand.vmem [shape: bf16[512,64], index: 1, kind: input, shape index: {}]
  %s2 = inlined_call_operand.vmem [shape: f32[1,64], index: 2, kind: input, shape index: {}]
  %s3 = inlined_call_operand.vmem [shape: bf16[32,64], index: 3, kind: output, shape index: {}]
  %s4 = sld [smem:[#allocation0]]
  $region22: #{ppo_value_forward.5} parent=0
    _
  %s6 = ssub.s32 1, %s4
  %s7 = scalar_select 0, %s6, %s4
  // Predicated region
  $region2: #{ppo_value_forward.5} parent=0 // pred_check
    _
  $region3: #{ppo_value_forward.5} parent=0 // pred_check_branch
    %9 = sbr.rel (0) target = $region5
  $region4: #{ppo_value_forward.5} parent=0 // pred_region
    _
  $region5: #{ppo_value_forward.5} parent=0 // pred_fallthru
    _
  // Predicated region
  $region6: #{ppo_value_forward.5} parent=0 // pred_check
    _
  $region7: #{ppo_value_forward.5} parent=0 // pred_check_branch
    %11 = sbr.rel (0) target = $region9
  $region8: #{ppo_value_forward.5} parent=0 // pred_region
    _
  $region9: #{ppo_value_forward.5} parent=0 // pred_fallthru
    _
  // Predicated region
  $region10: #{ppo_value_forward.5} parent=0 // pred_check
    _
  $region11: #{ppo_value_forward.5} parent=0 // pred_check_branch
    %13 = sbr.rel (0) target = $region13
  $region12: #{ppo_value_forward.5} parent=0 // pred_region
    _
  $region13: #{ppo_value_forward.5} parent=0 // pred_fallthru
    _
  %v15 = vld [vmem:[%s0] sm:$0xff]
  %v16 = vld [vmem:[%s0 + $0x8] sm:$0xff]
  %v17 = vld [vmem:[%s0 + $0x10] sm:$0xff]
  %v18 = vld [vmem:[%s0 + $0x18] sm:$0xff]
  %v19 = vld [vmem:[%s0 + $0x20] sm:$0xff]
  %v20 = vld [vmem:[%s0 + $0x28] sm:$0xff]
  %v21 = vld [vmem:[%s0 + $0x30] sm:$0xff]
  %v22 = vld [vmem:[%s0 + $0x38] sm:$0xff]
  %v23 = vld [vmem:[%s1] sm:$0xf]
  %v24 = vld [vmem:[%s1 + $0x4] sm:$0xf]
  %v25 = vld [vmem:[%s1 + $0x8] sm:$0xf]
  %v26 = vld [vmem:[%s1 + $0xc] sm:$0xf]
  %v27 = vld [vmem:[%s1 + $0x10] sm:$0xf]
  %v28 = vld [vmem:[%s1 + $0x14] sm:$0xf]
  %v29 = vld [vmem:[%s1 + $0x18] sm:$0xf]
  %v30 = vld [vmem:[%s1 + $0x1c] sm:$0xf]
  %v31 = vld [vmem:[%s1 + $0x20] sm:$0xf]
  %v32 = vld [vmem:[%s1 + $0x24] sm:$0xf]
  %v33 = vld [vmem:[%s1 + $0x28] sm:$0xf]
  %v34 = vld [vmem:[%s1 + $0x2c] sm:$0xf]
  %v35 = vld [vmem:[%s1 + $0x30] sm:$0xf]
  %v36 = vld [vmem:[%s1 + $0x34] sm:$0xf]
  %v37 = vld [vmem:[%s1 + $0x38] sm:$0xf]
  %v38 = vld [vmem:[%s1 + $0x3c] sm:$0xf]
  %v39 = vld [vmem:[%s1 + $0x40] sm:$0xf]
  %v40 = vld [vmem:[%s1 + $0x44] sm:$0xf]
  %v41 = vld [vmem:[%s1 + $0x48] sm:$0xf]
  %v42 = vld [vmem:[%s1 + $0x4c] sm:$0xf]
  %v43 = vld [vmem:[%s1 + $0x50] sm:$0xf]
  %v44 = vld [vmem:[%s1 + $0x54] sm:$0xf]
  %v45 = vld [vmem:[%s1 + $0x58] sm:$0xf]
  %v46 = vld [vmem:[%s1 + $0x5c] sm:$0xf]
  %v47 = vld [vmem:[%s1 + $0x60] sm:$0xf]
  %v48 = vld [vmem:[%s1 + $0x64] sm:$0xf]
  %v49 = vld [vmem:[%s1 + $0x68] sm:$0xf]
  %v50 = vld [vmem:[%s1 + $0x6c] sm:$0xf]
  %v51 = vld [vmem:[%s1 + $0x70] sm:$0xf]
  %v52 = vld [vmem:[%s1 + $0x74] sm:$0xf]
  %v53 = vld [vmem:[%s1 + $0x78] sm:$0xf]
  %v54 = vld [vmem:[%s1 + $0x7c] sm:$0xf]
  %v55 = vld [vmem:[%s1 + $0x80] sm:$0xf]
  %v56 = vld [vmem:[%s1 + $0x84] sm:$0xf]
  %v57 = vld [vmem:[%s1 + $0x88] sm:$0xf]
  %v58 = vld [vmem:[%s1 + $0x8c] sm:$0xf]
  %v59 = vld [vmem:[%s1 + $0x90] sm:$0xf]
  %v60 = vld [vmem:[%s1 + $0x94] sm:$0xf]
  %v61 = vld [vmem:[%s1 + $0x98] sm:$0xf]
  %v62 = vld [vmem:[%s1 + $0x9c] sm:$0xf]
  %v63 = vld [vmem:[%s1 + $0xa0] sm:$0xf]
  %v64 = vld [vmem:[%s1 + $0xa4] sm:$0xf]
  %v65 = vld [vmem:[%s1 + $0xa8] sm:$0xf]
  %v66 = vld [vmem:[%s1 + $0xac] sm:$0xf]
  %v67 = vld [vmem:[%s1 + $0xb0] sm:$0xf]
  %v68 = vld [vmem:[%s1 + $0xb4] sm:$0xf]
  %v69 = vld [vmem:[%s1 + $0xb8] sm:$0xf]
  %v70 = vld [vmem:[%s1 + $0xbc] sm:$0xf]
  %v71 = vld [vmem:[%s1 + $0xc0] sm:$0xf]
  %v72 = vld [vmem:[%s1 + $0xc4] sm:$0xf]
  %v73 = vld [vmem:[%s1 + $0xc8] sm:$0xf]
  %v74 = vld [vmem:[%s1 + $0xcc] sm:$0xf]
  %v75 = vld [vmem:[%s1 + $0xd0] sm:$0xf]
  %v76 = vld [vmem:[%s1 + $0xd4] sm:$0xf]
  %v77 = vld [vmem:[%s1 + $0xd8] sm:$0xf]
  %v78 = vld [vmem:[%s1 + $0xdc] sm:$0xf]
  %v79 = vld [vmem:[%s1 + $0xe0] sm:$0xf]
  %v80 = vld [vmem:[%s1 + $0xe4] sm:$0xf]
  %v81 = vld [vmem:[%s1 + $0xe8] sm:$0xf]
  %v82 = vld [vmem:[%s1 + $0xec] sm:$0xf]
  %v83 = vld [vmem:[%s1 + $0xf0] sm:$0xf]
  %v84 = vld [vmem:[%s1 + $0xf4] sm:$0xf]
  %v85 = vld [vmem:[%s1 + $0xf8] sm:$0xf]
  %v86 = vld [vmem:[%s1 + $0xfc] sm:$0xf]
  %v87 = vld [vmem:[%s2] sm:$0x1]
  %v89 = vlaneseq
  %v90 = vshrl.u32 %v89, 7
  %v91 = vsub.s32 0, %v90
  %v92 = vrot.slane %v87, %v91
  %v102 = vunpack.c.l.b16 %v15
  %v103 = vunpack.c.h.b16 %v15
  %v104 = vunpack.c.l.b16 %v16
  %v105 = vunpack.c.h.b16 %v16
  %v106 = vunpack.c.l.b16 %v17
  %v107 = vunpack.c.h.b16 %v17
  %v108 = vunpack.c.l.b16 %v18
  %v109 = vunpack.c.h.b16 %v18
  %v110 = vunpack.c.l.b16 %v19
  %v111 = vunpack.c.h.b16 %v19
  %v112 = vunpack.c.l.b16 %v20
  %v113 = vunpack.c.h.b16 %v20
  %v114 = vunpack.c.l.b16 %v21
  %v115 = vunpack.c.h.b16 %v21
  %v116 = vunpack.c.l.b16 %v22
  %v117 = vunpack.c.h.b16 %v22
  %v118 = vpack.c.b16 %v106, %v102
  %v119 = vpack.c.b16 %v107, %v103
  %v120 = vpack.c.b16 %v108, %v104
  %v121 = vpack.c.b16 %v109, %v105
  %v122 = vpack.c.b16 %v114, %v110
  %v123 = vpack.c.b16 %v115, %v111
  %v124 = vpack.c.b16 %v116, %v112
  %v125 = vpack.c.b16 %v117, %v113
  %v198 = vunpack.c.l.b16 %v23
  %v199 = vunpack.c.l.b16 %v24
  %v200 = vunpack.c.l.b16 %v25
  %v201 = vunpack.c.l.b16 %v26
  %v202 = vunpack.c.l.b16 %v27
  %v203 = vunpack.c.l.b16 %v28
  %v204 = vunpack.c.l.b16 %v29
  %v205 = vunpack.c.l.b16 %v30
  %v206 = vunpack.c.l.b16 %v31
  %v207 = vunpack.c.l.b16 %v32
  %v208 = vunpack.c.l.b16 %v33
  %v209 = vunpack.c.l.b16 %v34
  %v210 = vunpack.c.l.b16 %v35
  %v211 = vunpack.c.l.b16 %v36
  %v212 = vunpack.c.l.b16 %v37
  %v213 = vunpack.c.l.b16 %v38
  %v214 = vunpack.c.l.b16 %v39
  %v215 = vunpack.c.l.b16 %v40
  %v216 = vunpack.c.l.b16 %v41
  %v217 = vunpack.c.l.b16 %v42
  %v218 = vunpack.c.l.b16 %v43
  %v219 = vunpack.c.l.b16 %v44
  %v220 = vunpack.c.l.b16 %v45
  %v221 = vunpack.c.l.b16 %v46
  %v222 = vunpack.c.l.b16 %v47
  %v223 = vunpack.c.l.b16 %v48
  %v224 = vunpack.c.l.b16 %v49
  %v225 = vunpack.c.l.b16 %v50
  %v226 = vunpack.c.l.b16 %v51
  %v227 = vunpack.c.l.b16 %v52
  %v228 = vunpack.c.l.b16 %v53
  %v229 = vunpack.c.l.b16 %v54
  %v230 = vunpack.c.l.b16 %v55
  %v231 = vunpack.c.l.b16 %v56
  %v232 = vunpack.c.l.b16 %v57
  %v233 = vunpack.c.l.b16 %v58
  %v234 = vunpack.c.l.b16 %v59
  %v235 = vunpack.c.l.b16 %v60
  %v236 = vunpack.c.l.b16 %v61
  %v237 = vunpack.c.l.b16 %v62
  %v238 = vunpack.c.l.b16 %v63
  %v239 = vunpack.c.l.b16 %v64
  %v240 = vunpack.c.l.b16 %v65
  %v241 = vunpack.c.l.b16 %v66
  %v242 = vunpack.c.l.b16 %v67
  %v243 = vunpack.c.l.b16 %v68
  %v244 = vunpack.c.l.b16 %v69
  %v245 = vunpack.c.l.b16 %v70
  %v246 = vunpack.c.l.b16 %v71
  %v247 = vunpack.c.l.b16 %v72
  %v248 = vunpack.c.l.b16 %v73
  %v249 = vunpack.c.l.b16 %v74
  %v250 = vunpack.c.l.b16 %v75
  %v251 = vunpack.c.l.b16 %v76
  %v252 = vunpack.c.l.b16 %v77
  %v253 = vunpack.c.l.b16 %v78
  %v254 = vunpack.c.l.b16 %v79
  %v255 = vunpack.c.l.b16 %v80
  %v256 = vunpack.c.l.b16 %v81
  %v257 = vunpack.c.l.b16 %v82
  %v258 = vunpack.c.l.b16 %v83
  %v259 = vunpack.c.l.b16 %v84
  %v260 = vunpack.c.l.b16 %v85
  %v261 = vunpack.c.l.b16 %v86
  %v262 = vpack.c.b16 %v199, %v198
  %v263 = vpack.c.b16 %v201, %v200
  %v264 = vpack.c.b16 %v203, %v202
  %v265 = vpack.c.b16 %v205, %v204
  %v266 = vpack.c.b16 %v207, %v206
  %v267 = vpack.c.b16 %v209, %v208
  %v268 = vpack.c.b16 %v211, %v210
  %v269 = vpack.c.b16 %v213, %v212
  %v270 = vpack.c.b16 %v215, %v214
  %v271 = vpack.c.b16 %v217, %v216
  %v272 = vpack.c.b16 %v219, %v218
  %v273 = vpack.c.b16 %v221, %v220
  %v274 = vpack.c.b16 %v223, %v222
  %v275 = vpack.c.b16 %v225, %v224
  %v276 = vpack.c.b16 %v227, %v226
  %v277 = vpack.c.b16 %v229, %v228
  %v278 = vpack.c.b16 %v231, %v230
  %v279 = vpack.c.b16 %v233, %v232
  %v280 = vpack.c.b16 %v235, %v234
  %v281 = vpack.c.b16 %v237, %v236
  %v282 = vpack.c.b16 %v239, %v238
  %v283 = vpack.c.b16 %v241, %v240
  %v284 = vpack.c.b16 %v243, %v242
  %v285 = vpack.c.b16 %v245, %v244
  %v286 = vpack.c.b16 %v247, %v246
  %v287 = vpack.c.b16 %v249, %v248
  %v288 = vpack.c.b16 %v251, %v250
  %v289 = vpack.c.b16 %v253, %v252
  %v290 = vpack.c.b16 %v255, %v254
  %v291 = vpack.c.b16 %v257, %v256
  %v292 = vpack.c.b16 %v259, %v258
  %v293 = vpack.c.b16 %v261, %v260
  %326 = vmatprep.subr.bf16.mxu0 0
  %327 = vmatpush1.bf16.msra.mxu0 %v269
  %328 = vmatprep.subr.bf16.mxu0 0
  %329 = vmatpush1.bf16.msra.mxu0 %v268
  %330 = vmatprep.subr.bf16.mxu0 0
  %331 = vmatpush1.bf16.msra.mxu0 %v267
  %332 = vmatprep.subr.bf16.mxu0 0
  %333 = vmatpush1.bf16.msra.mxu0 %v266
  %334 = vmatprep.subr.bf16.mxu0 0
  %335 = vmatpush1.bf16.msra.mxu0 %v265
  %336 = vmatprep.subr.bf16.mxu0 0
  %337 = vmatpush1.bf16.msra.mxu0 %v264
  %338 = vmatprep.subr.bf16.mxu0 0
  %339 = vmatpush1.bf16.msra.mxu0 %v263
  %340 = vmatprep.subr.bf16.mxu0 0
  %341 = vmatpush1.bf16.msra.mxu0 %v262
  %342 = vmatprep.subr.bf16.mxu0 0
  %343 = vmatpush2.bf16.msra.mxu0 %v277
  %344 = vmatprep.subr.bf16.mxu0 0
  %345 = vmatpush2.bf16.msra.mxu0 %v276
  %346 = vmatprep.subr.bf16.mxu0 0
  %347 = vmatpush2.bf16.msra.mxu0 %v275
  %348 = vmatprep.subr.bf16.mxu0 0
  %349 = vmatpush2.bf16.msra.mxu0 %v274
  %350 = vmatprep.subr.bf16.mxu0 0
  %351 = vmatpush2.bf16.msra.mxu0 %v273
  %352 = vmatprep.subr.bf16.mxu0 0
  %353 = vmatpush2.bf16.msra.mxu0 %v272
  %354 = vmatprep.subr.bf16.mxu0 0
  %355 = vmatpush2.bf16.msra.mxu0 %v271
  %356 = vmatprep.subr.bf16.mxu0 0
  %357 = vmatpush2.bf16.msra.mxu0 %v270
  %358 = vmatprep.mubr.bf16.mxu0 %v119
  %359 = vmatmul.mubr.bf16.gmra.mxu0 %v118
  %v360 = vpop.f32.mrf.mxu0
  %v361 = vadd.f32 %v92, %v360
  %v362 = vpop.f32.mrf.mxu0
  %v363 = vpop.f32.mrf.mxu0
  %v364 = vadd.f32 %v92, %v363
  %v365 = vpop.f32.mrf.mxu0
  %366 = vmatprep.mubr.bf16.mxu0 %v123
  %367 = vmatmul.mubr.bf16.gmra.mxu0 %v122
  %v368 = vpop.f32.mrf.mxu0
  %v369 = vadd.f32 %v92, %v368
  %v370 = vpop.f32.mrf.mxu0
  %v371 = vpop.f32.mrf.mxu0
  %v372 = vadd.f32 %v92, %v371
  %v373 = vpop.f32.mrf.mxu0
  %374 = vdwg.mxu0
  %375 = vmatprep.subr.bf16.mxu0 0
  %376 = vmatpush1.bf16.msra.mxu0 %v285
  %377 = vmatprep.subr.bf16.mxu0 0
  %378 = vmatpush1.bf16.msra.mxu0 %v284
  %379 = vmatprep.subr.bf16.mxu0 0
  %380 = vmatpush1.bf16.msra.mxu0 %v283
  %381 = vmatprep.subr.bf16.mxu0 0
  %382 = vmatpush1.bf16.msra.mxu0 %v282
  %383 = vmatprep.subr.bf16.mxu0 0
  %384 = vmatpush1.bf16.msra.mxu0 %v281
  %385 = vmatprep.subr.bf16.mxu0 0
  %386 = vmatpush1.bf16.msra.mxu0 %v280
  %387 = vmatprep.subr.bf16.mxu0 0
  %388 = vmatpush1.bf16.msra.mxu0 %v279
  %389 = vmatprep.subr.bf16.mxu0 0
  %390 = vmatpush1.bf16.msra.mxu0 %v278
  %391 = vmatprep.subr.bf16.mxu0 0
  %392 = vmatpush2.bf16.msra.mxu0 %v293
  %393 = vmatprep.subr.bf16.mxu0 0
  %394 = vmatpush2.bf16.msra.mxu0 %v292
  %395 = vmatprep.subr.bf16.mxu0 0
  %396 = vmatpush2.bf16.msra.mxu0 %v291
  %397 = vmatprep.subr.bf16.mxu0 0
  %398 = vmatpush2.bf16.msra.mxu0 %v290
  %399 = vmatprep.subr.bf16.mxu0 0
  %400 = vmatpush2.bf16.msra.mxu0 %v289
  %401 = vmatprep.subr.bf16.mxu0 0
  %402 = vmatpush2.bf16.msra.mxu0 %v288
  %403 = vmatprep.subr.bf16.mxu0 0
  %404 = vmatpush2.bf16.msra.mxu0 %v287
  %405 = vmatprep.subr.bf16.mxu0 0
  %406 = vmatpush2.bf16.msra.mxu0 %v286
  %407 = vmatprep.mubr.bf16.mxu0 %v121
  %408 = vmatmul.mubr.bf16.gmra.mxu0 %v120
  %v409 = vpop.f32.mrf.mxu0
  %v410 = vadd.f32 %v361, %v409
  %v411 = vpop.f32.mrf.mxu0
  %v412 = vpop.f32.mrf.mxu0
  %v413 = vadd.f32 %v364, %v412
  %v414 = vpop.f32.mrf.mxu0
  %415 = vmatprep.mubr.bf16.mxu0 %v125
  %416 = vmatmul.mubr.bf16.gmra.mxu0 %v124
  %v417 = vpop.f32.mrf.mxu0
  %v418 = vadd.f32 %v369, %v417
  %v419 = vpop.f32.mrf.mxu0
  %v420 = vpop.f32.mrf.mxu0
  %v421 = vadd.f32 %v372, %v420
  %v422 = vpop.f32.mrf.mxu0
  %423 = vdwg.mxu0
  %v424 = vmax.f32 %v410, 0.0
  %v425 = vmax.f32 %v413, 0.0
  %v426 = vmax.f32 %v418, 0.0
  %v427 = vmax.f32 %v421, 0.0
  %v428 = vpack.c.bf16 %v425, %v424
  %v429 = vpack.c.bf16 %v427, %v426
  %v432 = vunpack.c.l.b16 %v428
  %v433 = vunpack.c.h.b16 %v428
  %v434 = vunpack.c.l.b16 %v429
  %v435 = vunpack.c.h.b16 %v429
  %v436 = vpack.c.b16 %v432, %v432
  %v437 = vpack.c.b16 %v433, %v433
  %v438 = vpack.c.b16 %v434, %v434
  %v439 = vpack.c.b16 %v435, %v435
  %vm444 = vcmask 519168
  %445 = vst.msk [vmem:[%s3] sm:$0xf] %vm444, %v436
  %446 = vst.msk [vmem:[%s3 + $0x4] sm:$0xf] %vm444, %v437
  %447 = vst.msk [vmem:[%s3 + $0x8] sm:$0xf] %vm444, %v438
  %448 = vst.msk [vmem:[%s3 + $0xc] sm:$0xf] %vm444, %v439
  // Predicated region
  $region14: #{ppo_value_forward.5} parent=0 // pred_check
    _
  $region15: #{ppo_value_forward.5} parent=0 // pred_check_branch
    %450 = sbr.rel (0) target = $region17
  $region16: #{ppo_value_forward.5} parent=0 // pred_region
    _
  $region17: #{ppo_value_forward.5} parent=0 // pred_fallthru
    _
  // Predicated region
  $region18: #{ppo_value_forward.5} parent=0 // pred_check
    _
  $region19: #{ppo_value_forward.5} parent=0 // pred_check_branch
    %452 = sbr.rel (0) target = $region21
  $region20: #{ppo_value_forward.5} parent=0 // pred_region
    _
  $region21: #{ppo_value_forward.5} parent=0 // pred_fallthru
    _

// kernel: ppo_value_forward.6
$region0: #{ppo_value_forward.6}
  #allocation0 [shape = 'u32[]', space=smem, size = 0x4, offset = 0x4, fixed_abs, tag = 'smem constant byte address 0x4 - core index']
  #allocation1 [shape = 'u32[144,128]{1,0:T(1,128)}', space=vmem, size = 0x12000, scoped, tag = 'internal scratch']
  %s0 = inlined_call_operand.vmem [shape: bf16[2,6,6,64], index: 0, kind: input, shape index: {}]
  %s1 = inlined_call_operand.vmem [shape: bf16[9,64,64], index: 1, kind: input, shape index: {}]
  %s2 = inlined_call_operand.vmem [shape: f32[1,64], index: 2, kind: input, shape index: {}]
  %s3 = inlined_call_operand.vmem [shape: bf16[2,4,4,64], index: 3, kind: output, shape index: {}]
  %s4 = sld [smem:[#allocation0]]
  $region52: #{ppo_value_forward.6} parent=0
    _
  %s6 = ssub.s32 1, %s4
  %s7 = scalar_select 0, %s6, %s4
  loop: start=0, step=1, limit=4
  $region2: #{ppo_value_forward.6} parent=0 // loop_pre_header
    _
  $region3: #{ppo_value_forward.6} parent=0 // loop_header
    %s9 = sphi 0, %s13
    %p10 = scmp.ge.s32.totalorder %s9, 4
    %s19 = sphi 0, %s21
    %s22 = sphi 0, %s19
    %s23 = sphi 0, %s22
    %s39 = sphi 0, %s23
    %s43 = sphi 0, %s43
    %s45 = sphi 0, %s43
    %s46 = sphi 0, %s45
    %s60 = sphi 0, %s46
    %s64 = sphi 0, %s64
    %s66 = sphi 0, %s64
    %s67 = sphi 0, %s66
    %s81 = sphi 0, %s67
    %s87 = sphi 0, %s89
    %s90 = sphi 0, %s87
    %s91 = sphi 0, %s90
    %s107 = sphi 0, %s91
  $region4: #{ppo_value_forward.6} parent=0 // loop_header_branch
    %12 = sbr.rel (%p10) target = $region8
  $region5: #{ppo_value_forward.6} parent=0 // loop_body
    %s14 = ssub.s32 %s9, 1
    %s15 = ssub.s32 %s9, 2
    %s16 = sadd.s32 %s9, 1
    %s17 = ssub.s32 %s9, %s16
    %p18 = scmp.eq.s32.totalorder %s17, 0
    %s20 = sadd.s32 %s19, 1
    %s21 = scalar_select %p18, %s19, %s20
    %p24 = pneg %p18
    %p25 = scmp.eq.s32.totalorder %s9, 1
    %p26 = por %p24, %p25
    %p27 = scmp.ne.s32.totalorder %s19, %s22
    %p28 = scmp.eq.s32.totalorder %s9, 0
    %p29 = por %p27, %p28
    %p30 = scmp.ne.s32.totalorder %s19, %s22
    %p31 = scmp.eq.s32.totalorder %s14, 1
    %p32 = por %p30, %p31
    %p33 = scmp.ne.s32.totalorder %s22, %s23
    %p34 = scmp.eq.s32.totalorder %s14, 0
    %p35 = por %p33, %p34
    %p36 = scmp.ne.s32.totalorder %s22, %s23
    %p37 = scmp.eq.s32.totalorder %s15, 1
    %p38 = por %p36, %p37
    %p40 = scmp.ne.s32.totalorder %s23, %s39
    %p41 = scmp.eq.s32.totalorder %s15, 0
    %p42 = por %p40, %p41
    %s44 = sadd.s32 %s43, 1
    %p47 = scmp.eq.s32.totalorder %s9, 1
    %p48 = scmp.ne.s32.totalorder %s43, %s45
    %p49 = scmp.eq.s32.totalorder %s9, 0
    %p50 = por %p48, %p49
    %p51 = scmp.ne.s32.totalorder %s43, %s45
    %p52 = scmp.eq.s32.totalorder %s14, 1
    %p53 = por %p51, %p52
    %p54 = scmp.ne.s32.totalorder %s45, %s46
    %p55 = scmp.eq.s32.totalorder %s14, 0
    %p56 = por %p54, %p55
    %p57 = scmp.ne.s32.totalorder %s45, %s46
    %p58 = scmp.eq.s32.totalorder %s15, 1
    %p59 = por %p57, %p58
    %p61 = scmp.ne.s32.totalorder %s46, %s60
    %p62 = scmp.eq.s32.totalorder %s15, 0
    %p63 = por %p61, %p62
    %s65 = sadd.s32 %s64, 1
    %p68 = scmp.eq.s32.totalorder %s9, 1
    %p69 = scmp.ne.s32.totalorder %s64, %s66
    %p70 = scmp.eq.s32.totalorder %s9, 0
    %p71 = por %p69, %p70
    %p72 = scmp.ne.s32.totalorder %s64, %s66
    %p73 = scmp.eq.s32.totalorder %s14, 1
    %p74 = por %p72, %p73
    %p75 = scmp.ne.s32.totalorder %s66, %s67
    %p76 = scmp.eq.s32.totalorder %s14, 0
    %p77 = por %p75, %p76
    %p78 = scmp.ne.s32.totalorder %s66, %s67
    %p79 = scmp.eq.s32.totalorder %s15, 1
    %p80 = por %p78, %p79
    %p82 = scmp.ne.s32.totalorder %s67, %s81
    %p83 = scmp.eq.s32.totalorder %s15, 0
    %p84 = por %p82, %p83
    %s85 = ssub.s32 %s9, %s16
    %p86 = scmp.eq.s32.totalorder %s85, 0
    %s88 = sadd.s32 %s87, 1
    %s89 = scalar_select %p86, %s87, %s88
    %p92 = pneg %p86
    %p93 = scmp.eq.s32.totalorder %s9, 1
    %p94 = por %p92, %p93
    %p95 = scmp.ne.s32.totalorder %s87, %s90
    %p96 = scmp.eq.s32.totalorder %s9, 0
    %p97 = por %p95, %p96
    %p98 = scmp.ne.s32.totalorder %s87, %s90
    %p99 = scmp.eq.s32.totalorder %s14, 1
    %p100 = por %p98, %p99
    %p101 = scmp.ne.s32.totalorder %s90, %s91
    %p102 = scmp.eq.s32.totalorder %s14, 0
    %p103 = por %p101, %p102
    %p104 = scmp.ne.s32.totalorder %s90, %s91
    %p105 = scmp.eq.s32.totalorder %s15, 1
    %p106 = por %p104, %p105
    %p108 = scmp.ne.s32.totalorder %s91, %s107
    %p109 = scmp.eq.s32.totalorder %s15, 0
    %p110 = por %p108, %p109
    %p111 = scmp.le.s32.totalorder 1, %s9
    %p112 = scmp.lt.s32.totalorder %s9, 3
    %p113 = pnand %p111, %p112
    %p114 = pneg %p113
    // Predicated region
    $region9: #{ppo_value_forward.6} parent=5 // pred_check
      _
    $region10: #{ppo_value_forward.6} parent=5 // pred_check_branch
      %116 = sbr.rel (%p113) target = $region12
    $region11: #{ppo_value_forward.6} parent=5 // pred_region
      %s117 = ssub.s32 %s9, 1
      // Predicated region
      $region13: #{ppo_value_forward.6} parent=11 // pred_check
        %p118 = pneg %p56
      $region14: #{ppo_value_forward.6} parent=11 // pred_check_branch
        %120 = sbr.rel (%p118) target = $region16
      $region15: #{ppo_value_forward.6} parent=11 // pred_region
        _
      $region16: #{ppo_value_forward.6} parent=11 // pred_fallthru
        _
      // Predicated region
      $region17: #{ppo_value_forward.6} parent=11 // pred_check
        %p121 = pneg %p77
      $region18: #{ppo_value_forward.6} parent=11 // pred_check_branch
        %123 = sbr.rel (%p121) target = $region20
      $region19: #{ppo_value_forward.6} parent=11 // pred_region
        _
      $region20: #{ppo_value_forward.6} parent=11 // pred_fallthru
        _
    $region12: #{ppo_value_forward.6} parent=5 // pred_fallthru
      _
    %p124 = scmp.lt.s32.totalorder %s9, 2
    // Predicated region
    $region21: #{ppo_value_forward.6} parent=5 // pred_check
      %p125 = pneg %p124
    $region22: #{ppo_value_forward.6} parent=5 // pred_check_branch
      %127 = sbr.rel (%p125) target = $region24
    $region23: #{ppo_value_forward.6} parent=5 // pred_region
      // Predicated region
      $region25: #{ppo_value_forward.6} parent=23 // pred_check
        %p128 = pneg %p29
      $region26: #{ppo_value_forward.6} parent=23 // pred_check_branch
        %130 = sbr.rel (%p128) target = $region28
      $region27: #{ppo_value_forward.6} parent=23 // pred_region
        %p131 = scmp.lt.s32.totalorder %s9, 1
        %s132 = scalar_select %p131, %s9, 1
        %s133 = smul.addr %s132, 6
        %s134 = smul.addr %s133, 4
        %s135 = scalar_lea.vmem %s0, %s134
      $region28: #{ppo_value_forward.6} parent=23 // pred_fallthru
        _
    $region24: #{ppo_value_forward.6} parent=5 // pred_fallthru
      _
    %p136 = scmp.le.s32.totalorder 1, %s9
    %p137 = scmp.lt.s32.totalorder %s9, 3
    %p138 = pnand %p136, %p137
    %p139 = pneg %p138
    // Predicated region
    $region29: #{ppo_value_forward.6} parent=5 // pred_check
      _
    $region30: #{ppo_value_forward.6} parent=5 // pred_check_branch
      %141 = sbr.rel (%p138) target = $region32
    $region31: #{ppo_value_forward.6} parent=5 // pred_region
      %s142 = ssub.s32 %s9, 1
      %p143 = scmp.lt.s32.totalorder %s14, 1
      %s144 = scalar_select %p143, %s14, 1
      %s145 = smul.addr %s144, 6
      %s146 = smul.addr %s145, 4
      %s147 = scalar_lea.vmem %s0, %s146
      %p148 = pneg %p35
      %p149 = pneg %p32
      %p150 = pneg %p56
      %p151 = pneg %p53
      %p152 = pneg %p77
      %p153 = pneg %p74
      %p154 = pneg %p103
      %p155 = pneg %p100
      %p156 = scmp.lt.s32.totalorder %s14, 1
      %s157 = scalar_select %p156, %s14, 1
      %s158 = smul.addr %s157, 4
      %s159 = smul.addr %s158, 2
      %s160 = scalar_lea.vmem %s3, %s159
      %p161 = scmp.lt.s32.totalorder %s14, 1
      %s162 = scalar_select %p161, %s14, 1
      %s163 = smul.addr %s162, 6
      %s164 = smul.addr %s163, 4
      %s165 = scalar_lea.vmem %s0, %s164
      %p166 = scmp.lt.s32.totalorder %s14, 1
      %s167 = scalar_select %p166, %s14, 1
      %s168 = smul.addr %s167, 4
      %s169 = smul.addr %s168, 2
      %s170 = scalar_lea.vmem %s3, %s169
      %v172 = vld [vmem:[%s2] sm:$0x1]
      loop: start=0, step=1, limit=4
      $region33: #{ppo_value_forward.6} parent=31 // loop_pre_header
        _
      $region34: #{ppo_value_forward.6} parent=31 // loop_header
        %s174 = sphi 0, %s178
        %p175 = scmp.ge.s32.totalorder %s174, 4
      $region35: #{ppo_value_forward.6} parent=31 // loop_header_branch
        %177 = sbr.rel (%p175) target = $region39
      $region36: #{ppo_value_forward.6} parent=31 // loop_body
        %s179 = smul.addr %s174, 4
        %s180 = scalar_lea.vmem %s165, %s179
        %v181 = vld [vmem:[%s180] sm:$0x7]
        %v182 = vld [vmem:[%s1] sm:$0xf]
        %v183 = vld [vmem:[%s1 + $0x4] sm:$0xf]
        %v184 = vld [vmem:[%s1 + $0x8] sm:$0xf]
        %v185 = vld [vmem:[%s1 + $0xc] sm:$0xf]
        %v186 = vld [vmem:[%s1 + $0x10] sm:$0xf]
        %v187 = vld [vmem:[%s1 + $0x14] sm:$0xf]
        %v188 = vld [vmem:[%s1 + $0x18] sm:$0xf]
        %v189 = vld [vmem:[%s1 + $0x1c] sm:$0xf]
        %s190 = scalar_lea.vmem %s1, 32
        %v191 = vld [vmem:[%s190] sm:$0xf]
        %v192 = vld [vmem:[%s190 + $0x4] sm:$0xf]
        %v193 = vld [vmem:[%s190 + $0x8] sm:$0xf]
        %v194 = vld [vmem:[%s190 + $0xc] sm:$0xf]
        %v195 = vld [vmem:[%s190 + $0x10] sm:$0xf]
        %v196 = vld [vmem:[%s190 + $0x14] sm:$0xf]
        %v197 = vld [vmem:[%s190 + $0x18] sm:$0xf]
        %v198 = vld [vmem:[%s190 + $0x1c] sm:$0xf]
        %v200 = vunpack.c.l.b16 %v181
        %v201 = vpack.c.b16 %v200, %v200
        %v203 = vshrl.u32 %v201, 16
        %v205 = vshll.u32 %v201, 16
        %v207 = vrot.slane %v205, 1
        %v208 = vor.u32 %v203, %v207
        %v217 = vunpack.c.l.b16 %v191
        %v218 = vunpack.c.l.b16 %v192
        %v219 = vunpack.c.l.b16 %v193
        %v220 = vunpack.c.l.b16 %v194
        %v221 = vunpack.c.l.b16 %v195
        %v222 = vunpack.c.l.b16 %v196
        %v223 = vunpack.c.l.b16 %v197
        %v224 = vunpack.c.l.b16 %v198
        %v225 = vpack.c.b16 %v218, %v217
        %v226 = vpack.c.b16 %v220, %v219
        %v227 = vpack.c.b16 %v222, %v221
        %v228 = vpack.c.b16 %v224, %v223
        %vm233 = vcmask 523264
        %v235 = vsel %vm233, %v208, 0
        %237 = vmatprep.subr.bf16.mxu0 0
        %238 = vmatpush1.bf16.msra.mxu0 0
        %239 = vmatprep.subr.bf16.mxu0 0
        %240 = vmatpush1.bf16.msra.mxu0 0
        %241 = vmatprep.subr.bf16.mxu0 0
        %242 = vmatpush1.bf16.msra.mxu0 0
        %243 = vmatprep.subr.bf16.mxu0 0
        %244 = vmatpush1.bf16.msra.mxu0 0
        %245 = vmatprep.subr.bf16.mxu0 0
        %246 = vmatpush1.bf16.msra.mxu0 %v228
        %247 = vmatprep.subr.bf16.mxu0 0
        %248 = vmatpush1.bf16.msra.mxu0 %v227
        %249 = vmatprep.subr.bf16.mxu0 0
        %250 = vmatpush1.bf16.msra.mxu0 %v226
        %251 = vmatprep.subr.bf16.mxu0 0
        %252 = vmatpush1.bf16.msra.mxu0 %v225
        %253 = vmatprep.subr.bf16.mxu0 0
        %254 = vmatpush2.bf16.msra.mxu0 0
        %255 = vmatprep.subr.bf16.mxu0 0
        %256 = vmatpush2.bf16.msra.mxu0 0
        %257 = vmatprep.subr.bf16.mxu0 0
        %258 = vmatpush2.bf16.msra.mxu0 0
        %259 = vmatprep.subr.bf16.mxu0 0
        %260 = vmatpush2.bf16.msra.mxu0 0
        %261 = vmatprep.subr.bf16.mxu0 0
        %262 = vmatpush2.bf16.msra.mxu0 0
        %263 = vmatprep.subr.bf16.mxu0 0
        %264 = vmatpush2.bf16.msra.mxu0 0
        %265 = vmatprep.subr.bf16.mxu0 0
        %266 = vmatpush2.bf16.msra.mxu0 0
        %267 = vmatprep.subr.bf16.mxu0 0
        %268 = vmatpush2.bf16.msra.mxu0 0
        %269 = vmatprep.mubr.bf16.mxu0 0
        %270 = vmatmul.mubr.bf16.gmra.mxu0 %v235
        %v271 = vpop.f32.mrf.mxu0
        %v272 = vadd.f32 0.0, %v271
        %v273 = vpop.f32.mrf.mxu0
        %v274 = vpop.f32.mrf.mxu0
        %v275 = vpop.f32.mrf.mxu0
        %276 = vdwg.mxu0
        %v285 = vunpack.c.l.b16 %v182
        %v286 = vunpack.c.l.b16 %v183
        %v287 = vunpack.c.l.b16 %v184
        %v288 = vunpack.c.l.b16 %v185
        %v289 = vunpack.c.l.b16 %v186
        %v290 = vunpack.c.l.b16 %v187
        %v291 = vunpack.c.l.b16 %v188
        %v292 = vunpack.c.l.b16 %v189
        %v293 = vpack.c.b16 %v286, %v285
        %v294 = vpack.c.b16 %v288, %v287
        %v295 = vpack.c.b16 %v290, %v289
        %v296 = vpack.c.b16 %v292, %v291
        %v302 = vsel %vm233, %v181, 0
        %304 = vmatprep.subr.bf16.mxu0 0
        %305 = vmatpush1.bf16.msra.mxu0 0
        %306 = vmatprep.subr.bf16.mxu0 0
        %307 = vmatpush1.bf16.msra.mxu0 0
        %308 = vmatprep.subr.bf16.mxu0 0
        %309 = vmatpush1.bf16.msra.mxu0 0
        %310 = vmatprep.subr.bf16.mxu0 0
        %311 = vmatpush1.bf16.msra.mxu0 0
        %312 = vmatprep.subr.bf16.mxu0 0
        %313 = vmatpush1.bf16.msra.mxu0 %v296
        %314 = vmatprep.subr.bf16.mxu0 0
        %315 = vmatpush1.bf16.msra.mxu0 %v295
        %316 = vmatprep.subr.bf16.mxu0 0
        %317 = vmatpush1.bf16.msra.mxu0 %v294
        %318 = vmatprep.subr.bf16.mxu0 0
        %319 = vmatpush1.bf16.msra.mxu0 %v293
        %320 = vmatprep.subr.bf16.mxu0 0
        %321 = vmatpush2.bf16.msra.mxu0 0
        %322 = vmatprep.subr.bf16.mxu0 0
        %323 = vmatpush2.bf16.msra.mxu0 0
        %324 = vmatprep.subr.bf16.mxu0 0
        %325 = vmatpush2.bf16.msra.mxu0 0
        %326 = vmatprep.subr.bf16.mxu0 0
        %327 = vmatpush2.bf16.msra.mxu0 0
        %328 = vmatprep.subr.bf16.mxu0 0
        %329 = vmatpush2.bf16.msra.mxu0 0
        %330 = vmatprep.subr.bf16.mxu0 0
        %331 = vmatpush2.bf16.msra.mxu0 0
        %332 = vmatprep.subr.bf16.mxu0 0
        %333 = vmatpush2.bf16.msra.mxu0 0
        %334 = vmatprep.subr.bf16.mxu0 0
        %335 = vmatpush2.bf16.msra.mxu0 0
        %336 = vmatprep.mubr.bf16.mxu0 0
        %337 = vmatmul.mubr.bf16.gmra.mxu0 %v302
        %v338 = vpop.f32.mrf.mxu0
        %v339 = vadd.f32 %v272, %v338
        %v340 = vpop.f32.mrf.mxu0
        %v341 = vpop.f32.mrf.mxu0
        %v342 = vpop.f32.mrf.mxu0
        %343 = vdwg.mxu0
        %s344 = scalar_lea.vmem %s1, 64
        %v345 = vld [vmem:[%s344] sm:$0xf]
        %v346 = vld [vmem:[%s344 + $0x4] sm:$0xf]
        %v347 = vld [vmem:[%s344 + $0x8] sm:$0xf]
        %v348 = vld [vmem:[%s344 + $0xc] sm:$0xf]
        %v349 = vld [vmem:[%s344 + $0x10] sm:$0xf]
        %v350 = vld [vmem:[%s344 + $0x14] sm:$0xf]
        %v351 = vld [vmem:[%s344 + $0x18] sm:$0xf]
        %v352 = vld [vmem:[%s344 + $0x1c] sm:$0xf]
        %v353 = vrot.slane %v201, 1
        %v362 = vunpack.c.l.b16 %v345
        %v363 = vunpack.c.l.b16 %v346
        %v364 = vunpack.c.l.b16 %v347
        %v365 = vunpack.c.l.b16 %v348
        %v366 = vunpack.c.l.b16 %v349
        %v367 = vunpack.c.l.b16 %v350
        %v368 = vunpack.c.l.b16 %v351
        %v369 = vunpack.c.l.b16 %v352
        %v370 = vpack.c.b16 %v363, %v362
        %v371 = vpack.c.b16 %v365, %v364
        %v372 = vpack.c.b16 %v367, %v366
        %v373 = vpack.c.b16 %v369, %v368
        %v379 = vsel %vm233, %v353, 0
        %381 = vmatprep.subr.bf16.mxu0 0
        %382 = vmatpush1.bf16.msra.mxu0 0
        %383 = vmatprep.subr.bf16.mxu0 0
        %384 = vmatpush1.bf16.msra.mxu0 0
        %385 = vmatprep.subr.bf16.mxu0 0
        %386 = vmatpush1.bf16.msra.mxu0 0
        %387 = vmatprep.subr.bf16.mxu0 0
        %388 = vmatpush1.bf16.msra.mxu0 0
        %389 = vmatprep.subr.bf16.mxu0 0
        %390 = vmatpush1.bf16.msra.mxu0 %v373
        %391 = vmatprep.subr.bf16.mxu0 0
        %392 = vmatpush1.bf16.msra.mxu0 %v372
        %393 = vmatprep.subr.bf16.mxu0 0
        %394 = vmatpush1.bf16.msra.mxu0 %v371
        %395 = vmatprep.subr.bf16.mxu0 0
        %396 = vmatpush1.bf16.msra.mxu0 %v370
        %397 = vmatprep.subr.bf16.mxu0 0
        %398 = vmatpush2.bf16.msra.mxu0 0
        %399 = vmatprep.subr.bf16.mxu0 0
        %400 = vmatpush2.bf16.msra.mxu0 0
        %401 = vmatprep.subr.bf16.mxu0 0
        %402 = vmatpush2.bf16.msra.mxu0 0
        %403 = vmatprep.subr.bf16.mxu0 0
        %404 = vmatpush2.bf16.msra.mxu0 0
        %405 = vmatprep.subr.bf16.mxu0 0
        %406 = vmatpush2.bf16.msra.mxu0 0
        %407 = vmatprep.subr.bf16.mxu0 0
        %408 = vmatpush2.bf16.msra.mxu0 0
        %409 = vmatprep.subr.bf16.mxu0 0
        %410 = vmatpush2.bf16.msra.mxu0 0
        %411 = vmatprep.subr.bf16.mxu0 0
        %412 = vmatpush2.bf16.msra.mxu0 0
        %413 = vmatprep.mubr.bf16.mxu0 0
        %414 = vmatmul.mubr.bf16.gmra.mxu0 %v379
        %v415 = vpop.f32.mrf.mxu0
        %v416 = vadd.f32 0.0, %v415
        %v417 = vpop.f32.mrf.mxu0
        %v418 = vpop.f32.mrf.mxu0
        %v419 = vpop.f32.mrf.mxu0
        %420 = vdwg.mxu0
        %v421 = vadd.f32 %v339, %v416
        %s422 = sadd.s32 %s174, 1
        %s423 = smul.addr %s422, 4
        %s424 = scalar_lea.vmem %s165, %s423
        %v425 = vld [vmem:[%s424] sm:$0x7]
        %s426 = scalar_lea.vmem %s1, 96
        %v427 = vld [vmem:[%s426] sm:$0xf]
        %v428 = vld [vmem:[%s426 + $0x4] sm:$0xf]
        %v429 = vld [vmem:[%s426 + $0x8] sm:$0xf]
        %v430 = vld [vmem:[%s426 + $0xc] sm:$0xf]
        %v431 = vld [vmem:[%s426 + $0x10] sm:$0xf]
        %v432 = vld [vmem:[%s426 + $0x14] sm:$0xf]
        %v433 = vld [vmem:[%s426 + $0x18] sm:$0xf]
        %v434 = vld [vmem:[%s426 + $0x1c] sm:$0xf]
        %v443 = vunpack.c.l.b16 %v427
        %v444 = vunpack.c.l.b16 %v428
        %v445 = vunpack.c.l.b16 %v429
        %v446 = vunpack.c.l.b16 %v430
        %v447 = vunpack.c.l.b16 %v431
        %v448 = vunpack.c.l.b16 %v432
        %v449 = vunpack.c.l.b16 %v433
        %v450 = vunpack.c.l.b16 %v434
        %v451 = vpack.c.b16 %v444, %v443
        %v452 = vpack.c.b16 %v446, %v445
        %v453 = vpack.c.b16 %v448, %v447
        %v454 = vpack.c.b16 %v450, %v449
        %v460 = vsel %vm233, %v425, 0
        %462 = vmatprep.subr.bf16.mxu0 0
        %463 = vmatpush1.bf16.msra.mxu0 0
        %464 = vmatprep.subr.bf16.mxu0 0
        %465 = vmatpush1.bf16.msra.mxu0 0
        %466 = vmatprep.subr.bf16.mxu0 0
        %467 = vmatpush1.bf16.msra.mxu0 0
        %468 = vmatprep.subr.bf16.mxu0 0
        %469 = vmatpush1.bf16.msra.mxu0 0
        %470 = vmatprep.subr.bf16.mxu0 0
        %471 = vmatpush1.bf16.msra.mxu0 %v454
        %472 = vmatprep.subr.bf16.mxu0 0
        %473 = vmatpush1.bf16.msra.mxu0 %v453
        %474 = vmatprep.subr.bf16.mxu0 0
        %475 = vmatpush1.bf16.msra.mxu0 %v452
        %476 = vmatprep.subr.bf16.mxu0 0
        %477 = vmatpush1.bf16.msra.mxu0 %v451
        %478 = vmatprep.subr.bf16.mxu0 0
        %479 = vmatpush2.bf16.msra.mxu0 0
        %480 = vmatprep.subr.bf16.mxu0 0
        %481 = vmatpush2.bf16.msra.mxu0 0
        %482 = vmatprep.subr.bf16.mxu0 0
        %483 = vmatpush2.bf16.msra.mxu0 0
        %484 = vmatprep.subr.bf16.mxu0 0
        %485 = vmatpush2.bf16.msra.mxu0 0
        %486 = vmatprep.subr.bf16.mxu0 0
        %487 = vmatpush2.bf16.msra.mxu0 0
        %488 = vmatprep.subr.bf16.mxu0 0
        %489 = vmatpush2.bf16.msra.mxu0 0
        %490 = vmatprep.subr.bf16.mxu0 0
        %491 = vmatpush2.bf16.msra.mxu0 0
        %492 = vmatprep.subr.bf16.mxu0 0
        %493 = vmatpush2.bf16.msra.mxu0 0
        %494 = vmatprep.mubr.bf16.mxu0 0
        %495 = vmatmul.mubr.bf16.gmra.mxu0 %v460
        %v496 = vpop.f32.mrf.mxu0
        %v497 = vadd.f32 0.0, %v496
        %v498 = vpop.f32.mrf.mxu0
        %v499 = vpop.f32.mrf.mxu0
        %v500 = vpop.f32.mrf.mxu0
        %501 = vdwg.mxu0
        %v502 = vadd.f32 %v421, %v497
        %s503 = scalar_lea.vmem %s1, 128
        %v504 = vld [vmem:[%s503] sm:$0xf]
        %v505 = vld [vmem:[%s503 + $0x4] sm:$0xf]
        %v506 = vld [vmem:[%s503 + $0x8] sm:$0xf]
        %v507 = vld [vmem:[%s503 + $0xc] sm:$0xf]
        %v508 = vld [vmem:[%s503 + $0x10] sm:$0xf]
        %v509 = vld [vmem:[%s503 + $0x14] sm:$0xf]
        %v510 = vld [vmem:[%s503 + $0x18] sm:$0xf]
        %v511 = vld [vmem:[%s503 + $0x1c] sm:$0xf]
        %v513 = vunpack.c.l.b16 %v425
        %v514 = vpack.c.b16 %v513, %v513
        %v516 = vshrl.u32 %v514, 16
        %v518 = vshll.u32 %v514, 16
        %v520 = vrot.slane %v518, 1
        %v521 = vor.u32 %v516, %v520
        %v530 = vunpack.c.l.b16 %v504
        %v531 = vunpack.c.l.b16 %v505
        %v532 = vunpack.c.l.b16 %v506
        %v533 = vunpack.c.l.b16 %v507
        %v534 = vunpack.c.l.b16 %v508
        %v535 = vunpack.c.l.b16 %v509
        %v536 = vunpack.c.l.b16 %v510
        %v537 = vunpack.c.l.b16 %v511
        %v538 = vpack.c.b16 %v531, %v530
        %v539 = vpack.c.b16 %v533, %v532
        %v540 = vpack.c.b16 %v535, %v534
        %v541 = vpack.c.b16 %v537, %v536
        %v547 = vsel %vm233, %v521, 0
        %549 = vmatprep.subr.bf16.mxu0 0
        %550 = vmatpush1.bf16.msra.mxu0 0
        %551 = vmatprep.subr.bf16.mxu0 0
        %552 = vmatpush1.bf16.msra.mxu0 0
        %553 = vmatprep.subr.bf16.mxu0 0
        %554 = vmatpush1.bf16.msra.mxu0 0
        %555 = vmatprep.subr.bf16.mxu0 0
        %556 = vmatpush1.bf16.msra.mxu0 0
        %557 = vmatprep.subr.bf16.mxu0 0
        %558 = vmatpush1.bf16.msra.mxu0 %v541
        %559 = vmatprep.subr.bf16.mxu0 0
        %560 = vmatpush1.bf16.msra.mxu0 %v540
        %561 = vmatprep.subr.bf16.mxu0 0
        %562 = vmatpush1.bf16.msra.mxu0 %v539
        %563 = vmatprep.subr.bf16.mxu0 0
        %564 = vmatpush1.bf16.msra.mxu0 %v538
        %565 = vmatprep.subr.bf16.mxu0 0
        %566 = vmatpush2.bf16.msra.mxu0 0
        %567 = vmatprep.subr.bf16.mxu0 0
        %568 = vmatpush2.bf16.msra.mxu0 0
        %569 = vmatprep.subr.bf16.mxu0 0
        %570 = vmatpush2.bf16.msra.mxu0 0
        %571 = vmatprep.subr.bf16.mxu0 0
        %572 = vmatpush2.bf16.msra.mxu0 0
        %573 = vmatprep.subr.bf16.mxu0 0
        %574 = vmatpush2.bf16.msra.mxu0 0
        %575 = vmatprep.subr.bf16.mxu0 0
        %576 = vmatpush2.bf16.msra.mxu0 0
        %577 = vmatprep.subr.bf16.mxu0 0
        %578 = vmatpush2.bf16.msra.mxu0 0
        %579 = vmatprep.subr.bf16.mxu0 0
        %580 = vmatpush2.bf16.msra.mxu0 0
        %581 = vmatprep.mubr.bf16.mxu0 0
        %582 = vmatmul.mubr.bf16.gmra.mxu0 %v547
        %v583 = vpop.f32.mrf.mxu0
        %v584 = vadd.f32 0.0, %v583
        %v585 = vpop.f32.mrf.mxu0
        %v586 = vpop.f32.mrf.mxu0
        %v587 = vpop.f32.mrf.mxu0
        %588 = vdwg.mxu0
        %v589 = vadd.f32 %v502, %v584
        %s590 = scalar_lea.vmem %s1, 160
        %v591 = vld [vmem:[%s590] sm:$0xf]
        %v592 = vld [vmem:[%s590 + $0x4] sm:$0xf]
        %v593 = vld [vmem:[%s590 + $0x8] sm:$0xf]
        %v594 = vld [vmem:[%s590 + $0xc] sm:$0xf]
        %v595 = vld [vmem:[%s590 + $0x10] sm:$0xf]
        %v596 = vld [vmem:[%s590 + $0x14] sm:$0xf]
        %v597 = vld [vmem:[%s590 + $0x18] sm:$0xf]
        %v598 = vld [vmem:[%s590 + $0x1c] sm:$0xf]
        %v599 = vrot.slane %v514, 1
        %v608 = vunpack.c.l.b16 %v591
        %v609 = vunpack.c.l.b16 %v592
        %v610 = vunpack.c.l.b16 %v593
        %v611 = vunpack.c.l.b16 %v594
        %v612 = vunpack.c.l.b16 %v595
        %v613 = vunpack.c.l.b16 %v596
        %v614 = vunpack.c.l.b16 %v597
        %v615 = vunpack.c.l.b16 %v598
        %v616 = vpack.c.b16 %v609, %v608
        %v617 = vpack.c.b16 %v611, %v610
        %v618 = vpack.c.b16 %v613, %v612
        %v619 = vpack.c.b16 %v615, %v614
        %v625 = vsel %vm233, %v599, 0
        %627 = vmatprep.subr.bf16.mxu0 0
        %628 = vmatpush1.bf16.msra.mxu0 0
        %629 = vmatprep.subr.bf16.mxu0 0
        %630 = vmatpush1.bf16.msra.mxu0 0
        %631 = vmatprep.subr.bf16.mxu0 0
        %632 = vmatpush1.bf16.msra.mxu0 0
        %633 = vmatprep.subr.bf16.mxu0 0
        %634 = vmatpush1.bf16.msra.mxu0 0
        %635 = vmatprep.subr.bf16.mxu0 0
        %636 = vmatpush1.bf16.msra.mxu0 %v619
        %637 = vmatprep.subr.bf16.mxu0 0
        %638 = vmatpush1.bf16.msra.mxu0 %v618
        %639 = vmatprep.subr.bf16.mxu0 0
        %640 = vmatpush1.bf16.msra.mxu0 %v617
        %641 = vmatprep.subr.bf16.mxu0 0
        %642 = vmatpush1.bf16.msra.mxu0 %v616
        %643 = vmatprep.subr.bf16.mxu0 0
        %644 = vmatpush2.bf16.msra.mxu0 0
        %645 = vmatprep.subr.bf16.mxu0 0
        %646 = vmatpush2.bf16.msra.mxu0 0
        %647 = vmatprep.subr.bf16.mxu0 0
        %648 = vmatpush2.bf16.msra.mxu0 0
        %649 = vmatprep.subr.bf16.mxu0 0
        %650 = vmatpush2.bf16.msra.mxu0 0
        %651 = vmatprep.subr.bf16.mxu0 0
        %652 = vmatpush2.bf16.msra.mxu0 0
        %653 = vmatprep.subr.bf16.mxu0 0
        %654 = vmatpush2.bf16.msra.mxu0 0
        %655 = vmatprep.subr.bf16.mxu0 0
        %656 = vmatpush2.bf16.msra.mxu0 0
        %657 = vmatprep.subr.bf16.mxu0 0
        %658 = vmatpush2.bf16.msra.mxu0 0
        %659 = vmatprep.mubr.bf16.mxu0 0
        %660 = vmatmul.mubr.bf16.gmra.mxu0 %v625
        %v661 = vpop.f32.mrf.mxu0
        %v662 = vadd.f32 0.0, %v661
        %v663 = vpop.f32.mrf.mxu0
        %v664 = vpop.f32.mrf.mxu0
        %v665 = vpop.f32.mrf.mxu0
        %666 = vdwg.mxu0
        %v667 = vadd.f32 %v589, %v662
        %s668 = sadd.s32 %s174, 2
        %s669 = smul.addr %s668, 4
        %s670 = scalar_lea.vmem %s165, %s669
        %v671 = vld [vmem:[%s670] sm:$0x7]
        %s672 = scalar_lea.vmem %s1, 192
        %v673 = vld [vmem:[%s672] sm:$0xf]
        %v674 = vld [vmem:[%s672 + $0x4] sm:$0xf]
        %v675 = vld [vmem:[%s672 + $0x8] sm:$0xf]
        %v676 = vld [vmem:[%s672 + $0xc] sm:$0xf]
        %v677 = vld [vmem:[%s672 + $0x10] sm:$0xf]
        %v678 = vld [vmem:[%s672 + $0x14] sm:$0xf]
        %v679 = vld [vmem:[%s672 + $0x18] sm:$0xf]
        %v680 = vld [vmem:[%s672 + $0x1c] sm:$0xf]
        %v689 = vunpack.c.l.b16 %v673
        %v690 = vunpack.c.l.b16 %v674
        %v691 = vunpack.c.l.b16 %v675
        %v692 = vunpack.c.l.b16 %v676
        %v693 = vunpack.c.l.b16 %v677
        %v694 = vunpack.c.l.b16 %v678
        %v695 = vunpack.c.l.b16 %v679
        %v696 = vunpack.c.l.b16 %v680
        %v697 = vpack.c.b16 %v690, %v689
        %v698 = vpack.c.b16 %v692, %v691
        %v699 = vpack.c.b16 %v694, %v693
        %v700 = vpack.c.b16 %v696, %v695
        %v706 = vsel %vm233, %v671, 0
        %708 = vmatprep.subr.bf16.mxu0 0
        %709 = vmatpush1.bf16.msra.mxu0 0
        %710 = vmatprep.subr.bf16.mxu0 0
        %711 = vmatpush1.bf16.msra.mxu0 0
        %712 = vmatprep.subr.bf16.mxu0 0
        %713 = vmatpush1.bf16.msra.mxu0 0
        %714 = vmatprep.subr.bf16.mxu0 0
        %715 = vmatpush1.bf16.msra.mxu0 0
        %716 = vmatprep.subr.bf16.mxu0 0
        %717 = vmatpush1.bf16.msra.mxu0 %v700
        %718 = vmatprep.subr.bf16.mxu0 0
        %719 = vmatpush1.bf16.msra.mxu0 %v699
        %720 = vmatprep.subr.bf16.mxu0 0
        %721 = vmatpush1.bf16.msra.mxu0 %v698
        %722 = vmatprep.subr.bf16.mxu0 0
        %723 = vmatpush1.bf16.msra.mxu0 %v697
        %724 = vmatprep.subr.bf16.mxu0 0
        %725 = vmatpush2.bf16.msra.mxu0 0
        %726 = vmatprep.subr.bf16.mxu0 0
        %727 = vmatpush2.bf16.msra.mxu0 0
        %728 = vmatprep.subr.bf16.mxu0 0
        %729 = vmatpush2.bf16.msra.mxu0 0
        %730 = vmatprep.subr.bf16.mxu0 0
        %731 = vmatpush2.bf16.msra.mxu0 0
        %732 = vmatprep.subr.bf16.mxu0 0
        %733 = vmatpush2.bf16.msra.mxu0 0
        %734 = vmatprep.subr.bf16.mxu0 0
        %735 = vmatpush2.bf16.msra.mxu0 0
        %736 = vmatprep.subr.bf16.mxu0 0
        %737 = vmatpush2.bf16.msra.mxu0 0
        %738 = vmatprep.subr.bf16.mxu0 0
        %739 = vmatpush2.bf16.msra.mxu0 0
        %740 = vmatprep.mubr.bf16.mxu0 0
        %741 = vmatmul.mubr.bf16.gmra.mxu0 %v706
        %v742 = vpop.f32.mrf.mxu0
        %v743 = vadd.f32 0.0, %v742
        %v744 = vpop.f32.mrf.mxu0
        %v745 = vpop.f32.mrf.mxu0
        %v746 = vpop.f32.mrf.mxu0
        %747 = vdwg.mxu0
        %v748 = vadd.f32 %v667, %v743
        %s749 = scalar_lea.vmem %s1, 224
        %v750 = vld [vmem:[%s749] sm:$0xf]
        %v751 = vld [vmem:[%s749 + $0x4] sm:$0xf]
        %v752 = vld [vmem:[%s749 + $0x8] sm:$0xf]
        %v753 = vld [vmem:[%s749 + $0xc] sm:$0xf]
        %v754 = vld [vmem:[%s749 + $0x10] sm:$0xf]
        %v755 = vld [vmem:[%s749 + $0x14] sm:$0xf]
        %v756 = vld [vmem:[%s749 + $0x18] sm:$0xf]
        %v757 = vld [vmem:[%s749 + $0x1c] sm:$0xf]
        %v759 = vunpack.c.l.b16 %v671
        %v760 = vpack.c.b16 %v759, %v759
        %v762 = vshrl.u32 %v760, 16
        %v764 = vshll.u32 %v760, 16
        %v766 = vrot.slane %v764, 1
        %v767 = vor.u32 %v762, %v766
        %v776 = vunpack.c.l.b16 %v750
        %v777 = vunpack.c.l.b16 %v751
        %v778 = vunpack.c.l.b16 %v752
        %v779 = vunpack.c.l.b16 %v753
        %v780 = vunpack.c.l.b16 %v754
        %v781 = vunpack.c.l.b16 %v755
        %v782 = vunpack.c.l.b16 %v756
        %v783 = vunpack.c.l.b16 %v757
        %v784 = vpack.c.b16 %v777, %v776
        %v785 = vpack.c.b16 %v779, %v778
        %v786 = vpack.c.b16 %v781, %v780
        %v787 = vpack.c.b16 %v783, %v782
        %v793 = vsel %vm233, %v767, 0
        %795 = vmatprep.subr.bf16.mxu0 0
        %796 = vmatpush1.bf16.msra.mxu0 0
        %797 = vmatprep.subr.bf16.mxu0 0
        %798 = vmatpush1.bf16.msra.mxu0 0
        %799 = vmatprep.subr.bf16.mxu0 0
        %800 = vmatpush1.bf16.msra.mxu0 0
        %801 = vmatprep.subr.bf16.mxu0 0
        %802 = vmatpush1.bf16.msra.mxu0 0
        %803 = vmatprep.subr.bf16.mxu0 0
        %804 = vmatpush1.bf16.msra.mxu0 %v787
        %805 = vmatprep.subr.bf16.mxu0 0
        %806 = vmatpush1.bf16.msra.mxu0 %v786
        %807 = vmatprep.subr.bf16.mxu0 0
        %808 = vmatpush1.bf16.msra.mxu0 %v785
        %809 = vmatprep.subr.bf16.mxu0 0
        %810 = vmatpush1.bf16.msra.mxu0 %v784
        %811 = vmatprep.subr.bf16.mxu0 0
        %812 = vmatpush2.bf16.msra.mxu0 0
        %813 = vmatprep.subr.bf16.mxu0 0
        %814 = vmatpush2.bf16.msra.mxu0 0
        %815 = vmatprep.subr.bf16.mxu0 0
        %816 = vmatpush2.bf16.msra.mxu0 0
        %817 = vmatprep.subr.bf16.mxu0 0
        %818 = vmatpush2.bf16.msra.mxu0 0
        %819 = vmatprep.subr.bf16.mxu0 0
        %820 = vmatpush2.bf16.msra.mxu0 0
        %821 = vmatprep.subr.bf16.mxu0 0
        %822 = vmatpush2.bf16.msra.mxu0 0
        %823 = vmatprep.subr.bf16.mxu0 0
        %824 = vmatpush2.bf16.msra.mxu0 0
        %825 = vmatprep.subr.bf16.mxu0 0
        %826 = vmatpush2.bf16.msra.mxu0 0
        %827 = vmatprep.mubr.bf16.mxu0 0
        %828 = vmatmul.mubr.bf16.gmra.mxu0 %v793
        %v829 = vpop.f32.mrf.mxu0
        %v830 = vadd.f32 0.0, %v829
        %v831 = vpop.f32.mrf.mxu0
        %v832 = vpop.f32.mrf.mxu0
        %v833 = vpop.f32.mrf.mxu0
        %834 = vdwg.mxu0
        %v835 = vadd.f32 %v748, %v830
        %s836 = scalar_lea.vmem %s1, 256
        %v837 = vld [vmem:[%s836] sm:$0xf]
        %v838 = vld [vmem:[%s836 + $0x4] sm:$0xf]
        %v839 = vld [vmem:[%s836 + $0x8] sm:$0xf]
        %v840 = vld [vmem:[%s836 + $0xc] sm:$0xf]
        %v841 = vld [vmem:[%s836 + $0x10] sm:$0xf]
        %v842 = vld [vmem:[%s836 + $0x14] sm:$0xf]
        %v843 = vld [vmem:[%s836 + $0x18] sm:$0xf]
        %v844 = vld [vmem:[%s836 + $0x1c] sm:$0xf]
        %v845 = vrot.slane %v760, 1
        %v854 = vunpack.c.l.b16 %v837
        %v855 = vunpack.c.l.b16 %v838
        %v856 = vunpack.c.l.b16 %v839
        %v857 = vunpack.c.l.b16 %v840
        %v858 = vunpack.c.l.b16 %v841
        %v859 = vunpack.c.l.b16 %v842
        %v860 = vunpack.c.l.b16 %v843
        %v861 = vunpack.c.l.b16 %v844
        %v862 = vpack.c.b16 %v855, %v854
        %v863 = vpack.c.b16 %v857, %v856
        %v864 = vpack.c.b16 %v859, %v858
        %v865 = vpack.c.b16 %v861, %v860
        %v871 = vsel %vm233, %v845, 0
        %873 = vmatprep.subr.bf16.mxu0 0
        %874 = vmatpush1.bf16.msra.mxu0 0
        %875 = vmatprep.subr.bf16.mxu0 0
        %876 = vmatpush1.bf16.msra.mxu0 0
        %877 = vmatprep.subr.bf16.mxu0 0
        %878 = vmatpush1.bf16.msra.mxu0 0
        %879 = vmatprep.subr.bf16.mxu0 0
        %880 = vmatpush1.bf16.msra.mxu0 0
        %881 = vmatprep.subr.bf16.mxu0 0
        %882 = vmatpush1.bf16.msra.mxu0 %v865
        %883 = vmatprep.subr.bf16.mxu0 0
        %884 = vmatpush1.bf16.msra.mxu0 %v864
        %885 = vmatprep.subr.bf16.mxu0 0
        %886 = vmatpush1.bf16.msra.mxu0 %v863
        %887 = vmatprep.subr.bf16.mxu0 0
        %888 = vmatpush1.bf16.msra.mxu0 %v862
        %889 = vmatprep.subr.bf16.mxu0 0
        %890 = vmatpush2.bf16.msra.mxu0 0
        %891 = vmatprep.subr.bf16.mxu0 0
        %892 = vmatpush2.bf16.msra.mxu0 0
        %893 = vmatprep.subr.bf16.mxu0 0
        %894 = vmatpush2.bf16.msra.mxu0 0
        %895 = vmatprep.subr.bf16.mxu0 0
        %896 = vmatpush2.bf16.msra.mxu0 0
        %897 = vmatprep.subr.bf16.mxu0 0
        %898 = vmatpush2.bf16.msra.mxu0 0
        %899 = vmatprep.subr.bf16.mxu0 0
        %900 = vmatpush2.bf16.msra.mxu0 0
        %901 = vmatprep.subr.bf16.mxu0 0
        %902 = vmatpush2.bf16.msra.mxu0 0
        %903 = vmatprep.subr.bf16.mxu0 0
        %904 = vmatpush2.bf16.msra.mxu0 0
        %905 = vmatprep.mubr.bf16.mxu0 0
        %906 = vmatmul.mubr.bf16.gmra.mxu0 %v871
        %v907 = vpop.f32.mrf.mxu0
        %v908 = vadd.f32 0.0, %v907
        %v909 = vpop.f32.mrf.mxu0
        %v910 = vpop.f32.mrf.mxu0
        %v911 = vpop.f32.mrf.mxu0
        %912 = vdwg.mxu0
        %v913 = vadd.f32 %v835, %v908
        %v915 = vlaneseq
        %v916 = vshrl.u32 %v915, 7
        %v917 = vsub.s32 0, %v916
        %v918 = vrot.slane %v172, %v917
        %v920 = vadd.f32 %v913, %v918
        %v921 = vmax.f32 %v920, 0.0
        %v922 = vpack.c.bf16 %v921, %v921
        %s923 = smul.addr %s174, 2
        %s924 = scalar_lea.vmem %s170, %s923
        %vm925 = vcmask 517120
        %926 = vst.msk [vmem:[%s924] sm:$0x3] %vm925, %v922
      $region37: #{ppo_value_forward.6} parent=31 // loop_footer
        %s178 = sadd.s32 1, %s174
      $region38: #{ppo_value_forward.6} parent=31 // loop_footer_branch
        %173 = sbr.rel target = $region34
      $region39: #{ppo_value_forward.6} parent=31 // loop_exit
        _
      %p927 = scmp.lt.s32.totalorder %s14, 1
      %s928 = scalar_select %p927, %s14, 1
      %s929 = smul.addr %s928, 4
      %s930 = smul.addr %s929, 2
      %s931 = scalar_lea.vmem %s3, %s930
      // Predicated region
      $region40: #{ppo_value_forward.6} parent=31 // pred_check
        %p932 = pneg %p100
      $region41: #{ppo_value_forward.6} parent=31 // pred_check_branch
        %934 = sbr.rel (%p932) target = $region43
      $region42: #{ppo_value_forward.6} parent=31 // pred_region
        _
      $region43: #{ppo_value_forward.6} parent=31 // pred_fallthru
        _
    $region32: #{ppo_value_forward.6} parent=5 // pred_fallthru
      _
    %p935 = scmp.le.s32.totalorder 2, %s9
    // Predicated region
    $region44: #{ppo_value_forward.6} parent=5 // pred_check
      %p936 = pneg %p935
    $region45: #{ppo_value_forward.6} parent=5 // pred_check_branch
      %938 = sbr.rel (%p936) target = $region47
    $region46: #{ppo_value_forward.6} parent=5 // pred_region
      %s939 = ssub.s32 %s9, 2
      // Predicated region
      $region48: #{ppo_value_forward.6} parent=46 // pred_check
        %p940 = pneg %p106
      $region49: #{ppo_value_forward.6} parent=46 // pred_check_branch
        %942 = sbr.rel (%p940) target = $region51
      $region50: #{ppo_value_forward.6} parent=46 // pred_region
        %p943 = scmp.lt.s32.totalorder %s15, 1
        %s944 = scalar_select %p943, %s15, 1
        %s945 = smul.addr %s944, 4
        %s946 = smul.addr %s945, 2
        %s947 = scalar_lea.vmem %s3, %s946
      $region51: #{ppo_value_forward.6} parent=46 // pred_fallthru
        _
    $region47: #{ppo_value_forward.6} parent=5 // pred_fallthru
      _
  $region6: #{ppo_value_forward.6} parent=0 // loop_footer
    %s13 = sadd.s32 1, %s9
  $region7: #{ppo_value_forward.6} parent=0 // loop_footer_branch
    %8 = sbr.rel target = $region3
  $region8: #{ppo_value_forward.6} parent=0 // loop_exit
    _

// kernel: ppo_value_forward.7
$region0: #{ppo_value_forward.7}
  #allocation0 [shape = 'u32[]', space=smem, size = 0x4, offset = 0x4, fixed_abs, tag = 'smem constant byte address 0x4 - core index']
  #allocation1 [shape = 'u32[144,128]{1,0:T(1,128)}', space=vmem, size = 0x12000, scoped, tag = 'internal scratch']
  #allocation2 [shape = 'f32[2,64]{1,0:T(2,128)}', space=vmem, size = 0x400, scoped, tag = 'scratch operand']
  #allocation3 [shape = 'f32[1,1]{1,0:T(1,128)S(1)}', space=vmem, size = 0x200, scoped, tag = 'scoped memory for ppo_value_forward.7']
  %s0 = inlined_call_operand.vmem [shape: bf16[2,1024], index: 0, kind: input, shape index: {}]
  %s1 = inlined_call_operand.vmem [shape: bf16[1024,64], index: 1, kind: input, shape index: {}]
  %s2 = inlined_call_operand.vmem [shape: f32[1,64], index: 2, kind: input, shape index: {}]
  %s3 = inlined_call_operand.vmem [shape: bf16[2,128], index: 3, kind: input, shape index: {}]
  %s4 = inlined_call_operand.vmem [shape: bf16[64,256], index: 4, kind: input, shape index: {}]
  %s5 = inlined_call_operand.vmem [shape: bf16[128,256], index: 5, kind: input, shape index: {}]
  %s6 = inlined_call_operand.vmem [shape: f32[1,256], index: 6, kind: input, shape index: {}]
  %s7 = inlined_call_operand.vmem [shape: bf16[256,128], index: 7, kind: input, shape index: {}]
  %s8 = inlined_call_operand.vmem [shape: f32[1,128], index: 8, kind: input, shape index: {}]
  %s9 = inlined_call_operand.vmem [shape: f32[1,128], index: 9, kind: input, shape index: {}]
  %s10 = inlined_call_operand.<no memory space> [shape: f32[1,1], index: 10, kind: input, shape index: {}]
  %s11 = inlined_call_operand.vmem [shape: f32[2,128], index: 11, kind: output, shape index: {}]
  %s12 = sld [smem:[#allocation0]]
  $region62: #{ppo_value_forward.7} parent=0
    _
  %s14 = ssub.s32 1, %s12
  %s15 = scalar_select 0, %s14, %s12
  %v16 = vstv %s10
  %17 = vst [vmem:[#allocation3] sm:$0x1] %v16
  // Predicated region
  $region2: #{ppo_value_forward.7} parent=0 // pred_check
    _
  $region3: #{ppo_value_forward.7} parent=0 // pred_check_branch
    %19 = sbr.rel (0) target = $region5
  $region4: #{ppo_value_forward.7} parent=0 // pred_region
    _
  $region5: #{ppo_value_forward.7} parent=0 // pred_fallthru
    _
  // Predicated region
  $region6: #{ppo_value_forward.7} parent=0 // pred_check
    _
  $region7: #{ppo_value_forward.7} parent=0 // pred_check_branch
    %21 = sbr.rel (0) target = $region9
  $region8: #{ppo_value_forward.7} parent=0 // pred_region
    _
  $region9: #{ppo_value_forward.7} parent=0 // pred_fallthru
    _
  // Predicated region
  $region10: #{ppo_value_forward.7} parent=0 // pred_check
    _
  $region11: #{ppo_value_forward.7} parent=0 // pred_check_branch
    %23 = sbr.rel (0) target = $region13
  $region12: #{ppo_value_forward.7} parent=0 // pred_region
    _
  $region13: #{ppo_value_forward.7} parent=0 // pred_fallthru
    _
  // Predicated region
  $region14: #{ppo_value_forward.7} parent=0 // pred_check
    _
  $region15: #{ppo_value_forward.7} parent=0 // pred_check_branch
    %25 = sbr.rel (0) target = $region17
  $region16: #{ppo_value_forward.7} parent=0 // pred_region
    _
  $region17: #{ppo_value_forward.7} parent=0 // pred_fallthru
    _
  // Predicated region
  $region18: #{ppo_value_forward.7} parent=0 // pred_check
    _
  $region19: #{ppo_value_forward.7} parent=0 // pred_check_branch
    %27 = sbr.rel (0) target = $region21
  $region20: #{ppo_value_forward.7} parent=0 // pred_region
    _
  $region21: #{ppo_value_forward.7} parent=0 // pred_fallthru
    _
  // Predicated region
  $region22: #{ppo_value_forward.7} parent=0 // pred_check
    _
  $region23: #{ppo_value_forward.7} parent=0 // pred_check_branch
    %29 = sbr.rel (0) target = $region25
  $region24: #{ppo_value_forward.7} parent=0 // pred_region
    _
  $region25: #{ppo_value_forward.7} parent=0 // pred_fallthru
    _
  // Predicated region
  $region26: #{ppo_value_forward.7} parent=0 // pred_check
    _
  $region27: #{ppo_value_forward.7} parent=0 // pred_check_branch
    %31 = sbr.rel (0) target = $region29
  $region28: #{ppo_value_forward.7} parent=0 // pred_region
    _
  $region29: #{ppo_value_forward.7} parent=0 // pred_fallthru
    _
  // Predicated region
  $region30: #{ppo_value_forward.7} parent=0 // pred_check
    _
  $region31: #{ppo_value_forward.7} parent=0 // pred_check_branch
    %33 = sbr.rel (0) target = $region33
  $region32: #{ppo_value_forward.7} parent=0 // pred_region
    _
  $region33: #{ppo_value_forward.7} parent=0 // pred_fallthru
    _
  // Predicated region
  $region34: #{ppo_value_forward.7} parent=0 // pred_check
    _
  $region35: #{ppo_value_forward.7} parent=0 // pred_check_branch
    %35 = sbr.rel (0) target = $region37
  $region36: #{ppo_value_forward.7} parent=0 // pred_region
    _
  $region37: #{ppo_value_forward.7} parent=0 // pred_fallthru
    _
  // Predicated region
  $region38: #{ppo_value_forward.7} parent=0 // pred_check
    _
  $region39: #{ppo_value_forward.7} parent=0 // pred_check_branch
    %37 = sbr.rel (0) target = $region41
  $region40: #{ppo_value_forward.7} parent=0 // pred_region
    _
  $region41: #{ppo_value_forward.7} parent=0 // pred_fallthru
    _
  // Predicated region
  $region42: #{ppo_value_forward.7} parent=0 // pred_check
    _
  $region43: #{ppo_value_forward.7} parent=0 // pred_check_branch
    %39 = sbr.rel (0) target = $region45
  $region44: #{ppo_value_forward.7} parent=0 // pred_region
    _
  $region45: #{ppo_value_forward.7} parent=0 // pred_fallthru
    _
  %p41 = scmp.eq.s32.totalorder 0, 0
  // Predicated region
  $region46: #{ppo_value_forward.7} parent=0 // pred_check
    %p42 = pneg %p41
  $region47: #{ppo_value_forward.7} parent=0 // pred_check_branch
    %44 = sbr.rel (%p42) target = $region49
  $region48: #{ppo_value_forward.7} parent=0 // pred_region
    %vm45 = vcmask 517120
    %46 = vst.msk [vmem:[#allocation2] sm:$0x3] %vm45, 0.0
  $region49: #{ppo_value_forward.7} parent=0 // pred_fallthru
    _
  %v47 = vld [vmem:[#allocation2] sm:$0x3]
  %v48 = vld [vmem:[%s0] sm:$0xff]
  %v49 = vld [vmem:[%s1] sm:$0xf]
  %v50 = vld [vmem:[%s1 + $0x4] sm:$0xf]
  %v51 = vld [vmem:[%s1 + $0x8] sm:$0xf]
  %v52 = vld [vmem:[%s1 + $0xc] sm:$0xf]
  %v53 = vld [vmem:[%s1 + $0x10] sm:$0xf]
  %v54 = vld [vmem:[%s1 + $0x14] sm:$0xf]
  %v55 = vld [vmem:[%s1 + $0x18] sm:$0xf]
  %v56 = vld [vmem:[%s1 + $0x1c] sm:$0xf]
  %v57 = vld [vmem:[%s1 + $0x20] sm:$0xf]
  %v58 = vld [vmem:[%s1 + $0x24] sm:$0xf]
  %v59 = vld [vmem:[%s1 + $0x28] sm:$0xf]
  %v60 = vld [vmem:[%s1 + $0x2c] sm:$0xf]
  %v61 = vld [vmem:[%s1 + $0x30] sm:$0xf]
  %v62 = vld [vmem:[%s1 + $0x34] sm:$0xf]
  %v63 = vld [vmem:[%s1 + $0x38] sm:$0xf]
  %v64 = vld [vmem:[%s1 + $0x3c] sm:$0xf]
  %v65 = vld [vmem:[%s1 + $0x40] sm:$0xf]
  %v66 = vld [vmem:[%s1 + $0x44] sm:$0xf]
  %v67 = vld [vmem:[%s1 + $0x48] sm:$0xf]
  %v68 = vld [vmem:[%s1 + $0x4c] sm:$0xf]
  %v69 = vld [vmem:[%s1 + $0x50] sm:$0xf]
  %v70 = vld [vmem:[%s1 + $0x54] sm:$0xf]
  %v71 = vld [vmem:[%s1 + $0x58] sm:$0xf]
  %v72 = vld [vmem:[%s1 + $0x5c] sm:$0xf]
  %v73 = vld [vmem:[%s1 + $0x60] sm:$0xf]
  %v74 = vld [vmem:[%s1 + $0x64] sm:$0xf]
  %v75 = vld [vmem:[%s1 + $0x68] sm:$0xf]
  %v76 = vld [vmem:[%s1 + $0x6c] sm:$0xf]
  %v77 = vld [vmem:[%s1 + $0x70] sm:$0xf]
  %v78 = vld [vmem:[%s1 + $0x74] sm:$0xf]
  %v79 = vld [vmem:[%s1 + $0x78] sm:$0xf]
  %v80 = vld [vmem:[%s1 + $0x7c] sm:$0xf]
  %v81 = vld [vmem:[%s1 + $0x80] sm:$0xf]
  %v82 = vld [vmem:[%s1 + $0x84] sm:$0xf]
  %v83 = vld [vmem:[%s1 + $0x88] sm:$0xf]
  %v84 = vld [vmem:[%s1 + $0x8c] sm:$0xf]
  %v85 = vld [vmem:[%s1 + $0x90] sm:$0xf]
  %v86 = vld [vmem:[%s1 + $0x94] sm:$0xf]
  %v87 = vld [vmem:[%s1 + $0x98] sm:$0xf]
  %v88 = vld [vmem:[%s1 + $0x9c] sm:$0xf]
  %v89 = vld [vmem:[%s1 + $0xa0] sm:$0xf]
  %v90 = vld [vmem:[%s1 + $0xa4] sm:$0xf]
  %v91 = vld [vmem:[%s1 + $0xa8] sm:$0xf]
  %v92 = vld [vmem:[%s1 + $0xac] sm:$0xf]
  %v93 = vld [vmem:[%s1 + $0xb0] sm:$0xf]
  %v94 = vld [vmem:[%s1 + $0xb4] sm:$0xf]
  %v95 = vld [vmem:[%s1 + $0xb8] sm:$0xf]
  %v96 = vld [vmem:[%s1 + $0xbc] sm:$0xf]
  %v97 = vld [vmem:[%s1 + $0xc0] sm:$0xf]
  %v98 = vld [vmem:[%s1 + $0xc4] sm:$0xf]
  %v99 = vld [vmem:[%s1 + $0xc8] sm:$0xf]
  %v100 = vld [vmem:[%s1 + $0xcc] sm:$0xf]
  %v101 = vld [vmem:[%s1 + $0xd0] sm:$0xf]
  %v102 = vld [vmem:[%s1 + $0xd4] sm:$0xf]
  %v103 = vld [vmem:[%s1 + $0xd8] sm:$0xf]
  %v104 = vld [vmem:[%s1 + $0xdc] sm:$0xf]
  %v105 = vld [vmem:[%s1 + $0xe0] sm:$0xf]
  %v106 = vld [vmem:[%s1 + $0xe4] sm:$0xf]
  %v107 = vld [vmem:[%s1 + $0xe8] sm:$0xf]
  %v108 = vld [vmem:[%s1 + $0xec] sm:$0xf]
  %v109 = vld [vmem:[%s1 + $0xf0] sm:$0xf]
  %v110 = vld [vmem:[%s1 + $0xf4] sm:$0xf]
  %v111 = vld [vmem:[%s1 + $0xf8] sm:$0xf]
  %v112 = vld [vmem:[%s1 + $0xfc] sm:$0xf]
  %v113 = vld [vmem:[%s1 + $0x100] sm:$0xf]
  %v114 = vld [vmem:[%s1 + $0x104] sm:$0xf]
  %v115 = vld [vmem:[%s1 + $0x108] sm:$0xf]
  %v116 = vld [vmem:[%s1 + $0x10c] sm:$0xf]
  %v117 = vld [vmem:[%s1 + $0x110] sm:$0xf]
  %v118 = vld [vmem:[%s1 + $0x114] sm:$0xf]
  %v119 = vld [vmem:[%s1 + $0x118] sm:$0xf]
  %v120 = vld [vmem:[%s1 + $0x11c] sm:$0xf]
  %v121 = vld [vmem:[%s1 + $0x120] sm:$0xf]
  %v122 = vld [vmem:[%s1 + $0x124] sm:$0xf]
  %v123 = vld [vmem:[%s1 + $0x128] sm:$0xf]
  %v124 = vld [vmem:[%s1 + $0x12c] sm:$0xf]
  %v125 = vld [vmem:[%s1 + $0x130] sm:$0xf]
  %v126 = vld [vmem:[%s1 + $0x134] sm:$0xf]
  %v127 = vld [vmem:[%s1 + $0x138] sm:$0xf]
  %v128 = vld [vmem:[%s1 + $0x13c] sm:$0xf]
  %v129 = vld [vmem:[%s1 + $0x140] sm:$0xf]
  %v130 = vld [vmem:[%s1 + $0x144] sm:$0xf]
  %v131 = vld [vmem:[%s1 + $0x148] sm:$0xf]
  %v132 = vld [vmem:[%s1 + $0x14c] sm:$0xf]
  %v133 = vld [vmem:[%s1 + $0x150] sm:$0xf]
  %v134 = vld [vmem:[%s1 + $0x154] sm:$0xf]
  %v135 = vld [vmem:[%s1 + $0x158] sm:$0xf]
  %v136 = vld [vmem:[%s1 + $0x15c] sm:$0xf]
  %v137 = vld [vmem:[%s1 + $0x160] sm:$0xf]
  %v138 = vld [vmem:[%s1 + $0x164] sm:$0xf]
  %v139 = vld [vmem:[%s1 + $0x168] sm:$0xf]
  %v140 = vld [vmem:[%s1 + $0x16c] sm:$0xf]
  %v141 = vld [vmem:[%s1 + $0x170] sm:$0xf]
  %v142 = vld [vmem:[%s1 + $0x174] sm:$0xf]
  %v143 = vld [vmem:[%s1 + $0x178] sm:$0xf]
  %v144 = vld [vmem:[%s1 + $0x17c] sm:$0xf]
  %v145 = vld [vmem:[%s1 + $0x180] sm:$0xf]
  %v146 = vld [vmem:[%s1 + $0x184] sm:$0xf]
  %v147 = vld [vmem:[%s1 + $0x188] sm:$0xf]
  %v148 = vld [vmem:[%s1 + $0x18c] sm:$0xf]
  %v149 = vld [vmem:[%s1 + $0x190] sm:$0xf]
  %v150 = vld [vmem:[%s1 + $0x194] sm:$0xf]
  %v151 = vld [vmem:[%s1 + $0x198] sm:$0xf]
  %v152 = vld [vmem:[%s1 + $0x19c] sm:$0xf]
  %v153 = vld [vmem:[%s1 + $0x1a0] sm:$0xf]
  %v154 = vld [vmem:[%s1 + $0x1a4] sm:$0xf]
  %v155 = vld [vmem:[%s1 + $0x1a8] sm:$0xf]
  %v156 = vld [vmem:[%s1 + $0x1ac] sm:$0xf]
  %v157 = vld [vmem:[%s1 + $0x1b0] sm:$0xf]
  %v158 = vld [vmem:[%s1 + $0x1b4] sm:$0xf]
  %v159 = vld [vmem:[%s1 + $0x1b8] sm:$0xf]
  %v160 = vld [vmem:[%s1 + $0x1bc] sm:$0xf]
  %v161 = vld [vmem:[%s1 + $0x1c0] sm:$0xf]
  %v162 = vld [vmem:[%s1 + $0x1c4] sm:$0xf]
  %v163 = vld [vmem:[%s1 + $0x1c8] sm:$0xf]
  %v164 = vld [vmem:[%s1 + $0x1cc] sm:$0xf]
  %v165 = vld [vmem:[%s1 + $0x1d0] sm:$0xf]
  %v166 = vld [vmem:[%s1 + $0x1d4] sm:$0xf]
  %v167 = vld [vmem:[%s1 + $0x1d8] sm:$0xf]
  %v168 = vld [vmem:[%s1 + $0x1dc] sm:$0xf]
  %v169 = vld [vmem:[%s1 + $0x1e0] sm:$0xf]
  %v170 = vld [vmem:[%s1 + $0x1e4] sm:$0xf]
  %v171 = vld [vmem:[%s1 + $0x1e8] sm:$0xf]
  %v172 = vld [vmem:[%s1 + $0x1ec] sm:$0xf]
  %v173 = vld [vmem:[%s1 + $0x1f0] sm:$0xf]
  %v174 = vld [vmem:[%s1 + $0x1f4] sm:$0xf]
  %v175 = vld [vmem:[%s1 + $0x1f8] sm:$0xf]
  %v176 = vld [vmem:[%s1 + $0x1fc] sm:$0xf]
  %v178 = vcombine.high %v48, %v48
  %v180 = vunpack.c.l.s4 1966171168
  %v181 = vunpack.c.0.s8 %v180
  %v182 = vlaneseq
  %v183 = vshrl.u32 %v182, 7
  %v184 = vsub.s32 %v181, %v183
  %v185 = vrot.slane %v48, %v184
  %v187 = vunpack.c.l.s4 1966171168
  %v188 = vunpack.c.0.s8 %v187
  %v189 = vlaneseq
  %v190 = vshrl.u32 %v189, 7
  %v191 = vsub.s32 %v188, %v190
  %v192 = vrot.slane %v178, %v191
  %v193 = vcombine.high %v185, %v185
  %v194 = vcombine.high %v192, %v192
  %v196 = vunpack.c.l.s4 1966171168
  %v197 = vunpack.c.0.s8 %v196
  %v198 = vlaneseq
  %v199 = vshrl.u32 %v198, 7
  %v200 = vsub.s32 %v197, %v199
  %v201 = vrot.slane %v185, %v200
  %v203 = vunpack.c.l.s4 1966171168
  %v204 = vunpack.c.0.s8 %v203
  %v205 = vlaneseq
  %v206 = vshrl.u32 %v205, 7
  %v207 = vsub.s32 %v204, %v206
  %v208 = vrot.slane %v192, %v207
  %v210 = vunpack.c.l.s4 1966171168
  %v211 = vunpack.c.0.s8 %v210
  %v212 = vlaneseq
  %v213 = vshrl.u32 %v212, 7
  %v214 = vsub.s32 %v211, %v213
  %v215 = vrot.slane %v193, %v214
  %v217 = vunpack.c.l.s4 1966171168
  %v218 = vunpack.c.0.s8 %v217
  %v219 = vlaneseq
  %v220 = vshrl.u32 %v219, 7
  %v221 = vsub.s32 %v218, %v220
  %v222 = vrot.slane %v194, %v221
  %v223 = vcombine.high %v201, %v201
  %v224 = vcombine.high %v208, %v208
  %v225 = vcombine.high %v215, %v215
  %v226 = vcombine.high %v222, %v222
  %v363 = vunpack.c.l.b16 %v49
  %v364 = vunpack.c.l.b16 %v50
  %v365 = vunpack.c.l.b16 %v51
  %v366 = vunpack.c.l.b16 %v52
  %v367 = vunpack.c.l.b16 %v53
  %v368 = vunpack.c.l.b16 %v54
  %v369 = vunpack.c.l.b16 %v55
  %v370 = vunpack.c.l.b16 %v56
  %v371 = vunpack.c.l.b16 %v57
  %v372 = vunpack.c.l.b16 %v58
  %v373 = vunpack.c.l.b16 %v59
  %v374 = vunpack.c.l.b16 %v60
  %v375 = vunpack.c.l.b16 %v61
  %v376 = vunpack.c.l.b16 %v62
  %v377 = vunpack.c.l.b16 %v63
  %v378 = vunpack.c.l.b16 %v64
  %v379 = vunpack.c.l.b16 %v65
  %v380 = vunpack.c.l.b16 %v66
  %v381 = vunpack.c.l.b16 %v67
  %v382 = vunpack.c.l.b16 %v68
  %v383 = vunpack.c.l.b16 %v69
  %v384 = vunpack.c.l.b16 %v70
  %v385 = vunpack.c.l.b16 %v71
  %v386 = vunpack.c.l.b16 %v72
  %v387 = vunpack.c.l.b16 %v73
  %v388 = vunpack.c.l.b16 %v74
  %v389 = vunpack.c.l.b16 %v75
  %v390 = vunpack.c.l.b16 %v76
  %v391 = vunpack.c.l.b16 %v77
  %v392 = vunpack.c.l.b16 %v78
  %v393 = vunpack.c.l.b16 %v79
  %v394 = vunpack.c.l.b16 %v80
  %v395 = vunpack.c.l.b16 %v81
  %v396 = vunpack.c.l.b16 %v82
  %v397 = vunpack.c.l.b16 %v83
  %v398 = vunpack.c.l.b16 %v84
  %v399 = vunpack.c.l.b16 %v85
  %v400 = vunpack.c.l.b16 %v86
  %v401 = vunpack.c.l.b16 %v87
  %v402 = vunpack.c.l.b16 %v88
  %v403 = vunpack.c.l.b16 %v89
  %v404 = vunpack.c.l.b16 %v90
  %v405 = vunpack.c.l.b16 %v91
  %v406 = vunpack.c.l.b16 %v92
  %v407 = vunpack.c.l.b16 %v93
  %v408 = vunpack.c.l.b16 %v94
  %v409 = vunpack.c.l.b16 %v95
  %v410 = vunpack.c.l.b16 %v96
  %v411 = vunpack.c.l.b16 %v97
  %v412 = vunpack.c.l.b16 %v98
  %v413 = vunpack.c.l.b16 %v99
  %v414 = vunpack.c.l.b16 %v100
  %v415 = vunpack.c.l.b16 %v101
  %v416 = vunpack.c.l.b16 %v102
  %v417 = vunpack.c.l.b16 %v103
  %v418 = vunpack.c.l.b16 %v104
  %v419 = vunpack.c.l.b16 %v105
  %v420 = vunpack.c.l.b16 %v106
  %v421 = vunpack.c.l.b16 %v107
  %v422 = vunpack.c.l.b16 %v108
  %v423 = vunpack.c.l.b16 %v109
  %v424 = vunpack.c.l.b16 %v110
  %v425 = vunpack.c.l.b16 %v111
  %v426 = vunpack.c.l.b16 %v112
  %v427 = vunpack.c.l.b16 %v113
  %v428 = vunpack.c.l.b16 %v114
  %v429 = vunpack.c.l.b16 %v115
  %v430 = vunpack.c.l.b16 %v116
  %v431 = vunpack.c.l.b16 %v117
  %v432 = vunpack.c.l.b16 %v118
  %v433 = vunpack.c.l.b16 %v119
  %v434 = vunpack.c.l.b16 %v120
  %v435 = vunpack.c.l.b16 %v121
  %v436 = vunpack.c.l.b16 %v122
  %v437 = vunpack.c.l.b16 %v123
  %v438 = vunpack.c.l.b16 %v124
  %v439 = vunpack.c.l.b16 %v125
  %v440 = vunpack.c.l.b16 %v126
  %v441 = vunpack.c.l.b16 %v127
  %v442 = vunpack.c.l.b16 %v128
  %v443 = vunpack.c.l.b16 %v129
  %v444 = vunpack.c.l.b16 %v130
  %v445 = vunpack.c.l.b16 %v131
  %v446 = vunpack.c.l.b16 %v132
  %v447 = vunpack.c.l.b16 %v133
  %v448 = vunpack.c.l.b16 %v134
  %v449 = vunpack.c.l.b16 %v135
  %v450 = vunpack.c.l.b16 %v136
  %v451 = vunpack.c.l.b16 %v137
  %v452 = vunpack.c.l.b16 %v138
  %v453 = vunpack.c.l.b16 %v139
  %v454 = vunpack.c.l.b16 %v140
  %v455 = vunpack.c.l.b16 %v141
  %v456 = vunpack.c.l.b16 %v142
  %v457 = vunpack.c.l.b16 %v143
  %v458 = vunpack.c.l.b16 %v144
  %v459 = vunpack.c.l.b16 %v145
  %v460 = vunpack.c.l.b16 %v146
  %v461 = vunpack.c.l.b16 %v147
  %v462 = vunpack.c.l.b16 %v148
  %v463 = vunpack.c.l.b16 %v149
  %v464 = vunpack.c.l.b16 %v150
  %v465 = vunpack.c.l.b16 %v151
  %v466 = vunpack.c.l.b16 %v152
  %v467 = vunpack.c.l.b16 %v153
  %v468 = vunpack.c.l.b16 %v154
  %v469 = vunpack.c.l.b16 %v155
  %v470 = vunpack.c.l.b16 %v156
  %v471 = vunpack.c.l.b16 %v157
  %v472 = vunpack.c.l.b16 %v158
  %v473 = vunpack.c.l.b16 %v159
  %v474 = vunpack.c.l.b16 %v160
  %v475 = vunpack.c.l.b16 %v161
  %v476 = vunpack.c.l.b16 %v162
  %v477 = vunpack.c.l.b16 %v163
  %v478 = vunpack.c.l.b16 %v164
  %v479 = vunpack.c.l.b16 %v165
  %v480 = vunpack.c.l.b16 %v166
  %v481 = vunpack.c.l.b16 %v167
  %v482 = vunpack.c.l.b16 %v168
  %v483 = vunpack.c.l.b16 %v169
  %v484 = vunpack.c.l.b16 %v170
  %v485 = vunpack.c.l.b16 %v171
  %v486 = vunpack.c.l.b16 %v172
  %v487 = vunpack.c.l.b16 %v173
  %v488 = vunpack.c.l.b16 %v174
  %v489 = vunpack.c.l.b16 %v175
  %v490 = vunpack.c.l.b16 %v176
  %v491 = vpack.c.b16 %v364, %v363
  %v492 = vpack.c.b16 %v366, %v365
  %v493 = vpack.c.b16 %v368, %v367
  %v494 = vpack.c.b16 %v370, %v369
  %v495 = vpack.c.b16 %v372, %v371
  %v496 = vpack.c.b16 %v374, %v373
  %v497 = vpack.c.b16 %v376, %v375
  %v498 = vpack.c.b16 %v378, %v377
  %v499 = vpack.c.b16 %v380, %v379
  %v500 = vpack.c.b16 %v382, %v381
  %v501 = vpack.c.b16 %v384, %v383
  %v502 = vpack.c.b16 %v386, %v385
  %v503 = vpack.c.b16 %v388, %v387
  %v504 = vpack.c.b16 %v390, %v389
  %v505 = vpack.c.b16 %v392, %v391
  %v506 = vpack.c.b16 %v394, %v393
  %v507 = vpack.c.b16 %v396, %v395
  %v508 = vpack.c.b16 %v398, %v397
  %v509 = vpack.c.b16 %v400, %v399
  %v510 = vpack.c.b16 %v402, %v401
  %v511 = vpack.c.b16 %v404, %v403
  %v512 = vpack.c.b16 %v406, %v405
  %v513 = vpack.c.b16 %v408, %v407
  %v514 = vpack.c.b16 %v410, %v409
  %v515 = vpack.c.b16 %v412, %v411
  %v516 = vpack.c.b16 %v414, %v413
  %v517 = vpack.c.b16 %v416, %v415
  %v518 = vpack.c.b16 %v418, %v417
  %v519 = vpack.c.b16 %v420, %v419
  %v520 = vpack.c.b16 %v422, %v421
  %v521 = vpack.c.b16 %v424, %v423
  %v522 = vpack.c.b16 %v426, %v425
  %v523 = vpack.c.b16 %v428, %v427
  %v524 = vpack.c.b16 %v430, %v429
  %v525 = vpack.c.b16 %v432, %v431
  %v526 = vpack.c.b16 %v434, %v433
  %v527 = vpack.c.b16 %v436, %v435
  %v528 = vpack.c.b16 %v438, %v437
  %v529 = vpack.c.b16 %v440, %v439
  %v530 = vpack.c.b16 %v442, %v441
  %v531 = vpack.c.b16 %v444, %v443
  %v532 = vpack.c.b16 %v446, %v445
  %v533 = vpack.c.b16 %v448, %v447
  %v534 = vpack.c.b16 %v450, %v449
  %v535 = vpack.c.b16 %v452, %v451
  %v536 = vpack.c.b16 %v454, %v453
  %v537 = vpack.c.b16 %v456, %v455
  %v538 = vpack.c.b16 %v458, %v457
  %v539 = vpack.c.b16 %v460, %v459
  %v540 = vpack.c.b16 %v462, %v461
  %v541 = vpack.c.b16 %v464, %v463
  %v542 = vpack.c.b16 %v466, %v465
  %v543 = vpack.c.b16 %v468, %v467
  %v544 = vpack.c.b16 %v470, %v469
  %v545 = vpack.c.b16 %v472, %v471
  %v546 = vpack.c.b16 %v474, %v473
  %v547 = vpack.c.b16 %v476, %v475
  %v548 = vpack.c.b16 %v478, %v477
  %v549 = vpack.c.b16 %v480, %v479
  %v550 = vpack.c.b16 %v482, %v481
  %v551 = vpack.c.b16 %v484, %v483
  %v552 = vpack.c.b16 %v486, %v485
  %v553 = vpack.c.b16 %v488, %v487
  %v554 = vpack.c.b16 %v490, %v489
  %619 = vmatprep.subr.bf16.mxu0 0
  %620 = vmatpush1.bf16.msra.mxu0 %v498
  %621 = vmatprep.subr.bf16.mxu0 0
  %622 = vmatpush1.bf16.msra.mxu0 %v497
  %623 = vmatprep.subr.bf16.mxu0 0
  %624 = vmatpush1.bf16.msra.mxu0 %v496
  %625 = vmatprep.subr.bf16.mxu0 0
  %626 = vmatpush1.bf16.msra.mxu0 %v495
  %627 = vmatprep.subr.bf16.mxu0 0
  %628 = vmatpush1.bf16.msra.mxu0 %v494
  %629 = vmatprep.subr.bf16.mxu0 0
  %630 = vmatpush1.bf16.msra.mxu0 %v493
  %631 = vmatprep.subr.bf16.mxu0 0
  %632 = vmatpush1.bf16.msra.mxu0 %v492
  %633 = vmatprep.subr.bf16.mxu0 0
  %634 = vmatpush1.bf16.msra.mxu0 %v491
  %635 = vmatprep.subr.bf16.mxu0 0
  %636 = vmatpush2.bf16.msra.mxu0 %v506
  %637 = vmatprep.subr.bf16.mxu0 0
  %638 = vmatpush2.bf16.msra.mxu0 %v505
  %639 = vmatprep.subr.bf16.mxu0 0
  %640 = vmatpush2.bf16.msra.mxu0 %v504
  %641 = vmatprep.subr.bf16.mxu0 0
  %642 = vmatpush2.bf16.msra.mxu0 %v503
  %643 = vmatprep.subr.bf16.mxu0 0
  %644 = vmatpush2.bf16.msra.mxu0 %v502
  %645 = vmatprep.subr.bf16.mxu0 0
  %646 = vmatpush2.bf16.msra.mxu0 %v501
  %647 = vmatprep.subr.bf16.mxu0 0
  %648 = vmatpush2.bf16.msra.mxu0 %v500
  %649 = vmatprep.subr.bf16.mxu0 0
  %650 = vmatpush2.bf16.msra.mxu0 %v499
  %651 = vmatprep.mubr.bf16.mxu0 %v215
  %652 = vmatmul.mubr.bf16.gmra.mxu0 %v201
  %v653 = vpop.f32.mrf.mxu0
  %v654 = vadd.f32 0.0, %v653
  %v655 = vpop.f32.mrf.mxu0
  %v656 = vpop.f32.mrf.mxu0
  %v657 = vpop.f32.mrf.mxu0
  %658 = vdwg.mxu0
  %659 = vmatprep.subr.bf16.mxu0 0
  %660 = vmatpush1.bf16.msra.mxu0 %v514
  %661 = vmatprep.subr.bf16.mxu0 0
  %662 = vmatpush1.bf16.msra.mxu0 %v513
  %663 = vmatprep.subr.bf16.mxu0 0
  %664 = vmatpush1.bf16.msra.mxu0 %v512
  %665 = vmatprep.subr.bf16.mxu0 0
  %666 = vmatpush1.bf16.msra.mxu0 %v511
  %667 = vmatprep.subr.bf16.mxu0 0
  %668 = vmatpush1.bf16.msra.mxu0 %v510
  %669 = vmatprep.subr.bf16.mxu0 0
  %670 = vmatpush1.bf16.msra.mxu0 %v509
  %671 = vmatprep.subr.bf16.mxu0 0
  %672 = vmatpush1.bf16.msra.mxu0 %v508
  %673 = vmatprep.subr.bf16.mxu0 0
  %674 = vmatpush1.bf16.msra.mxu0 %v507
  %675 = vmatprep.subr.bf16.mxu0 0
  %676 = vmatpush2.bf16.msra.mxu0 %v522
  %677 = vmatprep.subr.bf16.mxu0 0
  %678 = vmatpush2.bf16.msra.mxu0 %v521
  %679 = vmatprep.subr.bf16.mxu0 0
  %680 = vmatpush2.bf16.msra.mxu0 %v520
  %681 = vmatprep.subr.bf16.mxu0 0
  %682 = vmatpush2.bf16.msra.mxu0 %v519
  %683 = vmatprep.subr.bf16.mxu0 0
  %684 = vmatpush2.bf16.msra.mxu0 %v518
  %685 = vmatprep.subr.bf16.mxu0 0
  %686 = vmatpush2.bf16.msra.mxu0 %v517
  %687 = vmatprep.subr.bf16.mxu0 0
  %688 = vmatpush2.bf16.msra.mxu0 %v516
  %689 = vmatprep.subr.bf16.mxu0 0
  %690 = vmatpush2.bf16.msra.mxu0 %v515
  %691 = vmatprep.mubr.bf16.mxu0 %v225
  %692 = vmatmul.mubr.bf16.gmra.mxu0 %v223
  %v693 = vpop.f32.mrf.mxu0
  %v694 = vadd.f32 %v654, %v693
  %v695 = vpop.f32.mrf.mxu0
  %v696 = vpop.f32.mrf.mxu0
  %v697 = vpop.f32.mrf.mxu0
  %698 = vdwg.mxu0
  %699 = vmatprep.subr.bf16.mxu0 0
  %700 = vmatpush1.bf16.msra.mxu0 %v530
  %701 = vmatprep.subr.bf16.mxu0 0
  %702 = vmatpush1.bf16.msra.mxu0 %v529
  %703 = vmatprep.subr.bf16.mxu0 0
  %704 = vmatpush1.bf16.msra.mxu0 %v528
  %705 = vmatprep.subr.bf16.mxu0 0
  %706 = vmatpush1.bf16.msra.mxu0 %v527
  %707 = vmatprep.subr.bf16.mxu0 0
  %708 = vmatpush1.bf16.msra.mxu0 %v526
  %709 = vmatprep.subr.bf16.mxu0 0
  %710 = vmatpush1.bf16.msra.mxu0 %v525
  %711 = vmatprep.subr.bf16.mxu0 0
  %712 = vmatpush1.bf16.msra.mxu0 %v524
  %713 = vmatprep.subr.bf16.mxu0 0
  %714 = vmatpush1.bf16.msra.mxu0 %v523
  %715 = vmatprep.subr.bf16.mxu0 0
  %716 = vmatpush2.bf16.msra.mxu0 %v538
  %717 = vmatprep.subr.bf16.mxu0 0
  %718 = vmatpush2.bf16.msra.mxu0 %v537
  %719 = vmatprep.subr.bf16.mxu0 0
  %720 = vmatpush2.bf16.msra.mxu0 %v536
  %721 = vmatprep.subr.bf16.mxu0 0
  %722 = vmatpush2.bf16.msra.mxu0 %v535
  %723 = vmatprep.subr.bf16.mxu0 0
  %724 = vmatpush2.bf16.msra.mxu0 %v534
  %725 = vmatprep.subr.bf16.mxu0 0
  %726 = vmatpush2.bf16.msra.mxu0 %v533
  %727 = vmatprep.subr.bf16.mxu0 0
  %728 = vmatpush2.bf16.msra.mxu0 %v532
  %729 = vmatprep.subr.bf16.mxu0 0
  %730 = vmatpush2.bf16.msra.mxu0 %v531
  %731 = vmatprep.mubr.bf16.mxu0 %v222
  %732 = vmatmul.mubr.bf16.gmra.mxu0 %v208
  %v733 = vpop.f32.mrf.mxu0
  %v734 = vadd.f32 %v694, %v733
  %v735 = vpop.f32.mrf.mxu0
  %v736 = vpop.f32.mrf.mxu0
  %v737 = vpop.f32.mrf.mxu0
  %738 = vdwg.mxu0
  %739 = vmatprep.subr.bf16.mxu0 0
  %740 = vmatpush1.bf16.msra.mxu0 %v546
  %741 = vmatprep.subr.bf16.mxu0 0
  %742 = vmatpush1.bf16.msra.mxu0 %v545
  %743 = vmatprep.subr.bf16.mxu0 0
  %744 = vmatpush1.bf16.msra.mxu0 %v544
  %745 = vmatprep.subr.bf16.mxu0 0
  %746 = vmatpush1.bf16.msra.mxu0 %v543
  %747 = vmatprep.subr.bf16.mxu0 0
  %748 = vmatpush1.bf16.msra.mxu0 %v542
  %749 = vmatprep.subr.bf16.mxu0 0
  %750 = vmatpush1.bf16.msra.mxu0 %v541
  %751 = vmatprep.subr.bf16.mxu0 0
  %752 = vmatpush1.bf16.msra.mxu0 %v540
  %753 = vmatprep.subr.bf16.mxu0 0
  %754 = vmatpush1.bf16.msra.mxu0 %v539
  %755 = vmatprep.subr.bf16.mxu0 0
  %756 = vmatpush2.bf16.msra.mxu0 %v554
  %757 = vmatprep.subr.bf16.mxu0 0
  %758 = vmatpush2.bf16.msra.mxu0 %v553
  %759 = vmatprep.subr.bf16.mxu0 0
  %760 = vmatpush2.bf16.msra.mxu0 %v552
  %761 = vmatprep.subr.bf16.mxu0 0
  %762 = vmatpush2.bf16.msra.mxu0 %v551
  %763 = vmatprep.subr.bf16.mxu0 0
  %764 = vmatpush2.bf16.msra.mxu0 %v550
  %765 = vmatprep.subr.bf16.mxu0 0
  %766 = vmatpush2.bf16.msra.mxu0 %v549
  %767 = vmatprep.subr.bf16.mxu0 0
  %768 = vmatpush2.bf16.msra.mxu0 %v548
  %769 = vmatprep.subr.bf16.mxu0 0
  %770 = vmatpush2.bf16.msra.mxu0 %v547
  %771 = vmatprep.mubr.bf16.mxu0 %v226
  %772 = vmatmul.mubr.bf16.gmra.mxu0 %v224
  %v773 = vpop.f32.mrf.mxu0
  %v774 = vadd.f32 %v734, %v773
  %v775 = vpop.f32.mrf.mxu0
  %v776 = vpop.f32.mrf.mxu0
  %v777 = vpop.f32.mrf.mxu0
  %778 = vdwg.mxu0
  %v779 = vadd.f32 %v47, %v774
  %vm780 = vcmask 517120
  %781 = vst.msk [vmem:[#allocation2] sm:$0x3] %vm780, %v779
  // Predicated region
  $region50: #{ppo_value_forward.7} parent=0 // pred_check
    %p782 = pneg %p41
  $region51: #{ppo_value_forward.7} parent=0 // pred_check_branch
    %784 = sbr.rel (%p782) target = $region53
  $region52: #{ppo_value_forward.7} parent=0 // pred_region
    %v785 = vld [vmem:[#allocation2] sm:$0x3]
    %v786 = vld [vmem:[%s2] sm:$0x1]
    %v788 = vlaneseq
    %v789 = vshrl.u32 %v788, 7
    %v790 = vsub.s32 0, %v789
    %v791 = vrot.slane %v786, %v790
    %v793 = vadd.f32 %v785, %v791
    %v794 = vmax.f32 %v793, 0.0
    %v795 = vpack.c.bf16 %v794, %v794
    %v796 = vld [vmem:[%s4] sm:$0xff]
    %v797 = vld [vmem:[%s4 + $0x8] sm:$0xff]
    %v798 = vld [vmem:[%s4 + $0x10] sm:$0xff]
    %v799 = vld [vmem:[%s4 + $0x18] sm:$0xff]
    %v800 = vld [vmem:[%s4 + $0x20] sm:$0xff]
    %v801 = vld [vmem:[%s4 + $0x28] sm:$0xff]
    %v802 = vld [vmem:[%s4 + $0x30] sm:$0xff]
    %v803 = vld [vmem:[%s4 + $0x38] sm:$0xff]
    %v804 = vld [vmem:[%s3] sm:$0x1]
    %v805 = vld [vmem:[%s5] sm:$0xff]
    %v806 = vld [vmem:[%s5 + $0x8] sm:$0xff]
    %v807 = vld [vmem:[%s5 + $0x10] sm:$0xff]
    %v808 = vld [vmem:[%s5 + $0x18] sm:$0xff]
    %v809 = vld [vmem:[%s5 + $0x20] sm:$0xff]
    %v810 = vld [vmem:[%s5 + $0x28] sm:$0xff]
    %v811 = vld [vmem:[%s5 + $0x30] sm:$0xff]
    %v812 = vld [vmem:[%s5 + $0x38] sm:$0xff]
    %v813 = vld [vmem:[%s5 + $0x40] sm:$0xff]
    %v814 = vld [vmem:[%s5 + $0x48] sm:$0xff]
    %v815 = vld [vmem:[%s5 + $0x50] sm:$0xff]
    %v816 = vld [vmem:[%s5 + $0x58] sm:$0xff]
    %v817 = vld [vmem:[%s5 + $0x60] sm:$0xff]
    %v818 = vld [vmem:[%s5 + $0x68] sm:$0xff]
    %v819 = vld [vmem:[%s5 + $0x70] sm:$0xff]
    %v820 = vld [vmem:[%s5 + $0x78] sm:$0xff]
    %v837 = vunpack.c.l.b16 %v805
    %v838 = vunpack.c.h.b16 %v805
    %v839 = vunpack.c.l.b16 %v806
    %v840 = vunpack.c.h.b16 %v806
    %v841 = vunpack.c.l.b16 %v807
    %v842 = vunpack.c.h.b16 %v807
    %v843 = vunpack.c.l.b16 %v808
    %v844 = vunpack.c.h.b16 %v808
    %v845 = vunpack.c.l.b16 %v809
    %v846 = vunpack.c.h.b16 %v809
    %v847 = vunpack.c.l.b16 %v810
    %v848 = vunpack.c.h.b16 %v810
    %v849 = vunpack.c.l.b16 %v811
    %v850 = vunpack.c.h.b16 %v811
    %v851 = vunpack.c.l.b16 %v812
    %v852 = vunpack.c.h.b16 %v812
    %v853 = vunpack.c.l.b16 %v813
    %v854 = vunpack.c.h.b16 %v813
    %v855 = vunpack.c.l.b16 %v814
    %v856 = vunpack.c.h.b16 %v814
    %v857 = vunpack.c.l.b16 %v815
    %v858 = vunpack.c.h.b16 %v815
    %v859 = vunpack.c.l.b16 %v816
    %v860 = vunpack.c.h.b16 %v816
    %v861 = vunpack.c.l.b16 %v817
    %v862 = vunpack.c.h.b16 %v817
    %v863 = vunpack.c.l.b16 %v818
    %v864 = vunpack.c.h.b16 %v818
    %v865 = vunpack.c.l.b16 %v819
    %v866 = vunpack.c.h.b16 %v819
    %v867 = vunpack.c.l.b16 %v820
    %v868 = vunpack.c.h.b16 %v820
    %v869 = vpack.c.b16 %v839, %v837
    %v870 = vpack.c.b16 %v840, %v838
    %v871 = vpack.c.b16 %v843, %v841
    %v872 = vpack.c.b16 %v844, %v842
    %v873 = vpack.c.b16 %v847, %v845
    %v874 = vpack.c.b16 %v848, %v846
    %v875 = vpack.c.b16 %v851, %v849
    %v876 = vpack.c.b16 %v852, %v850
    %v877 = vpack.c.b16 %v855, %v853
    %v878 = vpack.c.b16 %v856, %v854
    %v879 = vpack.c.b16 %v859, %v857
    %v880 = vpack.c.b16 %v860, %v858
    %v881 = vpack.c.b16 %v863, %v861
    %v882 = vpack.c.b16 %v864, %v862
    %v883 = vpack.c.b16 %v867, %v865
    %v884 = vpack.c.b16 %v868, %v866
    %901 = vmatprep.subr.bf16.mxu0 %v884
    %902 = vmatpush1.bf16.msra.mxu0 %v883
    %903 = vmatprep.subr.bf16.mxu0 %v882
    %904 = vmatpush1.bf16.msra.mxu0 %v881
    %905 = vmatprep.subr.bf16.mxu0 %v880
    %906 = vmatpush1.bf16.msra.mxu0 %v879
    %907 = vmatprep.subr.bf16.mxu0 %v878
    %908 = vmatpush1.bf16.msra.mxu0 %v877
    %909 = vmatprep.subr.bf16.mxu0 %v876
    %910 = vmatpush1.bf16.msra.mxu0 %v875
    %911 = vmatprep.subr.bf16.mxu0 %v874
    %912 = vmatpush1.bf16.msra.mxu0 %v873
    %913 = vmatprep.subr.bf16.mxu0 %v872
    %914 = vmatpush1.bf16.msra.mxu0 %v871
    %915 = vmatprep.subr.bf16.mxu0 %v870
    %916 = vmatpush1.bf16.msra.mxu0 %v869
    %917 = vmatprep.subr.bf16.mxu0 0
    %918 = vmatpush2.bf16.msra.mxu0 0
    %919 = vmatprep.subr.bf16.mxu0 0
    %920 = vmatpush2.bf16.msra.mxu0 0
    %921 = vmatprep.subr.bf16.mxu0 0
    %922 = vmatpush2.bf16.msra.mxu0 0
    %923 = vmatprep.subr.bf16.mxu0 0
    %924 = vmatpush2.bf16.msra.mxu0 0
    %925 = vmatprep.subr.bf16.mxu0 0
    %926 = vmatpush2.bf16.msra.mxu0 0
    %927 = vmatprep.subr.bf16.mxu0 0
    %928 = vmatpush2.bf16.msra.mxu0 0
    %929 = vmatprep.subr.bf16.mxu0 0
    %930 = vmatpush2.bf16.msra.mxu0 0
    %931 = vmatprep.subr.bf16.mxu0 0
    %932 = vmatpush2.bf16.msra.mxu0 0
    %933 = vmatprep.mubr.bf16.mxu0 0
    %934 = vmatmul.mubr.bf16.gmra.mxu0 %v804
    %v935 = vpop.f32.mrf.mxu0
    %v936 = vadd.f32 0.0, %v935
    %v937 = vpop.f32.mrf.mxu0
    %v938 = vadd.f32 0.0, %v937
    %v939 = vpop.f32.mrf.mxu0
    %v940 = vpop.f32.mrf.mxu0
    %941 = vdwg.mxu0
    %v950 = vunpack.c.l.b16 %v796
    %v951 = vunpack.c.h.b16 %v796
    %v952 = vunpack.c.l.b16 %v797
    %v953 = vunpack.c.h.b16 %v797
    %v954 = vunpack.c.l.b16 %v798
    %v955 = vunpack.c.h.b16 %v798
    %v956 = vunpack.c.l.b16 %v799
    %v957 = vunpack.c.h.b16 %v799
    %v958 = vunpack.c.l.b16 %v800
    %v959 = vunpack.c.h.b16 %v800
    %v960 = vunpack.c.l.b16 %v801
    %v961 = vunpack.c.h.b16 %v801
    %v962 = vunpack.c.l.b16 %v802
    %v963 = vunpack.c.h.b16 %v802
    %v964 = vunpack.c.l.b16 %v803
    %v965 = vunpack.c.h.b16 %v803
    %v966 = vpack.c.b16 %v952, %v950
    %v967 = vpack.c.b16 %v953, %v951
    %v968 = vpack.c.b16 %v956, %v954
    %v969 = vpack.c.b16 %v957, %v955
    %v970 = vpack.c.b16 %v960, %v958
    %v971 = vpack.c.b16 %v961, %v959
    %v972 = vpack.c.b16 %v964, %v962
    %v973 = vpack.c.b16 %v965, %v963
    %vm982 = vcmask 523264
    %v984 = vsel %vm982, %v795, 0
    %986 = vmatprep.subr.bf16.mxu0 0
    %987 = vmatpush1.bf16.msra.mxu0 0
    %988 = vmatprep.subr.bf16.mxu0 0
    %989 = vmatpush1.bf16.msra.mxu0 0
    %990 = vmatprep.subr.bf16.mxu0 0
    %991 = vmatpush1.bf16.msra.mxu0 0
    %992 = vmatprep.subr.bf16.mxu0 0
    %993 = vmatpush1.bf16.msra.mxu0 0
    %994 = vmatprep.subr.bf16.mxu0 %v973
    %995 = vmatpush1.bf16.msra.mxu0 %v972
    %996 = vmatprep.subr.bf16.mxu0 %v971
    %997 = vmatpush1.bf16.msra.mxu0 %v970
    %998 = vmatprep.subr.bf16.mxu0 %v969
    %999 = vmatpush1.bf16.msra.mxu0 %v968
    %1000 = vmatprep.subr.bf16.mxu0 %v967
    %1001 = vmatpush1.bf16.msra.mxu0 %v966
    %1002 = vmatprep.subr.bf16.mxu0 0
    %1003 = vmatpush2.bf16.msra.mxu0 0
    %1004 = vmatprep.subr.bf16.mxu0 0
    %1005 = vmatpush2.bf16.msra.mxu0 0
    %1006 = vmatprep.subr.bf16.mxu0 0
    %1007 = vmatpush2.bf16.msra.mxu0 0
    %1008 = vmatprep.subr.bf16.mxu0 0
    %1009 = vmatpush2.bf16.msra.mxu0 0
    %1010 = vmatprep.subr.bf16.mxu0 0
    %1011 = vmatpush2.bf16.msra.mxu0 0
    %1012 = vmatprep.subr.bf16.mxu0 0
    %1013 = vmatpush2.bf16.msra.mxu0 0
    %1014 = vmatprep.subr.bf16.mxu0 0
    %1015 = vmatpush2.bf16.msra.mxu0 0
    %1016 = vmatprep.subr.bf16.mxu0 0
    %1017 = vmatpush2.bf16.msra.mxu0 0
    %1018 = vmatprep.mubr.bf16.mxu0 0
    %1019 = vmatmul.mubr.bf16.gmra.mxu0 %v984
    %v1020 = vpop.f32.mrf.mxu0
    %v1021 = vadd.f32 %v936, %v1020
    %v1022 = vpop.f32.mrf.mxu0
    %v1023 = vadd.f32 %v938, %v1022
    %v1024 = vpop.f32.mrf.mxu0
    %v1025 = vpop.f32.mrf.mxu0
    %1026 = vdwg.mxu0
    %v1027 = vld [vmem:[%s6] sm:$0x3]
    %v1029 = vlaneseq
    %v1030 = vshrl.u32 %v1029, 7
    %v1031 = vsub.s32 0, %v1030
    %v1032 = vrot.slane %v1027, %v1031
    %v1033 = vlaneseq
    %v1034 = vshrl.u32 %v1033, 7
    %v1035 = vsub.s32 1, %v1034
    %v1036 = vrot.slane %v1027, %v1035
    %v1039 = vadd.f32 %v1021, %v1032
    %v1040 = vadd.f32 %v1023, %v1036
    %v1041 = vmax.f32 %v1039, 0.0
    %v1042 = vmax.f32 %v1040, 0.0
    %v1043 = vpack.c.bf16 %v1041, %v1041
    %v1044 = vpack.c.bf16 %v1042, %v1042
    %v1045 = vld [vmem:[%s7] sm:$0xf]
    %v1046 = vld [vmem:[%s7 + $0x4] sm:$0xf]
    %v1047 = vld [vmem:[%s7 + $0x8] sm:$0xf]
    %v1048 = vld [vmem:[%s7 + $0xc] sm:$0xf]
    %v1049 = vld [vmem:[%s7 + $0x10] sm:$0xf]
    %v1050 = vld [vmem:[%s7 + $0x14] sm:$0xf]
    %v1051 = vld [vmem:[%s7 + $0x18] sm:$0xf]
    %v1052 = vld [vmem:[%s7 + $0x1c] sm:$0xf]
    %v1053 = vld [vmem:[%s7 + $0x20] sm:$0xf]
    %v1054 = vld [vmem:[%s7 + $0x24] sm:$0xf]
    %v1055 = vld [vmem:[%s7 + $0x28] sm:$0xf]
    %v1056 = vld [vmem:[%s7 + $0x2c] sm:$0xf]
    %v1057 = vld [vmem:[%s7 + $0x30] sm:$0xf]
    %v1058 = vld [vmem:[%s7 + $0x34] sm:$0xf]
    %v1059 = vld [vmem:[%s7 + $0x38] sm:$0xf]
    %v1060 = vld [vmem:[%s7 + $0x3c] sm:$0xf]
    %v1061 = vld [vmem:[%s7 + $0x40] sm:$0xf]
    %v1062 = vld [vmem:[%s7 + $0x44] sm:$0xf]
    %v1063 = vld [vmem:[%s7 + $0x48] sm:$0xf]
    %v1064 = vld [vmem:[%s7 + $0x4c] sm:$0xf]
    %v1065 = vld [vmem:[%s7 + $0x50] sm:$0xf]
    %v1066 = vld [vmem:[%s7 + $0x54] sm:$0xf]
    %v1067 = vld [vmem:[%s7 + $0x58] sm:$0xf]
    %v1068 = vld [vmem:[%s7 + $0x5c] sm:$0xf]
    %v1069 = vld [vmem:[%s7 + $0x60] sm:$0xf]
    %v1070 = vld [vmem:[%s7 + $0x64] sm:$0xf]
    %v1071 = vld [vmem:[%s7 + $0x68] sm:$0xf]
    %v1072 = vld [vmem:[%s7 + $0x6c] sm:$0xf]
    %v1073 = vld [vmem:[%s7 + $0x70] sm:$0xf]
    %v1074 = vld [vmem:[%s7 + $0x74] sm:$0xf]
    %v1075 = vld [vmem:[%s7 + $0x78] sm:$0xf]
    %v1076 = vld [vmem:[%s7 + $0x7c] sm:$0xf]
    %v1077 = vld [vmem:[%s8] sm:$0x1]
    %v1079 = vlaneseq
    %v1080 = vshrl.u32 %v1079, 7
    %v1081 = vsub.s32 0, %v1080
    %v1082 = vrot.slane %v1077, %v1081
    %v1116 = vunpack.c.l.b16 %v1045
    %v1117 = vunpack.c.l.b16 %v1046
    %v1118 = vunpack.c.l.b16 %v1047
    %v1119 = vunpack.c.l.b16 %v1048
    %v1120 = vunpack.c.l.b16 %v1049
    %v1121 = vunpack.c.l.b16 %v1050
    %v1122 = vunpack.c.l.b16 %v1051
    %v1123 = vunpack.c.l.b16 %v1052
    %v1124 = vunpack.c.l.b16 %v1053
    %v1125 = vunpack.c.l.b16 %v1054
    %v1126 = vunpack.c.l.b16 %v1055
    %v1127 = vunpack.c.l.b16 %v1056
    %v1128 = vunpack.c.l.b16 %v1057
    %v1129 = vunpack.c.l.b16 %v1058
    %v1130 = vunpack.c.l.b16 %v1059
    %v1131 = vunpack.c.l.b16 %v1060
    %v1132 = vunpack.c.l.b16 %v1061
    %v1133 = vunpack.c.l.b16 %v1062
    %v1134 = vunpack.c.l.b16 %v1063
    %v1135 = vunpack.c.l.b16 %v1064
    %v1136 = vunpack.c.l.b16 %v1065
    %v1137 = vunpack.c.l.b16 %v1066
    %v1138 = vunpack.c.l.b16 %v1067
    %v1139 = vunpack.c.l.b16 %v1068
    %v1140 = vunpack.c.l.b16 %v1069
    %v1141 = vunpack.c.l.b16 %v1070
    %v1142 = vunpack.c.l.b16 %v1071
    %v1143 = vunpack.c.l.b16 %v1072
    %v1144 = vunpack.c.l.b16 %v1073
    %v1145 = vunpack.c.l.b16 %v1074
    %v1146 = vunpack.c.l.b16 %v1075
    %v1147 = vunpack.c.l.b16 %v1076
    %v1148 = vpack.c.b16 %v1117, %v1116
    %v1149 = vpack.c.b16 %v1119, %v1118
    %v1150 = vpack.c.b16 %v1121, %v1120
    %v1151 = vpack.c.b16 %v1123, %v1122
    %v1152 = vpack.c.b16 %v1125, %v1124
    %v1153 = vpack.c.b16 %v1127, %v1126
    %v1154 = vpack.c.b16 %v1129, %v1128
    %v1155 = vpack.c.b16 %v1131, %v1130
    %v1156 = vpack.c.b16 %v1133, %v1132
    %v1157 = vpack.c.b16 %v1135, %v1134
    %v1158 = vpack.c.b16 %v1137, %v1136
    %v1159 = vpack.c.b16 %v1139, %v1138
    %v1160 = vpack.c.b16 %v1141, %v1140
    %v1161 = vpack.c.b16 %v1143, %v1142
    %v1162 = vpack.c.b16 %v1145, %v1144
    %v1163 = vpack.c.b16 %v1147, %v1146
    %1180 = vmatprep.subr.bf16.mxu0 0
    %1181 = vmatpush1.bf16.msra.mxu0 %v1155
    %1182 = vmatprep.subr.bf16.mxu0 0
    %1183 = vmatpush1.bf16.msra.mxu0 %v1154
    %1184 = vmatprep.subr.bf16.mxu0 0
    %1185 = vmatpush1.bf16.msra.mxu0 %v1153
    %1186 = vmatprep.subr.bf16.mxu0 0
    %1187 = vmatpush1.bf16.msra.mxu0 %v1152
    %1188 = vmatprep.subr.bf16.mxu0 0
    %1189 = vmatpush1.bf16.msra.mxu0 %v1151
    %1190 = vmatprep.subr.bf16.mxu0 0
    %1191 = vmatpush1.bf16.msra.mxu0 %v1150
    %1192 = vmatprep.subr.bf16.mxu0 0
    %1193 = vmatpush1.bf16.msra.mxu0 %v1149
    %1194 = vmatprep.subr.bf16.mxu0 0
    %1195 = vmatpush1.bf16.msra.mxu0 %v1148
    %1196 = vmatprep.subr.bf16.mxu0 0
    %1197 = vmatpush2.bf16.msra.mxu0 %v1163
    %1198 = vmatprep.subr.bf16.mxu0 0
    %1199 = vmatpush2.bf16.msra.mxu0 %v1162
    %1200 = vmatprep.subr.bf16.mxu0 0
    %1201 = vmatpush2.bf16.msra.mxu0 %v1161
    %1202 = vmatprep.subr.bf16.mxu0 0
    %1203 = vmatpush2.bf16.msra.mxu0 %v1160
    %1204 = vmatprep.subr.bf16.mxu0 0
    %1205 = vmatpush2.bf16.msra.mxu0 %v1159
    %1206 = vmatprep.subr.bf16.mxu0 0
    %1207 = vmatpush2.bf16.msra.mxu0 %v1158
    %1208 = vmatprep.subr.bf16.mxu0 0
    %1209 = vmatpush2.bf16.msra.mxu0 %v1157
    %1210 = vmatprep.subr.bf16.mxu0 0
    %1211 = vmatpush2.bf16.msra.mxu0 %v1156
    %1212 = vmatprep.mubr.bf16.mxu0 %v1044
    %1213 = vmatmul.mubr.bf16.gmra.mxu0 %v1043
    %v1214 = vpop.f32.mrf.mxu0
    %v1215 = vadd.f32 %v1082, %v1214
    %v1216 = vpop.f32.mrf.mxu0
    %v1217 = vpop.f32.mrf.mxu0
    %v1218 = vpop.f32.mrf.mxu0
    %1219 = vdwg.mxu0
    %v1220 = vmax.f32 %v1215, 0.0
    %v1221 = vld [vmem:[%s9] sm:$0x1]
    %v1223 = vlaneseq
    %v1224 = vshrl.u32 %v1223, 7
    %v1225 = vsub.s32 0, %v1224
    %v1226 = vrot.slane %v1221, %v1225
    %v1228 = vmul.f32 %v1220, %v1226
    %vm1229 = vcmask 1041408
    %v1230 = vsel %vm1229, %v1228, 0.0
    %1231 = vadd.xlane.f32.xlu0 %v1230
    %v1232 = vpop.xlane.xlu0 %1231
    %v1233 = vld [vmem:[#allocation3] sm:$0x1]
    %v1235 = vlaneseq
    %v1236 = vshrl.u32 %v1235, 7
    %v1237 = vsub.s32 0, %v1236
    %v1238 = vrot.slane %v1233, %v1237
    %v1240 = vadd.f32 %v1232, %v1238
    %1242 = vset.pattern.permute.xlu0 0
    %1243 = vperm.xlu0 %1242, %v1240
    %v1244 = vpop.permute.xlu0 %1243
    %1246 = vst [vmem:[%s11] sm:$0x3] %v1244
  $region53: #{ppo_value_forward.7} parent=0 // pred_fallthru
    _
  // Predicated region
  $region54: #{ppo_value_forward.7} parent=0 // pred_check
    _
  $region55: #{ppo_value_forward.7} parent=0 // pred_check_branch
    %1248 = sbr.rel (0) target = $region57
  $region56: #{ppo_value_forward.7} parent=0 // pred_region
    _
  $region57: #{ppo_value_forward.7} parent=0 // pred_fallthru
    _
  // Predicated region
  $region58: #{ppo_value_forward.7} parent=0 // pred_check
    _
  $region59: #{ppo_value_forward.7} parent=0 // pred_check_branch
    %1250 = sbr.rel (0) target = $region61
  $region60: #{ppo_value_forward.7} parent=0 // pred_region
    _
  $region61: #{ppo_value_forward.7} parent=0 // pred_fallthru
    _

</llo_original>
